<compile_context>
chip_gen: v5e
topology: v5e:2x2
jax: 0.10.0
libtpu: 0.0.40
codegen_flags: <defaults>
</compile_context>

<pallas_src>
import math
from functools import partial

import jax
import jax.numpy as jnp
from jax.experimental import pallas as pl
from jax.experimental.pallas import tpu as pltpu

# ----------------------- small "roberta-base"-shaped config -----------------------
B = 2             # batch
S = 8             # sequence length
H = 128           # hidden size (lane-dense; roberta-base: 768)
NH = 4            # attention heads (roberta-base: 12)
DH = H // NH      # head dim
FF = 256          # intermediate size (roberta-base: 3072)
LAYERS = 12       # must be 12 so hidden_states[11] / [12] exist
VOCAB = 100
MAXPOS = 40
N_CLASSES = 3
NPAD = 128        # lane-dense padded classifier width (sliced to N_CLASSES outside)
PAD_IDX = 1       # roberta padding_idx
LN_EPS = 1e-5


# ================================ kernel helpers ================================

def _ln(x, g, b):
    """LayerNorm over the last axis; x (M, H) f32, g/b (1, H) f32."""
    mu = jnp.mean(x, axis=-1, keepdims=True)
    var = jnp.mean(jnp.square(x - mu), axis=-1, keepdims=True)
    return (x - mu) * jax.lax.rsqrt(var + LN_EPS) * g + b


def _gelu(y):
    # TODO(synk): HF roberta uses exact erf-GELU; tanh approximation kept here to
    # guarantee Mosaic elementwise lowering on all TPU generations.
    c = math.sqrt(2.0 / math.pi)
    return 0.5 * y * (1.0 + jnp.tanh(c * (y + 0.044715 * y * y * y)))


# ====================== fused 12-layer encoder stack kernel ======================

def _encoder_stack_kernel(
        x_emb_ref, mask_ref, eg_ref, eb_ref,
        wqkv_ref, bqkv_ref, wo_ref, bo_ref,
        ln1g_ref, ln1b_ref, w1_ref, b1_ref, w2_ref, b2_ref,
        ln2g_ref, ln2b_ref,
        h11_ref, h12_ref,
        act_ref):
    l = pl.program_id(0)

    # Layer 0: apply the embedding LayerNorm and seed the resident activation.
    @pl.when(l == 0)
    def _init():
        act_ref[...] = _ln(x_emb_ref[...].astype(jnp.float32),
                           eg_ref[...], eb_ref[...])

    x = act_ref[...]                              # (B*S, H) f32 carry
    xb = x.astype(jnp.bfloat16)

    # Fused QKV projection: one (B*S, H) x (H, 3H) bf16 matmul, f32 accumulate.
    qkv = jnp.dot(xb, wqkv_ref[...],
                  preferred_element_type=jnp.float32) + bqkv_ref[...]   # (B*S, 3H)

    # Attention over all (batch, head) pairs, statically unrolled (tiny tiles).
    mb = mask_ref[...]                            # (B, S) additive -1e9 bias
    scale = 1.0 / math.sqrt(DH)
    ctx_rows = []
    for b in range(B):
        r0 = b * S
        heads = []
        for h in range(NH):
            c0 = h * DH
            q = qkv[r0:r0 + S, c0:c0 + DH]                       # (S, DH)
            k = qkv[r0:r0 + S, H + c0:H + c0 + DH]               # (S, DH)
            v = qkv[r0:r0 + S, 2 * H + c0:2 * H + c0 + DH]       # (S, DH)
            s = jnp.dot(q, k.T, preferred_element_type=jnp.float32) * scale
            s = s + mb[b:b + 1, :]                               # (S, S)
            s = s - jnp.max(s, axis=-1, keepdims=True)
            p = jnp.exp(s)
            p = p * pl.reciprocal(jnp.sum(p, axis=-1, keepdims=True), approx=True)
            heads.append(jnp.dot(p, v, preferred_element_type=jnp.float32))
        ctx_rows.append(jnp.concatenate(heads, axis=1))          # (S, H)
    ctx = jnp.concatenate(ctx_rows, axis=0)                      # (B*S, H)

    # Output projection + residual + LayerNorm1 (post-LN, like RoBERTa).
    attn = jnp.dot(ctx.astype(jnp.bfloat16), wo_ref[...],
                   preferred_element_type=jnp.float32) + bo_ref[...]
    x = _ln(attn + x, ln1g_ref[...], ln1b_ref[...])

    # FFN: H -> FF (GELU) -> H, residual + LayerNorm2.
    ffn = jnp.dot(x.astype(jnp.bfloat16), w1_ref[...],
                  preferred_element_type=jnp.float32) + b1_ref[...]
    ffn = _gelu(ffn)
    ffn = jnp.dot(ffn.astype(jnp.bfloat16), w2_ref[...],
                  preferred_element_type=jnp.float32) + b2_ref[...]
    x = _ln(ffn + x, ln2g_ref[...], ln2b_ref[...])

    act_ref[...] = x                              # carry to next layer

    # hidden_states[11] = output of layer 11 (0-based l == LAYERS-2)
    @pl.when(l == LAYERS - 2)
    def _store_h11():
        h11_ref[...] = x.astype(h11_ref.dtype)

    # hidden_states[12] = output of layer 12 (last layer)
    @pl.when(l == LAYERS - 1)
    def _store_h12():
        h12_ref[...] = x.astype(h12_ref.dtype)


def encoder_stack(x_emb, mask_bias, p):
    n_rows = B * S

    def const2d(shape):
        return pl.BlockSpec(shape, lambda l: (0, 0))

    def per_layer(d1, d2):
        # leading layer axis squeezed; index_map selects this layer's slice
        return pl.BlockSpec((None, d1, d2), lambda l: (l, 0, 0))

    out = pl.pallas_call(
        _encoder_stack_kernel,
        out_shape=(jax.ShapeDtypeStruct((n_rows, H), jnp.float32),
                   jax.ShapeDtypeStruct((n_rows, H), jnp.float32)),
        grid=(LAYERS,),
        in_specs=[
            const2d((n_rows, H)),        # x_emb (pre-LN embedding sum), resident
            const2d((B, S)),             # additive attention-mask bias
            const2d((1, H)),             # emb_ln_g
            const2d((1, H)),             # emb_ln_b
            per_layer(H, 3 * H),         # wqkv
            per_layer(1, 3 * H),         # bqkv
            per_layer(H, H),             # wo
            per_layer(1, H),             # bo
            per_layer(1, H),             # ln1_g
            per_layer(1, H),             # ln1_b
            per_layer(H, FF),            # w1
            per_layer(1, FF),            # b1
            per_layer(FF, H),            # w2
            per_layer(1, H),             # b2
            per_layer(1, H),             # ln2_g
            per_layer(1, H),             # ln2_b
        ],
        out_specs=(pl.BlockSpec((n_rows, H), lambda l: (0, 0)),
                   pl.BlockSpec((n_rows, H), lambda l: (0, 0))),
        scratch_shapes=[pltpu.VMEM((n_rows, H), jnp.float32)],   # activation carry
        compiler_params=pltpu.CompilerParams(
            dimension_semantics=("arbitrary",)),                  # sequential carry
    )(x_emb, mask_bias, p["emb_ln_g"], p["emb_ln_b"],
      p["wqkv"], p["bqkv"], p["wo"], p["bo"],
      p["ln1_g"], p["ln1_b"], p["w1"], p["b1"], p["w2"], p["b2"],
      p["ln2_g"], p["ln2_b"])
    return out


# ===================== fused pooler(x2) + average + classifier =====================

def _head_kernel(cls11_ref, cls12_ref, pw_ref, pb_ref, ow_ref, ob_ref, o_ref):
    pw = pw_ref[...]
    pb = pb_ref[...]
    p11 = jnp.tanh(jnp.dot(cls11_ref[...].astype(jnp.bfloat16), pw,
                           preferred_element_type=jnp.float32) + pb)
    p12 = jnp.tanh(jnp.dot(cls12_ref[...].astype(jnp.bfloat16), pw,
                           preferred_element_type=jnp.float32) + pb)
    pooled = (p11 + p12) * 0.5
    # self.drop (p=0.1): identity at inference
    logits = jnp.dot(pooled.astype(jnp.bfloat16), ow_ref[...],
                     preferred_element_type=jnp.float32) + ob_ref[...]
    o_ref[...] = logits.astype(o_ref.dtype)


def classifier_head(cls11, cls12, p):
    return pl.pallas_call(
        _head_kernel,
        out_shape=jax.ShapeDtypeStruct((B, NPAD), jnp.float32),
        grid=(1,),
        in_specs=[pl.BlockSpec((B, H), lambda i: (0, 0)),
                  pl.BlockSpec((B, H), lambda i: (0, 0)),
                  pl.BlockSpec((H, H), lambda i: (0, 0)),
                  pl.BlockSpec((1, H), lambda i: (0, 0)),
                  pl.BlockSpec((H, NPAD), lambda i: (0, 0)),
                  pl.BlockSpec((1, NPAD), lambda i: (0, 0))],
        out_specs=pl.BlockSpec((B, NPAD), lambda i: (0, 0)),
    )(cls11, cls12, p["pooler_w"], p["pooler_b"], p["out_w"], p["out_b"])


# ================================ model (glue) ================================

def embeddings_sum(input_ids, params):
    """word + position + token_type embedding sum (LayerNorm is fused in-kernel)."""
    pad_mask = (input_ids != PAD_IDX).astype(jnp.int32)
    position_ids = jnp.cumsum(pad_mask, axis=1) * pad_mask + PAD_IDX
    we = jnp.take(params["word_emb"], input_ids, axis=0)          # (B, S, H)
    pe = jnp.take(params["pos_emb"], position_ids, axis=0)        # (B, S, H)
    te = params["tok_emb"][0][None, None, :]                      # token_type_ids = 0
    return (we + pe + te).reshape(B * S, H)


def forward(params, input_ids, attention_mask):
    x_emb = embeddings_sum(input_ids, params)                               # (B*S, H)
    mask_bias = (1.0 - attention_mask.astype(jnp.float32)) * -1e9           # (B, S)
    h11, h12 = encoder_stack(x_emb, mask_bias, params)                      # (B*S, H) x2
    cls11 = h11.reshape(B, S, H)[:, 0, :]                                   # (B, H)
    cls12 = h12.reshape(B, S, H)[:, 0, :]
    logits_pad = classifier_head(cls11, cls12, params)                      # (B, NPAD)
    return logits_pad[:, :N_CLASSES]


# ================================ parameter init ================================

def init_params(key):
    ks = jax.random.split(key, 10)

    def norm(k, shape, dtype=jnp.float32):
        return (jax.random.normal(k, shape, jnp.float32) * 0.02).astype(dtype)

    def stacked(k, shape):
        return (jax.random.normal(k, (LAYERS,) + shape, jnp.float32) * 0.02
                ).astype(jnp.bfloat16)

    out_w = jnp.zeros((H, NPAD), jnp.float32)
    out_w = out_w.at[:, :N_CLASSES].set(
        jax.random.normal(ks[8], (H, N_CLASSES), jnp.float32) * 0.02)

    params = {
        "word_emb": norm(ks[0], (VOCAB, H)),
        "pos_emb": norm(ks[1], (MAXPOS, H)),
        "tok_emb": norm(ks[2], (1, H)),
        "emb_ln_g": jnp.ones((1, H), jnp.float32),
        "emb_ln_b": jnp.zeros((1, H), jnp.float32),
        # stacked per-layer weights (bf16 MXU operands), f32 biases / LN params
        "wqkv": stacked(ks[3], (H, 3 * H)),
        "bqkv": jnp.zeros((LAYERS, 1, 3 * H), jnp.float32),
        "wo": stacked(ks[4], (H, H)),
        "bo": jnp.zeros((LAYERS, 1, H), jnp.float32),
        "ln1_g": jnp.ones((LAYERS, 1, H), jnp.float32),
        "ln1_b": jnp.zeros((LAYERS, 1, H), jnp.float32),
        "w1": stacked(ks[5], (H, FF)),
        "b1": jnp.zeros((LAYERS, 1, FF), jnp.float32),
        "w2": stacked(ks[6], (FF, H)),
        "b2": jnp.zeros((LAYERS, 1, H), jnp.float32),
        "ln2_g": jnp.ones((LAYERS, 1, H), jnp.float32),
        "ln2_b": jnp.zeros((LAYERS, 1, H), jnp.float32),
        # pooler + classifier head (classifier width padded to 128 lanes)
        "pooler_w": norm(ks[7], (H, H), jnp.bfloat16),
        "pooler_b": jnp.zeros((1, H), jnp.float32),
        "out_w": out_w.astype(jnp.bfloat16),
        "out_b": jnp.zeros((1, NPAD), jnp.float32),
    }
    return params


# ==================================== main ====================================

if __name__ == "__main__":
    key = jax.random.PRNGKey(0)
    pkey, ikey = jax.random.split(key)
    params = init_params(pkey)

    input_ids = jax.random.randint(ikey, (B, S), 2, VOCAB, dtype=jnp.int32)
    attention_mask = jnp.ones((B, S), jnp.int32)
    attention_mask = attention_mask.at[1, S - 3:].set(0)        # pad tail of row 1
    input_ids = jnp.where(attention_mask == 1, input_ids, PAD_IDX)

    logits = jax.jit(forward)(params, input_ids, attention_mask)
    jax.block_until_ready(logits)

    assert logits.shape == (B, N_CLASSES), logits.shape
    assert logits.dtype == jnp.float32
    assert bool(jnp.all(jnp.isfinite(logits)))
    print("KERNEL_OK")
</pallas_src>

<mosaic_0001>
module attributes {stable_mosaic.version = 11 : i64} {
  func.func @_encoder_stack_kernel(%arg0: i32, %arg1: memref<16x128xf32, #tpu.memory_space<vmem>>, %arg2: memref<2x8xf32, #tpu.memory_space<vmem>>, %arg3: memref<1x128xf32, #tpu.memory_space<vmem>>, %arg4: memref<1x128xf32, #tpu.memory_space<vmem>>, %arg5: memref<1x128x384xbf16, #tpu.memory_space<vmem>>, %arg6: memref<1x1x384xf32, #tpu.memory_space<vmem>>, %arg7: memref<1x128x128xbf16, #tpu.memory_space<vmem>>, %arg8: memref<1x1x128xf32, #tpu.memory_space<vmem>>, %arg9: memref<1x1x128xf32, #tpu.memory_space<vmem>>, %arg10: memref<1x1x128xf32, #tpu.memory_space<vmem>>, %arg11: memref<1x128x256xbf16, #tpu.memory_space<vmem>>, %arg12: memref<1x1x256xf32, #tpu.memory_space<vmem>>, %arg13: memref<1x256x128xbf16, #tpu.memory_space<vmem>>, %arg14: memref<1x1x128xf32, #tpu.memory_space<vmem>>, %arg15: memref<1x1x128xf32, #tpu.memory_space<vmem>>, %arg16: memref<1x1x128xf32, #tpu.memory_space<vmem>>, %arg17: memref<16x128xf32, #tpu.memory_space<vmem>>, %arg18: memref<16x128xf32, #tpu.memory_space<vmem>>, %arg19: memref<16x128xf32, #tpu.memory_space<vmem>>) attributes {dimension_semantics = [#tpu.dimension_semantics<arbitrary>], iteration_bounds = array<i64: 12>, scalar_prefetch = 0 : i64, scratch_operands = 1 : i64, tpu.core_type = #tpu.core_type<tc>, window_params = [{pipeline_mode = #tpu.pipeline_mode<synchronous>, transform_indices = @transform_0, window_bounds = array<i64: 16, 128>}, {pipeline_mode = #tpu.pipeline_mode<synchronous>, transform_indices = @transform_1, window_bounds = array<i64: 2, 8>}, {pipeline_mode = #tpu.pipeline_mode<synchronous>, transform_indices = @transform_2, window_bounds = array<i64: 1, 128>}, {pipeline_mode = #tpu.pipeline_mode<synchronous>, transform_indices = @transform_3, window_bounds = array<i64: 1, 128>}, {transform_indices = @transform_4, window_bounds = array<i64: 1, 128, 384>}, {transform_indices = @transform_5, window_bounds = array<i64: 1, 1, 384>}, {transform_indices = @transform_6, window_bounds = array<i64: 1, 128, 128>}, {transform_indices = @transform_7, window_bounds = array<i64: 1, 1, 128>}, {transform_indices = @transform_8, window_bounds = array<i64: 1, 1, 128>}, {transform_indices = @transform_9, window_bounds = array<i64: 1, 1, 128>}, {transform_indices = @transform_10, window_bounds = array<i64: 1, 128, 256>}, {transform_indices = @transform_11, window_bounds = array<i64: 1, 1, 256>}, {transform_indices = @transform_12, window_bounds = array<i64: 1, 256, 128>}, {transform_indices = @transform_13, window_bounds = array<i64: 1, 1, 128>}, {transform_indices = @transform_14, window_bounds = array<i64: 1, 1, 128>}, {transform_indices = @transform_15, window_bounds = array<i64: 1, 1, 128>}, {pipeline_mode = #tpu.pipeline_mode<synchronous>, transform_indices = @transform_16, window_bounds = array<i64: 16, 128>}, {pipeline_mode = #tpu.pipeline_mode<synchronous>, transform_indices = @transform_17, window_bounds = array<i64: 16, 128>}]} {
    %c0_i32 = arith.constant 0 : i32
    %0 = arith.cmpi eq, %arg0, %c0_i32 : i32
    %1 = arith.extui %0 : i1 to i32
    %c0_i32_0 = arith.constant 0 : i32
    %2 = arith.cmpi ne, %1, %c0_i32_0 : i32
    scf.if %2 {
      %c0_101 = arith.constant 0 : index
      %c0_102 = arith.constant 0 : index
      %282 = vector.load %arg1[%c0_101, %c0_102] : memref<16x128xf32, #tpu.memory_space<vmem>>, vector<16x128xf32>
      %c0_103 = arith.constant 0 : index
      %c0_104 = arith.constant 0 : index
      %283 = vector.load %arg3[%c0_103, %c0_104] : memref<1x128xf32, #tpu.memory_space<vmem>>, vector<1x128xf32>
      %c0_105 = arith.constant 0 : index
      %c0_106 = arith.constant 0 : index
      %284 = vector.load %arg4[%c0_105, %c0_106] : memref<1x128xf32, #tpu.memory_space<vmem>>, vector<1x128xf32>
      %cst_107 = arith.constant dense<0.000000e+00> : vector<16xf32>
      %285 = vector.multi_reduction <add>, %282, %cst_107 [1] : vector<16x128xf32> to vector<16xf32>
      %286 = vector.shape_cast %285 : vector<16xf32> to vector<16x1xf32>
      %cst_108 = arith.constant 1.280000e+02 : f32
      %287 = vector.broadcast %cst_108 : f32 to vector<16x1xf32>
      %288 = arith.divf %286, %287 : vector<16x1xf32>
      %289 = vector.broadcast %288 : vector<16x1xf32> to vector<16x128xf32>
      %290 = arith.subf %282, %289 : vector<16x128xf32>
      %291 = arith.mulf %290, %290 : vector<16x128xf32>
      %cst_109 = arith.constant dense<0.000000e+00> : vector<16xf32>
      %292 = vector.multi_reduction <add>, %291, %cst_109 [1] : vector<16x128xf32> to vector<16xf32>
      %293 = vector.shape_cast %292 : vector<16xf32> to vector<16x1xf32>
      %cst_110 = arith.constant 1.280000e+02 : f32
      %294 = vector.broadcast %cst_110 : f32 to vector<16x1xf32>
      %295 = arith.divf %293, %294 : vector<16x1xf32>
      %296 = vector.broadcast %288 : vector<16x1xf32> to vector<16x128xf32>
      %297 = arith.subf %282, %296 : vector<16x128xf32>
      %cst_111 = arith.constant 9.99999974E-6 : f32
      %298 = vector.broadcast %cst_111 : f32 to vector<16x1xf32>
      %299 = arith.addf %295, %298 : vector<16x1xf32>
      %300 = math.rsqrt %299 : vector<16x1xf32>
      %301 = vector.broadcast %300 : vector<16x1xf32> to vector<16x128xf32>
      %302 = arith.mulf %297, %301 : vector<16x128xf32>
      %303 = vector.broadcast %283 : vector<1x128xf32> to vector<16x128xf32>
      %304 = arith.mulf %302, %303 : vector<16x128xf32>
      %305 = vector.broadcast %284 : vector<1x128xf32> to vector<16x128xf32>
      %306 = arith.addf %304, %305 : vector<16x128xf32>
      %c0_112 = arith.constant 0 : index
      %c0_113 = arith.constant 0 : index
      %307 = vector.load %arg19[%c0_112, %c0_113] : memref<16x128xf32, #tpu.memory_space<vmem>>, vector<16x128xf32>
      tpu.vector_store %arg19[%c0_112, %c0_113], %306 {strides = array<i32>} : memref<16x128xf32, #tpu.memory_space<vmem>>, vector<16x128xf32>,
    } else {
    }
    %c0 = arith.constant 0 : index
    %c0_1 = arith.constant 0 : index
    %3 = vector.load %arg19[%c0, %c0_1] : memref<16x128xf32, #tpu.memory_space<vmem>>, vector<16x128xf32>
    %4 = arith.truncf %3 : vector<16x128xf32> to vector<16x128xbf16>
    %c0_2 = arith.constant 0 : index
    %c0_3 = arith.constant 0 : index
    %c0_4 = arith.constant 0 : index
    %5 = vector.load %arg5[%c0_2, %c0_3, %c0_4] : memref<1x128x384xbf16, #tpu.memory_space<vmem>>, vector<1x128x384xbf16>
    %6 = vector.shape_cast %5 : vector<1x128x384xbf16> to vector<128x384xbf16>
    %cst = arith.constant dense<0.000000e+00> : vector<16x384xf32>
    %7 = tpu.matmul %4, %6, %cst {dimension_numbers = #tpu.dot_dimension_numbers<[1], [0], [0], [1], [0, 0, 1, 1], [], []>} : vector<16x128xbf16>, vector<128x384xbf16>, vector<16x384xf32> -> vector<16x384xf32>
    %c0_5 = arith.constant 0 : index
    %c0_6 = arith.constant 0 : index
    %c0_7 = arith.constant 0 : index
    %8 = vector.load %arg6[%c0_5, %c0_6, %c0_7] : memref<1x1x384xf32, #tpu.memory_space<vmem>>, vector<1x1x384xf32>
    %9 = vector.shape_cast %8 : vector<1x1x384xf32> to vector<1x384xf32>
    %10 = vector.broadcast %9 : vector<1x384xf32> to vector<16x384xf32>
    %11 = arith.addf %7, %10 : vector<16x384xf32>
    %c0_8 = arith.constant 0 : index
    %c0_9 = arith.constant 0 : index
    %12 = vector.load %arg2[%c0_8, %c0_9] : memref<2x8xf32, #tpu.memory_space<vmem>>, vector<2x8xf32>
    %13 = vector.extract_strided_slice %11 {offsets = [0, 0], sizes = [8, 32], strides = [1, 1]} : vector<16x384xf32> to vector<8x32xf32>
    %14 = vector.extract_strided_slice %11 {offsets = [0, 128], sizes = [8, 32], strides = [1, 1]} : vector<16x384xf32> to vector<8x32xf32>
    %15 = vector.extract_strided_slice %11 {offsets = [0, 256], sizes = [8, 32], strides = [1, 1]} : vector<16x384xf32> to vector<8x32xf32>
    %16 = tpu.transpose %14, [1, 0] : vector<8x32xf32> -> vector<32x8xf32>
    %cst_10 = arith.constant dense<0.000000e+00> : vector<8x8xf32>
    %17 = tpu.matmul %13, %16, %cst_10 {dimension_numbers = #tpu.dot_dimension_numbers<[1], [0], [0], [1], [0, 0, 1, 1], [], []>} : vector<8x32xf32>, vector<32x8xf32>, vector<8x8xf32> -> vector<8x8xf32>
    %cst_11 = arith.constant 0.176776692 : f32
    %18 = vector.broadcast %cst_11 : f32 to vector<8x8xf32>
    %19 = arith.mulf %17, %18 : vector<8x8xf32>
    %20 = vector.extract_strided_slice %12 {offsets = [0, 0], sizes = [1, 8], strides = [1, 1]} : vector<2x8xf32> to vector<1x8xf32>
    %21 = vector.broadcast %20 : vector<1x8xf32> to vector<8x8xf32>
    %22 = arith.addf %19, %21 : vector<8x8xf32>
    %cst_12 = arith.constant dense<0xFF800000> : vector<8xf32>
    %23 = vector.multi_reduction <maximumf>, %22, %cst_12 [1] : vector<8x8xf32> to vector<8xf32>
    %24 = vector.shape_cast %23 : vector<8xf32> to vector<8x1xf32>
    %25 = vector.broadcast %24 : vector<8x1xf32> to vector<8x8xf32>
    %26 = arith.subf %22, %25 : vector<8x8xf32>
    %27 = math.exp %26 : vector<8x8xf32>
    %cst_13 = arith.constant dense<0.000000e+00> : vector<8xf32>
    %28 = vector.multi_reduction <add>, %27, %cst_13 [1] : vector<8x8xf32> to vector<8xf32>
    %29 = vector.shape_cast %28 : vector<8xf32> to vector<8x1xf32>
    %30 = tpu.reciprocal %29 {approx = true} : vector<8x1xf32> -> vector<8x1xf32>
    %31 = vector.broadcast %30 : vector<8x1xf32> to vector<8x8xf32>
    %32 = arith.mulf %27, %31 : vector<8x8xf32>
    %cst_14 = arith.constant dense<0.000000e+00> : vector<8x32xf32>
    %33 = tpu.matmul %32, %15, %cst_14 {dimension_numbers = #tpu.dot_dimension_numbers<[1], [0], [0], [1], [0, 0, 1, 1], [], []>} : vector<8x8xf32>, vector<8x32xf32>, vector<8x32xf32> -> vector<8x32xf32>
    %34 = vector.extract_strided_slice %11 {offsets = [0, 32], sizes = [8, 32], strides = [1, 1]} : vector<16x384xf32> to vector<8x32xf32>
    %35 = vector.extract_strided_slice %11 {offsets = [0, 160], sizes = [8, 32], strides = [1, 1]} : vector<16x384xf32> to vector<8x32xf32>
    %36 = vector.extract_strided_slice %11 {offsets = [0, 288], sizes = [8, 32], strides = [1, 1]} : vector<16x384xf32> to vector<8x32xf32>
    %37 = tpu.transpose %35, [1, 0] : vector<8x32xf32> -> vector<32x8xf32>
    %cst_15 = arith.constant dense<0.000000e+00> : vector<8x8xf32>
    %38 = tpu.matmul %34, %37, %cst_15 {dimension_numbers = #tpu.dot_dimension_numbers<[1], [0], [0], [1], [0, 0, 1, 1], [], []>} : vector<8x32xf32>, vector<32x8xf32>, vector<8x8xf32> -> vector<8x8xf32>
    %cst_16 = arith.constant 0.176776692 : f32
    %39 = vector.broadcast %cst_16 : f32 to vector<8x8xf32>
    %40 = arith.mulf %38, %39 : vector<8x8xf32>
    %41 = vector.extract_strided_slice %12 {offsets = [0, 0], sizes = [1, 8], strides = [1, 1]} : vector<2x8xf32> to vector<1x8xf32>
    %42 = vector.broadcast %41 : vector<1x8xf32> to vector<8x8xf32>
    %43 = arith.addf %40, %42 : vector<8x8xf32>
    %cst_17 = arith.constant dense<0xFF800000> : vector<8xf32>
    %44 = vector.multi_reduction <maximumf>, %43, %cst_17 [1] : vector<8x8xf32> to vector<8xf32>
    %45 = vector.shape_cast %44 : vector<8xf32> to vector<8x1xf32>
    %46 = vector.broadcast %45 : vector<8x1xf32> to vector<8x8xf32>
    %47 = arith.subf %43, %46 : vector<8x8xf32>
    %48 = math.exp %47 : vector<8x8xf32>
    %cst_18 = arith.constant dense<0.000000e+00> : vector<8xf32>
    %49 = vector.multi_reduction <add>, %48, %cst_18 [1] : vector<8x8xf32> to vector<8xf32>
    %50 = vector.shape_cast %49 : vector<8xf32> to vector<8x1xf32>
    %51 = tpu.reciprocal %50 {approx = true} : vector<8x1xf32> -> vector<8x1xf32>
    %52 = vector.broadcast %51 : vector<8x1xf32> to vector<8x8xf32>
    %53 = arith.mulf %48, %52 : vector<8x8xf32>
    %cst_19 = arith.constant dense<0.000000e+00> : vector<8x32xf32>
    %54 = tpu.matmul %53, %36, %cst_19 {dimension_numbers = #tpu.dot_dimension_numbers<[1], [0], [0], [1], [0, 0, 1, 1], [], []>} : vector<8x8xf32>, vector<8x32xf32>, vector<8x32xf32> -> vector<8x32xf32>
    %55 = vector.extract_strided_slice %11 {offsets = [0, 64], sizes = [8, 32], strides = [1, 1]} : vector<16x384xf32> to vector<8x32xf32>
    %56 = vector.extract_strided_slice %11 {offsets = [0, 192], sizes = [8, 32], strides = [1, 1]} : vector<16x384xf32> to vector<8x32xf32>
    %57 = vector.extract_strided_slice %11 {offsets = [0, 320], sizes = [8, 32], strides = [1, 1]} : vector<16x384xf32> to vector<8x32xf32>
    %58 = tpu.transpose %56, [1, 0] : vector<8x32xf32> -> vector<32x8xf32>
    %cst_20 = arith.constant dense<0.000000e+00> : vector<8x8xf32>
    %59 = tpu.matmul %55, %58, %cst_20 {dimension_numbers = #tpu.dot_dimension_numbers<[1], [0], [0], [1], [0, 0, 1, 1], [], []>} : vector<8x32xf32>, vector<32x8xf32>, vector<8x8xf32> -> vector<8x8xf32>
    %cst_21 = arith.constant 0.176776692 : f32
    %60 = vector.broadcast %cst_21 : f32 to vector<8x8xf32>
    %61 = arith.mulf %59, %60 : vector<8x8xf32>
    %62 = vector.extract_strided_slice %12 {offsets = [0, 0], sizes = [1, 8], strides = [1, 1]} : vector<2x8xf32> to vector<1x8xf32>
    %63 = vector.broadcast %62 : vector<1x8xf32> to vector<8x8xf32>
    %64 = arith.addf %61, %63 : vector<8x8xf32>
    %cst_22 = arith.constant dense<0xFF800000> : vector<8xf32>
    %65 = vector.multi_reduction <maximumf>, %64, %cst_22 [1] : vector<8x8xf32> to vector<8xf32>
    %66 = vector.shape_cast %65 : vector<8xf32> to vector<8x1xf32>
    %67 = vector.broadcast %66 : vector<8x1xf32> to vector<8x8xf32>
    %68 = arith.subf %64, %67 : vector<8x8xf32>
    %69 = math.exp %68 : vector<8x8xf32>
    %cst_23 = arith.constant dense<0.000000e+00> : vector<8xf32>
    %70 = vector.multi_reduction <add>, %69, %cst_23 [1] : vector<8x8xf32> to vector<8xf32>
    %71 = vector.shape_cast %70 : vector<8xf32> to vector<8x1xf32>
    %72 = tpu.reciprocal %71 {approx = true} : vector<8x1xf32> -> vector<8x1xf32>
    %73 = vector.broadcast %72 : vector<8x1xf32> to vector<8x8xf32>
    %74 = arith.mulf %69, %73 : vector<8x8xf32>
    %cst_24 = arith.constant dense<0.000000e+00> : vector<8x32xf32>
    %75 = tpu.matmul %74, %57, %cst_24 {dimension_numbers = #tpu.dot_dimension_numbers<[1], [0], [0], [1], [0, 0, 1, 1], [], []>} : vector<8x8xf32>, vector<8x32xf32>, vector<8x32xf32> -> vector<8x32xf32>
    %76 = vector.extract_strided_slice %11 {offsets = [0, 96], sizes = [8, 32], strides = [1, 1]} : vector<16x384xf32> to vector<8x32xf32>
    %77 = vector.extract_strided_slice %11 {offsets = [0, 224], sizes = [8, 32], strides = [1, 1]} : vector<16x384xf32> to vector<8x32xf32>
    %78 = vector.extract_strided_slice %11 {offsets = [0, 352], sizes = [8, 32], strides = [1, 1]} : vector<16x384xf32> to vector<8x32xf32>
    %79 = tpu.transpose %77, [1, 0] : vector<8x32xf32> -> vector<32x8xf32>
    %cst_25 = arith.constant dense<0.000000e+00> : vector<8x8xf32>
    %80 = tpu.matmul %76, %79, %cst_25 {dimension_numbers = #tpu.dot_dimension_numbers<[1], [0], [0], [1], [0, 0, 1, 1], [], []>} : vector<8x32xf32>, vector<32x8xf32>, vector<8x8xf32> -> vector<8x8xf32>
    %cst_26 = arith.constant 0.176776692 : f32
    %81 = vector.broadcast %cst_26 : f32 to vector<8x8xf32>
    %82 = arith.mulf %80, %81 : vector<8x8xf32>
    %83 = vector.extract_strided_slice %12 {offsets = [0, 0], sizes = [1, 8], strides = [1, 1]} : vector<2x8xf32> to vector<1x8xf32>
    %84 = vector.broadcast %83 : vector<1x8xf32> to vector<8x8xf32>
    %85 = arith.addf %82, %84 : vector<8x8xf32>
    %cst_27 = arith.constant dense<0xFF800000> : vector<8xf32>
    %86 = vector.multi_reduction <maximumf>, %85, %cst_27 [1] : vector<8x8xf32> to vector<8xf32>
    %87 = vector.shape_cast %86 : vector<8xf32> to vector<8x1xf32>
    %88 = vector.broadcast %87 : vector<8x1xf32> to vector<8x8xf32>
    %89 = arith.subf %85, %88 : vector<8x8xf32>
    %90 = math.exp %89 : vector<8x8xf32>
    %cst_28 = arith.constant dense<0.000000e+00> : vector<8xf32>
    %91 = vector.multi_reduction <add>, %90, %cst_28 [1] : vector<8x8xf32> to vector<8xf32>
    %92 = vector.shape_cast %91 : vector<8xf32> to vector<8x1xf32>
    %93 = tpu.reciprocal %92 {approx = true} : vector<8x1xf32> -> vector<8x1xf32>
    %94 = vector.broadcast %93 : vector<8x1xf32> to vector<8x8xf32>
    %95 = arith.mulf %90, %94 : vector<8x8xf32>
    %cst_29 = arith.constant dense<0.000000e+00> : vector<8x32xf32>
    %96 = tpu.matmul %95, %78, %cst_29 {dimension_numbers = #tpu.dot_dimension_numbers<[1], [0], [0], [1], [0, 0, 1, 1], [], []>} : vector<8x8xf32>, vector<8x32xf32>, vector<8x32xf32> -> vector<8x32xf32>
    %97 = tpu.concatenate %33, %54, %75, %96 in 1 : vector<8x32xf32>, vector<8x32xf32>, vector<8x32xf32>, vector<8x32xf32> -> vector<8x128xf32>
    %98 = vector.extract_strided_slice %11 {offsets = [8, 0], sizes = [8, 32], strides = [1, 1]} : vector<16x384xf32> to vector<8x32xf32>
    %99 = vector.extract_strided_slice %11 {offsets = [8, 128], sizes = [8, 32], strides = [1, 1]} : vector<16x384xf32> to vector<8x32xf32>
    %100 = vector.extract_strided_slice %11 {offsets = [8, 256], sizes = [8, 32], strides = [1, 1]} : vector<16x384xf32> to vector<8x32xf32>
    %101 = tpu.transpose %99, [1, 0] : vector<8x32xf32> -> vector<32x8xf32>
    %cst_30 = arith.constant dense<0.000000e+00> : vector<8x8xf32>
    %102 = tpu.matmul %98, %101, %cst_30 {dimension_numbers = #tpu.dot_dimension_numbers<[1], [0], [0], [1], [0, 0, 1, 1], [], []>} : vector<8x32xf32>, vector<32x8xf32>, vector<8x8xf32> -> vector<8x8xf32>
    %cst_31 = arith.constant 0.176776692 : f32
    %103 = vector.broadcast %cst_31 : f32 to vector<8x8xf32>
    %104 = arith.mulf %102, %103 : vector<8x8xf32>
    %105 = vector.extract_strided_slice %12 {offsets = [1, 0], sizes = [1, 8], strides = [1, 1]} : vector<2x8xf32> to vector<1x8xf32>
    %106 = vector.broadcast %105 : vector<1x8xf32> to vector<8x8xf32>
    %107 = arith.addf %104, %106 : vector<8x8xf32>
    %cst_32 = arith.constant dense<0xFF800000> : vector<8xf32>
    %108 = vector.multi_reduction <maximumf>, %107, %cst_32 [1] : vector<8x8xf32> to vector<8xf32>
    %109 = vector.shape_cast %108 : vector<8xf32> to vector<8x1xf32>
    %110 = vector.broadcast %109 : vector<8x1xf32> to vector<8x8xf32>
    %111 = arith.subf %107, %110 : vector<8x8xf32>
    %112 = math.exp %111 : vector<8x8xf32>
    %cst_33 = arith.constant dense<0.000000e+00> : vector<8xf32>
    %113 = vector.multi_reduction <add>, %112, %cst_33 [1] : vector<8x8xf32> to vector<8xf32>
    %114 = vector.shape_cast %113 : vector<8xf32> to vector<8x1xf32>
    %115 = tpu.reciprocal %114 {approx = true} : vector<8x1xf32> -> vector<8x1xf32>
    %116 = vector.broadcast %115 : vector<8x1xf32> to vector<8x8xf32>
    %117 = arith.mulf %112, %116 : vector<8x8xf32>
    %cst_34 = arith.constant dense<0.000000e+00> : vector<8x32xf32>
    %118 = tpu.matmul %117, %100, %cst_34 {dimension_numbers = #tpu.dot_dimension_numbers<[1], [0], [0], [1], [0, 0, 1, 1], [], []>} : vector<8x8xf32>, vector<8x32xf32>, vector<8x32xf32> -> vector<8x32xf32>
    %119 = vector.extract_strided_slice %11 {offsets = [8, 32], sizes = [8, 32], strides = [1, 1]} : vector<16x384xf32> to vector<8x32xf32>
    %120 = vector.extract_strided_slice %11 {offsets = [8, 160], sizes = [8, 32], strides = [1, 1]} : vector<16x384xf32> to vector<8x32xf32>
    %121 = vector.extract_strided_slice %11 {offsets = [8, 288], sizes = [8, 32], strides = [1, 1]} : vector<16x384xf32> to vector<8x32xf32>
    %122 = tpu.transpose %120, [1, 0] : vector<8x32xf32> -> vector<32x8xf32>
    %cst_35 = arith.constant dense<0.000000e+00> : vector<8x8xf32>
    %123 = tpu.matmul %119, %122, %cst_35 {dimension_numbers = #tpu.dot_dimension_numbers<[1], [0], [0], [1], [0, 0, 1, 1], [], []>} : vector<8x32xf32>, vector<32x8xf32>, vector<8x8xf32> -> vector<8x8xf32>
    %cst_36 = arith.constant 0.176776692 : f32
    %124 = vector.broadcast %cst_36 : f32 to vector<8x8xf32>
    %125 = arith.mulf %123, %124 : vector<8x8xf32>
    %126 = vector.extract_strided_slice %12 {offsets = [1, 0], sizes = [1, 8], strides = [1, 1]} : vector<2x8xf32> to vector<1x8xf32>
    %127 = vector.broadcast %126 : vector<1x8xf32> to vector<8x8xf32>
    %128 = arith.addf %125, %127 : vector<8x8xf32>
    %cst_37 = arith.constant dense<0xFF800000> : vector<8xf32>
    %129 = vector.multi_reduction <maximumf>, %128, %cst_37 [1] : vector<8x8xf32> to vector<8xf32>
    %130 = vector.shape_cast %129 : vector<8xf32> to vector<8x1xf32>
    %131 = vector.broadcast %130 : vector<8x1xf32> to vector<8x8xf32>
    %132 = arith.subf %128, %131 : vector<8x8xf32>
    %133 = math.exp %132 : vector<8x8xf32>
    %cst_38 = arith.constant dense<0.000000e+00> : vector<8xf32>
    %134 = vector.multi_reduction <add>, %133, %cst_38 [1] : vector<8x8xf32> to vector<8xf32>
    %135 = vector.shape_cast %134 : vector<8xf32> to vector<8x1xf32>
    %136 = tpu.reciprocal %135 {approx = true} : vector<8x1xf32> -> vector<8x1xf32>
    %137 = vector.broadcast %136 : vector<8x1xf32> to vector<8x8xf32>
    %138 = arith.mulf %133, %137 : vector<8x8xf32>
    %cst_39 = arith.constant dense<0.000000e+00> : vector<8x32xf32>
    %139 = tpu.matmul %138, %121, %cst_39 {dimension_numbers = #tpu.dot_dimension_numbers<[1], [0], [0], [1], [0, 0, 1, 1], [], []>} : vector<8x8xf32>, vector<8x32xf32>, vector<8x32xf32> -> vector<8x32xf32>
    %140 = vector.extract_strided_slice %11 {offsets = [8, 64], sizes = [8, 32], strides = [1, 1]} : vector<16x384xf32> to vector<8x32xf32>
    %141 = vector.extract_strided_slice %11 {offsets = [8, 192], sizes = [8, 32], strides = [1, 1]} : vector<16x384xf32> to vector<8x32xf32>
    %142 = vector.extract_strided_slice %11 {offsets = [8, 320], sizes = [8, 32], strides = [1, 1]} : vector<16x384xf32> to vector<8x32xf32>
    %143 = tpu.transpose %141, [1, 0] : vector<8x32xf32> -> vector<32x8xf32>
    %cst_40 = arith.constant dense<0.000000e+00> : vector<8x8xf32>
    %144 = tpu.matmul %140, %143, %cst_40 {dimension_numbers = #tpu.dot_dimension_numbers<[1], [0], [0], [1], [0, 0, 1, 1], [], []>} : vector<8x32xf32>, vector<32x8xf32>, vector<8x8xf32> -> vector<8x8xf32>
    %cst_41 = arith.constant 0.176776692 : f32
    %145 = vector.broadcast %cst_41 : f32 to vector<8x8xf32>
    %146 = arith.mulf %144, %145 : vector<8x8xf32>
    %147 = vector.extract_strided_slice %12 {offsets = [1, 0], sizes = [1, 8], strides = [1, 1]} : vector<2x8xf32> to vector<1x8xf32>
    %148 = vector.broadcast %147 : vector<1x8xf32> to vector<8x8xf32>
    %149 = arith.addf %146, %148 : vector<8x8xf32>
    %cst_42 = arith.constant dense<0xFF800000> : vector<8xf32>
    %150 = vector.multi_reduction <maximumf>, %149, %cst_42 [1] : vector<8x8xf32> to vector<8xf32>
    %151 = vector.shape_cast %150 : vector<8xf32> to vector<8x1xf32>
    %152 = vector.broadcast %151 : vector<8x1xf32> to vector<8x8xf32>
    %153 = arith.subf %149, %152 : vector<8x8xf32>
    %154 = math.exp %153 : vector<8x8xf32>
    %cst_43 = arith.constant dense<0.000000e+00> : vector<8xf32>
    %155 = vector.multi_reduction <add>, %154, %cst_43 [1] : vector<8x8xf32> to vector<8xf32>
    %156 = vector.shape_cast %155 : vector<8xf32> to vector<8x1xf32>
    %157 = tpu.reciprocal %156 {approx = true} : vector<8x1xf32> -> vector<8x1xf32>
    %158 = vector.broadcast %157 : vector<8x1xf32> to vector<8x8xf32>
    %159 = arith.mulf %154, %158 : vector<8x8xf32>
    %cst_44 = arith.constant dense<0.000000e+00> : vector<8x32xf32>
    %160 = tpu.matmul %159, %142, %cst_44 {dimension_numbers = #tpu.dot_dimension_numbers<[1], [0], [0], [1], [0, 0, 1, 1], [], []>} : vector<8x8xf32>, vector<8x32xf32>, vector<8x32xf32> -> vector<8x32xf32>
    %161 = vector.extract_strided_slice %11 {offsets = [8, 96], sizes = [8, 32], strides = [1, 1]} : vector<16x384xf32> to vector<8x32xf32>
    %162 = vector.extract_strided_slice %11 {offsets = [8, 224], sizes = [8, 32], strides = [1, 1]} : vector<16x384xf32> to vector<8x32xf32>
    %163 = vector.extract_strided_slice %11 {offsets = [8, 352], sizes = [8, 32], strides = [1, 1]} : vector<16x384xf32> to vector<8x32xf32>
    %164 = tpu.transpose %162, [1, 0] : vector<8x32xf32> -> vector<32x8xf32>
    %cst_45 = arith.constant dense<0.000000e+00> : vector<8x8xf32>
    %165 = tpu.matmul %161, %164, %cst_45 {dimension_numbers = #tpu.dot_dimension_numbers<[1], [0], [0], [1], [0, 0, 1, 1], [], []>} : vector<8x32xf32>, vector<32x8xf32>, vector<8x8xf32> -> vector<8x8xf32>
    %cst_46 = arith.constant 0.176776692 : f32
    %166 = vector.broadcast %cst_46 : f32 to vector<8x8xf32>
    %167 = arith.mulf %165, %166 : vector<8x8xf32>
    %168 = vector.extract_strided_slice %12 {offsets = [1, 0], sizes = [1, 8], strides = [1, 1]} : vector<2x8xf32> to vector<1x8xf32>
    %169 = vector.broadcast %168 : vector<1x8xf32> to vector<8x8xf32>
    %170 = arith.addf %167, %169 : vector<8x8xf32>
    %cst_47 = arith.constant dense<0xFF800000> : vector<8xf32>
    %171 = vector.multi_reduction <maximumf>, %170, %cst_47 [1] : vector<8x8xf32> to vector<8xf32>
    %172 = vector.shape_cast %171 : vector<8xf32> to vector<8x1xf32>
    %173 = vector.broadcast %172 : vector<8x1xf32> to vector<8x8xf32>
    %174 = arith.subf %170, %173 : vector<8x8xf32>
    %175 = math.exp %174 : vector<8x8xf32>
    %cst_48 = arith.constant dense<0.000000e+00> : vector<8xf32>
    %176 = vector.multi_reduction <add>, %175, %cst_48 [1] : vector<8x8xf32> to vector<8xf32>
    %177 = vector.shape_cast %176 : vector<8xf32> to vector<8x1xf32>
    %178 = tpu.reciprocal %177 {approx = true} : vector<8x1xf32> -> vector<8x1xf32>
    %179 = vector.broadcast %178 : vector<8x1xf32> to vector<8x8xf32>
    %180 = arith.mulf %175, %179 : vector<8x8xf32>
    %cst_49 = arith.constant dense<0.000000e+00> : vector<8x32xf32>
    %181 = tpu.matmul %180, %163, %cst_49 {dimension_numbers = #tpu.dot_dimension_numbers<[1], [0], [0], [1], [0, 0, 1, 1], [], []>} : vector<8x8xf32>, vector<8x32xf32>, vector<8x32xf32> -> vector<8x32xf32>
    %182 = tpu.concatenate %118, %139, %160, %181 in 1 : vector<8x32xf32>, vector<8x32xf32>, vector<8x32xf32>, vector<8x32xf32> -> vector<8x128xf32>
    %183 = tpu.concatenate %97, %182 in 0 : vector<8x128xf32>, vector<8x128xf32> -> vector<16x128xf32>
    %184 = arith.truncf %183 : vector<16x128xf32> to vector<16x128xbf16>
    %c0_50 = arith.constant 0 : index
    %c0_51 = arith.constant 0 : index
    %c0_52 = arith.constant 0 : index
    %185 = vector.load %arg7[%c0_50, %c0_51, %c0_52] : memref<1x128x128xbf16, #tpu.memory_space<vmem>>, vector<1x128x128xbf16>
    %186 = vector.shape_cast %185 : vector<1x128x128xbf16> to vector<128x128xbf16>
    %cst_53 = arith.constant dense<0.000000e+00> : vector<16x128xf32>
    %187 = tpu.matmul %184, %186, %cst_53 {dimension_numbers = #tpu.dot_dimension_numbers<[1], [0], [0], [1], [0, 0, 1, 1], [], []>} : vector<16x128xbf16>, vector<128x128xbf16>, vector<16x128xf32> -> vector<16x128xf32>
    %c0_54 = arith.constant 0 : index
    %c0_55 = arith.constant 0 : index
    %c0_56 = arith.constant 0 : index
    %188 = vector.load %arg8[%c0_54, %c0_55, %c0_56] : memref<1x1x128xf32, #tpu.memory_space<vmem>>, vector<1x1x128xf32>
    %189 = vector.shape_cast %188 : vector<1x1x128xf32> to vector<1x128xf32>
    %190 = vector.broadcast %189 : vector<1x128xf32> to vector<16x128xf32>
    %191 = arith.addf %187, %190 : vector<16x128xf32>
    %192 = arith.addf %191, %3 : vector<16x128xf32>
    %c0_57 = arith.constant 0 : index
    %c0_58 = arith.constant 0 : index
    %c0_59 = arith.constant 0 : index
    %193 = vector.load %arg9[%c0_57, %c0_58, %c0_59] : memref<1x1x128xf32, #tpu.memory_space<vmem>>, vector<1x1x128xf32>
    %194 = vector.shape_cast %193 : vector<1x1x128xf32> to vector<1x128xf32>
    %c0_60 = arith.constant 0 : index
    %c0_61 = arith.constant 0 : index
    %c0_62 = arith.constant 0 : index
    %195 = vector.load %arg10[%c0_60, %c0_61, %c0_62] : memref<1x1x128xf32, #tpu.memory_space<vmem>>, vector<1x1x128xf32>
    %196 = vector.shape_cast %195 : vector<1x1x128xf32> to vector<1x128xf32>
    %cst_63 = arith.constant dense<0.000000e+00> : vector<16xf32>
    %197 = vector.multi_reduction <add>, %192, %cst_63 [1] : vector<16x128xf32> to vector<16xf32>
    %198 = vector.shape_cast %197 : vector<16xf32> to vector<16x1xf32>
    %cst_64 = arith.constant 1.280000e+02 : f32
    %199 = vector.broadcast %cst_64 : f32 to vector<16x1xf32>
    %200 = arith.divf %198, %199 : vector<16x1xf32>
    %201 = vector.broadcast %200 : vector<16x1xf32> to vector<16x128xf32>
    %202 = arith.subf %192, %201 : vector<16x128xf32>
    %203 = arith.mulf %202, %202 : vector<16x128xf32>
    %cst_65 = arith.constant dense<0.000000e+00> : vector<16xf32>
    %204 = vector.multi_reduction <add>, %203, %cst_65 [1] : vector<16x128xf32> to vector<16xf32>
    %205 = vector.shape_cast %204 : vector<16xf32> to vector<16x1xf32>
    %cst_66 = arith.constant 1.280000e+02 : f32
    %206 = vector.broadcast %cst_66 : f32 to vector<16x1xf32>
    %207 = arith.divf %205, %206 : vector<16x1xf32>
    %208 = vector.broadcast %200 : vector<16x1xf32> to vector<16x128xf32>
    %209 = arith.subf %192, %208 : vector<16x128xf32>
    %cst_67 = arith.constant 9.99999974E-6 : f32
    %210 = vector.broadcast %cst_67 : f32 to vector<16x1xf32>
    %211 = arith.addf %207, %210 : vector<16x1xf32>
    %212 = math.rsqrt %211 : vector<16x1xf32>
    %213 = vector.broadcast %212 : vector<16x1xf32> to vector<16x128xf32>
    %214 = arith.mulf %209, %213 : vector<16x128xf32>
    %215 = vector.broadcast %194 : vector<1x128xf32> to vector<16x128xf32>
    %216 = arith.mulf %214, %215 : vector<16x128xf32>
    %217 = vector.broadcast %196 : vector<1x128xf32> to vector<16x128xf32>
    %218 = arith.addf %216, %217 : vector<16x128xf32>
    %219 = arith.truncf %218 : vector<16x128xf32> to vector<16x128xbf16>
    %c0_68 = arith.constant 0 : index
    %c0_69 = arith.constant 0 : index
    %c0_70 = arith.constant 0 : index
    %220 = vector.load %arg11[%c0_68, %c0_69, %c0_70] : memref<1x128x256xbf16, #tpu.memory_space<vmem>>, vector<1x128x256xbf16>
    %221 = vector.shape_cast %220 : vector<1x128x256xbf16> to vector<128x256xbf16>
    %cst_71 = arith.constant dense<0.000000e+00> : vector<16x256xf32>
    %222 = tpu.matmul %219, %221, %cst_71 {dimension_numbers = #tpu.dot_dimension_numbers<[1], [0], [0], [1], [0, 0, 1, 1], [], []>} : vector<16x128xbf16>, vector<128x256xbf16>, vector<16x256xf32> -> vector<16x256xf32>
    %c0_72 = arith.constant 0 : index
    %c0_73 = arith.constant 0 : index
    %c0_74 = arith.constant 0 : index
    %223 = vector.load %arg12[%c0_72, %c0_73, %c0_74] : memref<1x1x256xf32, #tpu.memory_space<vmem>>, vector<1x1x256xf32>
    %224 = vector.shape_cast %223 : vector<1x1x256xf32> to vector<1x256xf32>
    %225 = vector.broadcast %224 : vector<1x256xf32> to vector<16x256xf32>
    %226 = arith.addf %222, %225 : vector<16x256xf32>
    %cst_75 = arith.constant 5.000000e-01 : f32
    %227 = vector.broadcast %cst_75 : f32 to vector<16x256xf32>
    %228 = arith.mulf %227, %226 : vector<16x256xf32>
    %cst_76 = arith.constant 4.471500e-02 : f32
    %229 = vector.broadcast %cst_76 : f32 to vector<16x256xf32>
    %230 = arith.mulf %229, %226 : vector<16x256xf32>
    %231 = arith.mulf %230, %226 : vector<16x256xf32>
    %232 = arith.mulf %231, %226 : vector<16x256xf32>
    %233 = arith.addf %226, %232 : vector<16x256xf32>
    %cst_77 = arith.constant 0.797884583 : f32
    %234 = vector.broadcast %cst_77 : f32 to vector<16x256xf32>
    %235 = arith.mulf %234, %233 : vector<16x256xf32>
    %236 = math.tanh %235 : vector<16x256xf32>
    %cst_78 = arith.constant 1.000000e+00 : f32
    %237 = vector.broadcast %cst_78 : f32 to vector<16x256xf32>
    %238 = arith.addf %237, %236 : vector<16x256xf32>
    %239 = arith.mulf %228, %238 : vector<16x256xf32>
    %240 = arith.truncf %239 : vector<16x256xf32> to vector<16x256xbf16>
    %c0_79 = arith.constant 0 : index
    %c0_80 = arith.constant 0 : index
    %c0_81 = arith.constant 0 : index
    %241 = vector.load %arg13[%c0_79, %c0_80, %c0_81] : memref<1x256x128xbf16, #tpu.memory_space<vmem>>, vector<1x256x128xbf16>
    %242 = vector.shape_cast %241 : vector<1x256x128xbf16> to vector<256x128xbf16>
    %cst_82 = arith.constant dense<0.000000e+00> : vector<16x128xf32>
    %243 = tpu.matmul %240, %242, %cst_82 {dimension_numbers = #tpu.dot_dimension_numbers<[1], [0], [0], [1], [0, 0, 1, 1], [], []>} : vector<16x256xbf16>, vector<256x128xbf16>, vector<16x128xf32> -> vector<16x128xf32>
    %c0_83 = arith.constant 0 : index
    %c0_84 = arith.constant 0 : index
    %c0_85 = arith.constant 0 : index
    %244 = vector.load %arg14[%c0_83, %c0_84, %c0_85] : memref<1x1x128xf32, #tpu.memory_space<vmem>>, vector<1x1x128xf32>
    %245 = vector.shape_cast %244 : vector<1x1x128xf32> to vector<1x128xf32>
    %246 = vector.broadcast %245 : vector<1x128xf32> to vector<16x128xf32>
    %247 = arith.addf %243, %246 : vector<16x128xf32>
    %248 = arith.addf %247, %218 : vector<16x128xf32>
    %c0_86 = arith.constant 0 : index
    %c0_87 = arith.constant 0 : index
    %c0_88 = arith.constant 0 : index
    %249 = vector.load %arg15[%c0_86, %c0_87, %c0_88] : memref<1x1x128xf32, #tpu.memory_space<vmem>>, vector<1x1x128xf32>
    %250 = vector.shape_cast %249 : vector<1x1x128xf32> to vector<1x128xf32>
    %c0_89 = arith.constant 0 : index
    %c0_90 = arith.constant 0 : index
    %c0_91 = arith.constant 0 : index
    %251 = vector.load %arg16[%c0_89, %c0_90, %c0_91] : memref<1x1x128xf32, #tpu.memory_space<vmem>>, vector<1x1x128xf32>
    %252 = vector.shape_cast %251 : vector<1x1x128xf32> to vector<1x128xf32>
    %cst_92 = arith.constant dense<0.000000e+00> : vector<16xf32>
    %253 = vector.multi_reduction <add>, %248, %cst_92 [1] : vector<16x128xf32> to vector<16xf32>
    %254 = vector.shape_cast %253 : vector<16xf32> to vector<16x1xf32>
    %cst_93 = arith.constant 1.280000e+02 : f32
    %255 = vector.broadcast %cst_93 : f32 to vector<16x1xf32>
    %256 = arith.divf %254, %255 : vector<16x1xf32>
    %257 = vector.broadcast %256 : vector<16x1xf32> to vector<16x128xf32>
    %258 = arith.subf %248, %257 : vector<16x128xf32>
    %259 = arith.mulf %258, %258 : vector<16x128xf32>
    %cst_94 = arith.constant dense<0.000000e+00> : vector<16xf32>
    %260 = vector.multi_reduction <add>, %259, %cst_94 [1] : vector<16x128xf32> to vector<16xf32>
    %261 = vector.shape_cast %260 : vector<16xf32> to vector<16x1xf32>
    %cst_95 = arith.constant 1.280000e+02 : f32
    %262 = vector.broadcast %cst_95 : f32 to vector<16x1xf32>
    %263 = arith.divf %261, %262 : vector<16x1xf32>
    %264 = vector.broadcast %256 : vector<16x1xf32> to vector<16x128xf32>
    %265 = arith.subf %248, %264 : vector<16x128xf32>
    %cst_96 = arith.constant 9.99999974E-6 : f32
    %266 = vector.broadcast %cst_96 : f32 to vector<16x1xf32>
    %267 = arith.addf %263, %266 : vector<16x1xf32>
    %268 = math.rsqrt %267 : vector<16x1xf32>
    %269 = vector.broadcast %268 : vector<16x1xf32> to vector<16x128xf32>
    %270 = arith.mulf %265, %269 : vector<16x128xf32>
    %271 = vector.broadcast %250 : vector<1x128xf32> to vector<16x128xf32>
    %272 = arith.mulf %270, %271 : vector<16x128xf32>
    %273 = vector.broadcast %252 : vector<1x128xf32> to vector<16x128xf32>
    %274 = arith.addf %272, %273 : vector<16x128xf32>
    %c0_97 = arith.constant 0 : index
    %c0_98 = arith.constant 0 : index
    %275 = vector.load %arg19[%c0_97, %c0_98] : memref<16x128xf32, #tpu.memory_space<vmem>>, vector<16x128xf32>
    tpu.vector_store %arg19[%c0_97, %c0_98], %274 {strides = array<i32>} : memref<16x128xf32, #tpu.memory_space<vmem>>, vector<16x128xf32>,
    %c10_i32 = arith.constant 10 : i32
    %276 = arith.cmpi eq, %arg0, %c10_i32 : i32
    %277 = arith.extui %276 : i1 to i32
    %c0_i32_99 = arith.constant 0 : i32
    %278 = arith.cmpi ne, %277, %c0_i32_99 : i32
    scf.if %278 {
      %c0_101 = arith.constant 0 : index
      %c0_102 = arith.constant 0 : index
      %282 = vector.load %arg17[%c0_101, %c0_102] : memref<16x128xf32, #tpu.memory_space<vmem>>, vector<16x128xf32>
      tpu.vector_store %arg17[%c0_101, %c0_102], %274 {strides = array<i32>} : memref<16x128xf32, #tpu.memory_space<vmem>>, vector<16x128xf32>,
    } else {
    }
    %c11_i32 = arith.constant 11 : i32
    %279 = arith.cmpi eq, %arg0, %c11_i32 : i32
    %280 = arith.extui %279 : i1 to i32
    %c0_i32_100 = arith.constant 0 : i32
    %281 = arith.cmpi ne, %280, %c0_i32_100 : i32
    scf.if %281 {
      %c0_101 = arith.constant 0 : index
      %c0_102 = arith.constant 0 : index
      %282 = vector.load %arg18[%c0_101, %c0_102] : memref<16x128xf32, #tpu.memory_space<vmem>>, vector<16x128xf32>
      tpu.vector_store %arg18[%c0_101, %c0_102], %274 {strides = array<i32>} : memref<16x128xf32, #tpu.memory_space<vmem>>, vector<16x128xf32>,
    } else {
    }
    return
  }
  func.func @transform_0(%arg0: i32) -> (i32, i32) {
    %c0_i32 = arith.constant 0 : i32
    %c0_i32_0 = arith.constant 0 : i32
    %c0_i32_1 = arith.constant 0 : i32
    return %c0_i32, %c0_i32_0 : i32, i32
  }
  func.func @transform_1(%arg0: i32) -> (i32, i32) {
    %c0_i32 = arith.constant 0 : i32
    %c0_i32_0 = arith.constant 0 : i32
    %c0_i32_1 = arith.constant 0 : i32
    return %c0_i32, %c0_i32_0 : i32, i32
  }
  func.func @transform_2(%arg0: i32) -> (i32, i32) {
    %c0_i32 = arith.constant 0 : i32
    %c0_i32_0 = arith.constant 0 : i32
    %c0_i32_1 = arith.constant 0 : i32
    return %c0_i32, %c0_i32_0 : i32, i32
  }
  func.func @transform_3(%arg0: i32) -> (i32, i32) {
    %c0_i32 = arith.constant 0 : i32
    %c0_i32_0 = arith.constant 0 : i32
    %c0_i32_1 = arith.constant 0 : i32
    return %c0_i32, %c0_i32_0 : i32, i32
  }
  func.func @transform_4(%arg0: i32) -> (i32, i32, i32) {
    %c0_i32 = arith.constant 0 : i32
    %c0_i32_0 = arith.constant 0 : i32
    %c0_i32_1 = arith.constant 0 : i32
    return %arg0, %c0_i32, %c0_i32_0 : i32, i32, i32
  }
  func.func @transform_5(%arg0: i32) -> (i32, i32, i32) {
    %c0_i32 = arith.constant 0 : i32
    %c0_i32_0 = arith.constant 0 : i32
    %c0_i32_1 = arith.constant 0 : i32
    return %arg0, %c0_i32, %c0_i32_0 : i32, i32, i32
  }
  func.func @transform_6(%arg0: i32) -> (i32, i32, i32) {
    %c0_i32 = arith.constant 0 : i32
    %c0_i32_0 = arith.constant 0 : i32
    %c0_i32_1 = arith.constant 0 : i32
    return %arg0, %c0_i32, %c0_i32_0 : i32, i32, i32
  }
  func.func @transform_7(%arg0: i32) -> (i32, i32, i32) {
    %c0_i32 = arith.constant 0 : i32
    %c0_i32_0 = arith.constant 0 : i32
    %c0_i32_1 = arith.constant 0 : i32
    return %arg0, %c0_i32, %c0_i32_0 : i32, i32, i32
  }
  func.func @transform_8(%arg0: i32) -> (i32, i32, i32) {
    %c0_i32 = arith.constant 0 : i32
    %c0_i32_0 = arith.constant 0 : i32
    %c0_i32_1 = arith.constant 0 : i32
    return %arg0, %c0_i32, %c0_i32_0 : i32, i32, i32
  }
  func.func @transform_9(%arg0: i32) -> (i32, i32, i32) {
    %c0_i32 = arith.constant 0 : i32
    %c0_i32_0 = arith.constant 0 : i32
    %c0_i32_1 = arith.constant 0 : i32
    return %arg0, %c0_i32, %c0_i32_0 : i32, i32, i32
  }
  func.func @transform_10(%arg0: i32) -> (i32, i32, i32) {
    %c0_i32 = arith.constant 0 : i32
    %c0_i32_0 = arith.constant 0 : i32
    %c0_i32_1 = arith.constant 0 : i32
    return %arg0, %c0_i32, %c0_i32_0 : i32, i32, i32
  }
  func.func @transform_11(%arg0: i32) -> (i32, i32, i32) {
    %c0_i32 = arith.constant 0 : i32
    %c0_i32_0 = arith.constant 0 : i32
    %c0_i32_1 = arith.constant 0 : i32
    return %arg0, %c0_i32, %c0_i32_0 : i32, i32, i32
  }
  func.func @transform_12(%arg0: i32) -> (i32, i32, i32) {
    %c0_i32 = arith.constant 0 : i32
    %c0_i32_0 = arith.constant 0 : i32
    %c0_i32_1 = arith.constant 0 : i32
    return %arg0, %c0_i32, %c0_i32_0 : i32, i32, i32
  }
  func.func @transform_13(%arg0: i32) -> (i32, i32, i32) {
    %c0_i32 = arith.constant 0 : i32
    %c0_i32_0 = arith.constant 0 : i32
    %c0_i32_1 = arith.constant 0 : i32
    return %arg0, %c0_i32, %c0_i32_0 : i32, i32, i32
  }
  func.func @transform_14(%arg0: i32) -> (i32, i32, i32) {
    %c0_i32 = arith.constant 0 : i32
    %c0_i32_0 = arith.constant 0 : i32
    %c0_i32_1 = arith.constant 0 : i32
    return %arg0, %c0_i32, %c0_i32_0 : i32, i32, i32
  }
  func.func @transform_15(%arg0: i32) -> (i32, i32, i32) {
    %c0_i32 = arith.constant 0 : i32
    %c0_i32_0 = arith.constant 0 : i32
    %c0_i32_1 = arith.constant 0 : i32
    return %arg0, %c0_i32, %c0_i32_0 : i32, i32, i32
  }
  func.func @transform_16(%arg0: i32) -> (i32, i32) {
    %c0_i32 = arith.constant 0 : i32
    %c0_i32_0 = arith.constant 0 : i32
    %c0_i32_1 = arith.constant 0 : i32
    return %c0_i32, %c0_i32_0 : i32, i32
  }
  func.func @transform_17(%arg0: i32) -> (i32, i32) {
    %c0_i32 = arith.constant 0 : i32
    %c0_i32_0 = arith.constant 0 : i32
    %c0_i32_1 = arith.constant 0 : i32
    return %c0_i32, %c0_i32_0 : i32, i32
  }
}

module attributes {stable_mosaic.version = 11 : i64} {
  func.func @_head_kernel(%arg0: i32, %arg1: memref<2x128xf32, #tpu.memory_space<vmem>>, %arg2: memref<2x128xf32, #tpu.memory_space<vmem>>, %arg3: memref<128x128xbf16, #tpu.memory_space<vmem>>, %arg4: memref<1x128xf32, #tpu.memory_space<vmem>>, %arg5: memref<128x128xbf16, #tpu.memory_space<vmem>>, %arg6: memref<1x128xf32, #tpu.memory_space<vmem>>, %arg7: memref<2x128xf32, #tpu.memory_space<vmem>>) attributes {dimension_semantics = [#tpu.dimension_semantics<arbitrary>], iteration_bounds = array<i64: 1>, scalar_prefetch = 0 : i64, scratch_operands = 0 : i64, tpu.core_type = #tpu.core_type<tc>, window_params = [{pipeline_mode = #tpu.pipeline_mode<synchronous>, transform_indices = @transform_0, window_bounds = array<i64: 2, 128>}, {pipeline_mode = #tpu.pipeline_mode<synchronous>, transform_indices = @transform_1, window_bounds = array<i64: 2, 128>}, {pipeline_mode = #tpu.pipeline_mode<synchronous>, transform_indices = @transform_2, window_bounds = array<i64: 128, 128>}, {pipeline_mode = #tpu.pipeline_mode<synchronous>, transform_indices = @transform_3, window_bounds = array<i64: 1, 128>}, {pipeline_mode = #tpu.pipeline_mode<synchronous>, transform_indices = @transform_4, window_bounds = array<i64: 128, 128>}, {pipeline_mode = #tpu.pipeline_mode<synchronous>, transform_indices = @transform_5, window_bounds = array<i64: 1, 128>}, {pipeline_mode = #tpu.pipeline_mode<synchronous>, transform_indices = @transform_6, window_bounds = array<i64: 2, 128>}]} {
    %c0 = arith.constant 0 : index
    %c0_0 = arith.constant 0 : index
    %0 = vector.load %arg3[%c0, %c0_0] : memref<128x128xbf16, #tpu.memory_space<vmem>>, vector<128x128xbf16>
    %c0_1 = arith.constant 0 : index
    %c0_2 = arith.constant 0 : index
    %1 = vector.load %arg4[%c0_1, %c0_2] : memref<1x128xf32, #tpu.memory_space<vmem>>, vector<1x128xf32>
    %c0_3 = arith.constant 0 : index
    %c0_4 = arith.constant 0 : index
    %2 = vector.load %arg1[%c0_3, %c0_4] : memref<2x128xf32, #tpu.memory_space<vmem>>, vector<2x128xf32>
    %3 = arith.truncf %2 : vector<2x128xf32> to vector<2x128xbf16>
    %cst = arith.constant dense<0.000000e+00> : vector<2x128xf32>
    %4 = tpu.matmul %3, %0, %cst {dimension_numbers = #tpu.dot_dimension_numbers<[1], [0], [0], [1], [0, 0, 1, 1], [], []>} : vector<2x128xbf16>, vector<128x128xbf16>, vector<2x128xf32> -> vector<2x128xf32>
    %5 = vector.broadcast %1 : vector<1x128xf32> to vector<2x128xf32>
    %6 = arith.addf %4, %5 : vector<2x128xf32>
    %7 = math.tanh %6 : vector<2x128xf32>
    %c0_5 = arith.constant 0 : index
    %c0_6 = arith.constant 0 : index
    %8 = vector.load %arg2[%c0_5, %c0_6] : memref<2x128xf32, #tpu.memory_space<vmem>>, vector<2x128xf32>
    %9 = arith.truncf %8 : vector<2x128xf32> to vector<2x128xbf16>
    %cst_7 = arith.constant dense<0.000000e+00> : vector<2x128xf32>
    %10 = tpu.matmul %9, %0, %cst_7 {dimension_numbers = #tpu.dot_dimension_numbers<[1], [0], [0], [1], [0, 0, 1, 1], [], []>} : vector<2x128xbf16>, vector<128x128xbf16>, vector<2x128xf32> -> vector<2x128xf32>
    %11 = vector.broadcast %1 : vector<1x128xf32> to vector<2x128xf32>
    %12 = arith.addf %10, %11 : vector<2x128xf32>
    %13 = math.tanh %12 : vector<2x128xf32>
    %14 = arith.addf %7, %13 : vector<2x128xf32>
    %cst_8 = arith.constant 5.000000e-01 : f32
    %15 = vector.broadcast %cst_8 : f32 to vector<2x128xf32>
    %16 = arith.mulf %14, %15 : vector<2x128xf32>
    %17 = arith.truncf %16 : vector<2x128xf32> to vector<2x128xbf16>
    %c0_9 = arith.constant 0 : index
    %c0_10 = arith.constant 0 : index
    %18 = vector.load %arg5[%c0_9, %c0_10] : memref<128x128xbf16, #tpu.memory_space<vmem>>, vector<128x128xbf16>
    %cst_11 = arith.constant dense<0.000000e+00> : vector<2x128xf32>
    %19 = tpu.matmul %17, %18, %cst_11 {dimension_numbers = #tpu.dot_dimension_numbers<[1], [0], [0], [1], [0, 0, 1, 1], [], []>} : vector<2x128xbf16>, vector<128x128xbf16>, vector<2x128xf32> -> vector<2x128xf32>
    %c0_12 = arith.constant 0 : index
    %c0_13 = arith.constant 0 : index
    %20 = vector.load %arg6[%c0_12, %c0_13] : memref<1x128xf32, #tpu.memory_space<vmem>>, vector<1x128xf32>
    %21 = vector.broadcast %20 : vector<1x128xf32> to vector<2x128xf32>
    %22 = arith.addf %19, %21 : vector<2x128xf32>
    %c0_14 = arith.constant 0 : index
    %c0_15 = arith.constant 0 : index
    %23 = vector.load %arg7[%c0_14, %c0_15] : memref<2x128xf32, #tpu.memory_space<vmem>>, vector<2x128xf32>
    tpu.vector_store %arg7[%c0_14, %c0_15], %22 {strides = array<i32>} : memref<2x128xf32, #tpu.memory_space<vmem>>, vector<2x128xf32>,
    return
  }
  func.func @transform_0(%arg0: i32) -> (i32, i32) {
    %c0_i32 = arith.constant 0 : i32
    %c0_i32_0 = arith.constant 0 : i32
    %c0_i32_1 = arith.constant 0 : i32
    return %c0_i32, %c0_i32_0 : i32, i32
  }
  func.func @transform_1(%arg0: i32) -> (i32, i32) {
    %c0_i32 = arith.constant 0 : i32
    %c0_i32_0 = arith.constant 0 : i32
    %c0_i32_1 = arith.constant 0 : i32
    return %c0_i32, %c0_i32_0 : i32, i32
  }
  func.func @transform_2(%arg0: i32) -> (i32, i32) {
    %c0_i32 = arith.constant 0 : i32
    %c0_i32_0 = arith.constant 0 : i32
    %c0_i32_1 = arith.constant 0 : i32
    return %c0_i32, %c0_i32_0 : i32, i32
  }
  func.func @transform_3(%arg0: i32) -> (i32, i32) {
    %c0_i32 = arith.constant 0 : i32
    %c0_i32_0 = arith.constant 0 : i32
    %c0_i32_1 = arith.constant 0 : i32
    return %c0_i32, %c0_i32_0 : i32, i32
  }
  func.func @transform_4(%arg0: i32) -> (i32, i32) {
    %c0_i32 = arith.constant 0 : i32
    %c0_i32_0 = arith.constant 0 : i32
    %c0_i32_1 = arith.constant 0 : i32
    return %c0_i32, %c0_i32_0 : i32, i32
  }
  func.func @transform_5(%arg0: i32) -> (i32, i32) {
    %c0_i32 = arith.constant 0 : i32
    %c0_i32_0 = arith.constant 0 : i32
    %c0_i32_1 = arith.constant 0 : i32
    return %c0_i32, %c0_i32_0 : i32, i32
  }
  func.func @transform_6(%arg0: i32) -> (i32, i32) {
    %c0_i32 = arith.constant 0 : i32
    %c0_i32_0 = arith.constant 0 : i32
    %c0_i32_1 = arith.constant 0 : i32
    return %c0_i32, %c0_i32_0 : i32, i32
  }
}

</mosaic_0001>

<llo_original>
// kernel: forward.3
$region0: #{forward.3}
  #allocation0 [shape = 'u32[]', space=smem, size = 0x4, offset = 0x4, fixed_abs, tag = 'smem constant byte address 0x4 - core index']
  #allocation1 [shape = 'u32[72,128]{1,0:T(1,128)}', space=vmem, size = 0x9000, scoped, tag = 'internal scratch']
  %s0 = inlined_call_operand.vmem [shape: f32[2,128], index: 0, kind: input, shape index: {}]
  %s1 = inlined_call_operand.vmem [shape: f32[2,128], index: 1, kind: input, shape index: {}]
  %s2 = inlined_call_operand.hbm [shape: bf16[128,128], index: 2, kind: input, shape index: {}]
  %s3 = inlined_call_operand.hbm [shape: f32[1,128], index: 3, kind: input, shape index: {}]
  %s4 = inlined_call_operand.hbm [shape: bf16[128,128], index: 4, kind: input, shape index: {}]
  %s5 = inlined_call_operand.hbm [shape: f32[1,128], index: 5, kind: input, shape index: {}]
  %s6 = inlined_call_operand.hbm [shape: f32[2,128], index: 6, kind: output, shape index: {}]
  %s7 = sld [smem:[#allocation0]]
  $region50: #{forward.3} parent=0
    _
  %s9 = ssub.s32 1, %s7
  %s10 = scalar_select 0, %s9, %s7
  $region1: #{forward.3} parent=0
    #allocation2 [shape = 'u8[32768]{0}', space=vmem, size = 0x8000, scoped, tag = 'input window, operand 2, single buffered']
    #allocation3 [shape = 's32[1]{0}', space=sflag, size = 0x4, scoped, tag = 'scoped memory for forward.3']
    #allocation4 [shape = 's32[1]{0}', space=sflag, size = 0x4, scoped, tag = 'scoped memory for forward.3']
    #allocation5 [shape = 'u8[512]{0}', space=vmem, size = 0x400, scoped, tag = 'input window, operand 3, single buffered']
    #allocation6 [shape = 's32[1]{0}', space=sflag, size = 0x4, scoped, tag = 'scoped memory for forward.3']
    #allocation7 [shape = 'u8[32768]{0}', space=vmem, size = 0x8000, scoped, tag = 'input window, operand 4, single buffered']
    #allocation8 [shape = 'u8[512]{0}', space=vmem, size = 0x400, scoped, tag = 'input window, operand 5, single buffered']
    #allocation9 [shape = 's32[1]{0}', space=sflag, size = 0x4, scoped, tag = 'scoped memory for forward.3']
    #allocation10 [shape = 'u8[1024]{0}', space=vmem, size = 0x400, scoped, tag = 'output window, operand 0, single buffered']
    %11 = vsyncpa [#allocation3], 0
    %12 = vsyncpa [#allocation6], 0
    %13 = vsyncpa [#allocation9], 0
    %14 = vsyncpa [#allocation4], 0
    // Predicated region
    $region2: #{forward.3} parent=1 // pred_check
      _
    $region3: #{forward.3} parent=1 // pred_check_branch
      %16 = sbr.rel (0) target = $region5
    $region4: #{forward.3} parent=1 // pred_region
      _
    $region5: #{forward.3} parent=1 // pred_fallthru
      _
    // Predicated region
    $region6: #{forward.3} parent=1 // pred_check
      _
    $region7: #{forward.3} parent=1 // pred_check_branch
      %18 = sbr.rel (0) target = $region9
    $region8: #{forward.3} parent=1 // pred_region
      _
    $region9: #{forward.3} parent=1 // pred_fallthru
      _
    // Predicated region
    $region10: #{forward.3} parent=1 // pred_check
      _
    $region11: #{forward.3} parent=1 // pred_check_branch
      %20 = sbr.rel (0) target = $region13
    $region12: #{forward.3} parent=1 // pred_region
      %22 = vsyncadd [#allocation3], 0
      %s23 = sshll.u32 %s2, 4
      %s24 = int_to_ptr.hbm [resolvable:$true] %s23
      %s25 = sshll.u32 [#allocation2], 4
      %s26 = int_to_ptr.vmem [resolvable:$true] %s25
      %31 = dma.hbm_to_vmem [thread:$0]  %s24, 1024, %s26, [#allocation3], 64, 64, 4
    $region13: #{forward.3} parent=1 // pred_fallthru
      _
    // Predicated region
    $region14: #{forward.3} parent=1 // pred_check
      _
    $region15: #{forward.3} parent=1 // pred_check_branch
      %33 = sbr.rel (0) target = $region17
    $region16: #{forward.3} parent=1 // pred_region
      %35 = vsyncadd [#allocation6], 0
      %s37 = sshll.u32 %s3, 4
      %s38 = int_to_ptr.hbm [resolvable:$true] %s37
      %s39 = sshll.u32 [#allocation5], 4
      %s40 = int_to_ptr.vmem [resolvable:$true] %s39
      %42 = dma.hbm_to_vmem [thread:$0]  %s38, 16, %s40, [#allocation6]
    $region17: #{forward.3} parent=1 // pred_fallthru
      _
    // Predicated region
    $region18: #{forward.3} parent=1 // pred_check
      _
    $region19: #{forward.3} parent=1 // pred_check_branch
      %44 = sbr.rel (0) target = $region21
    $region20: #{forward.3} parent=1 // pred_region
      %46 = vsyncadd [#allocation6], 0
      %s47 = sshll.u32 %s4, 4
      %s48 = int_to_ptr.hbm [resolvable:$true] %s47
      %s49 = sshll.u32 [#allocation7], 4
      %s50 = int_to_ptr.vmem [resolvable:$true] %s49
      %55 = dma.hbm_to_vmem [thread:$0]  %s48, 1024, %s50, [#allocation6], 64, 64, 4
    $region21: #{forward.3} parent=1 // pred_fallthru
      _
    // Predicated region
    $region22: #{forward.3} parent=1 // pred_check
      _
    $region23: #{forward.3} parent=1 // pred_check_branch
      %57 = sbr.rel (0) target = $region25
    $region24: #{forward.3} parent=1 // pred_region
      %59 = vsyncadd [#allocation9], 0
      %s61 = sshll.u32 %s5, 4
      %s62 = int_to_ptr.hbm [resolvable:$true] %s61
      %s63 = sshll.u32 [#allocation8], 4
      %s64 = int_to_ptr.vmem [resolvable:$true] %s63
      %66 = dma.hbm_to_vmem [thread:$0]  %s62, 16, %s64, [#allocation9]
    $region25: #{forward.3} parent=1 // pred_fallthru
      _
    // Predicated region
    $region26: #{forward.3} parent=1 // pred_check
      _
    $region27: #{forward.3} parent=1 // pred_check_branch
      %68 = sbr.rel (0) target = $region29
    $region28: #{forward.3} parent=1 // pred_region
      %70 = dma.done [#allocation3], 1024
    $region29: #{forward.3} parent=1 // pred_fallthru
      _
    // Predicated region
    $region30: #{forward.3} parent=1 // pred_check
      _
    $region31: #{forward.3} parent=1 // pred_check_branch
      %72 = sbr.rel (0) target = $region33
    $region32: #{forward.3} parent=1 // pred_region
      %74 = dma.done [#allocation6], 16
    $region33: #{forward.3} parent=1 // pred_fallthru
      _
    // Predicated region
    $region34: #{forward.3} parent=1 // pred_check
      _
    $region35: #{forward.3} parent=1 // pred_check_branch
      %76 = sbr.rel (0) target = $region37
    $region36: #{forward.3} parent=1 // pred_region
      %78 = dma.done [#allocation6], 1024
    $region37: #{forward.3} parent=1 // pred_fallthru
      _
    // Predicated region
    $region38: #{forward.3} parent=1 // pred_check
      _
    $region39: #{forward.3} parent=1 // pred_check_branch
      %80 = sbr.rel (0) target = $region41
    $region40: #{forward.3} parent=1 // pred_region
      %82 = dma.done [#allocation9], 16
    $region41: #{forward.3} parent=1 // pred_fallthru
      _
    %v83 = vld [vmem:[#allocation2] sm:$0xf]
    %v84 = vld [vmem:[#allocation2 + $0x4] sm:$0xf]
    %v85 = vld [vmem:[#allocation2 + $0x8] sm:$0xf]
    %v86 = vld [vmem:[#allocation2 + $0xc] sm:$0xf]
    %v87 = vld [vmem:[#allocation2 + $0x10] sm:$0xf]
    %v88 = vld [vmem:[#allocation2 + $0x14] sm:$0xf]
    %v89 = vld [vmem:[#allocation2 + $0x18] sm:$0xf]
    %v90 = vld [vmem:[#allocation2 + $0x1c] sm:$0xf]
    %v91 = vld [vmem:[#allocation2 + $0x20] sm:$0xf]
    %v92 = vld [vmem:[#allocation2 + $0x24] sm:$0xf]
    %v93 = vld [vmem:[#allocation2 + $0x28] sm:$0xf]
    %v94 = vld [vmem:[#allocation2 + $0x2c] sm:$0xf]
    %v95 = vld [vmem:[#allocation2 + $0x30] sm:$0xf]
    %v96 = vld [vmem:[#allocation2 + $0x34] sm:$0xf]
    %v97 = vld [vmem:[#allocation2 + $0x38] sm:$0xf]
    %v98 = vld [vmem:[#allocation2 + $0x3c] sm:$0xf]
    %v99 = vld [vmem:[#allocation5] sm:$0x1]
    %v100 = vld [vmem:[%s0] sm:$0x3]
    %v101 = vpack.c.bf16 %v100, %v100
    %v103 = vperm.slane %v99, 0
    %v121 = vunpack.c.l.b16 %v83
    %v122 = vunpack.c.l.b16 %v84
    %v123 = vunpack.c.l.b16 %v85
    %v124 = vunpack.c.l.b16 %v86
    %v125 = vunpack.c.l.b16 %v87
    %v126 = vunpack.c.l.b16 %v88
    %v127 = vunpack.c.l.b16 %v89
    %v128 = vunpack.c.l.b16 %v90
    %v129 = vunpack.c.l.b16 %v91
    %v130 = vunpack.c.l.b16 %v92
    %v131 = vunpack.c.l.b16 %v93
    %v132 = vunpack.c.l.b16 %v94
    %v133 = vunpack.c.l.b16 %v95
    %v134 = vunpack.c.l.b16 %v96
    %v135 = vunpack.c.l.b16 %v97
    %v136 = vunpack.c.l.b16 %v98
    %v137 = vpack.c.b16 %v122, %v121
    %v138 = vpack.c.b16 %v124, %v123
    %v139 = vpack.c.b16 %v126, %v125
    %v140 = vpack.c.b16 %v128, %v127
    %v141 = vpack.c.b16 %v130, %v129
    %v142 = vpack.c.b16 %v132, %v131
    %v143 = vpack.c.b16 %v134, %v133
    %v144 = vpack.c.b16 %v136, %v135
    %153 = vmatpush.bf16.msra.mxu0 %v144
    %154 = vmatpush.bf16.msra.mxu0 %v143
    %155 = vmatpush.bf16.msra.mxu0 %v142
    %156 = vmatpush.bf16.msra.mxu0 %v141
    %157 = vmatpush.bf16.msra.mxu0 %v140
    %158 = vmatpush.bf16.msra.mxu0 %v139
    %159 = vmatpush.bf16.msra.mxu0 %v138
    %160 = vmatpush.bf16.msra.mxu0 %v137
    %161 = vmatmul.bf16.gmra.mxu0 %v101
    %v162 = vpop.f32.mrf.mxu0
    %v163 = vadd.f32 %v103, %v162
    %v164 = vpop.f32.mrf.mxu0
    %165 = vdwg.mxu0
    %v166 = vtanh.pop %v163
    %v167 = vld [vmem:[%s1] sm:$0x3]
    %v168 = vpack.c.bf16 %v167, %v167
    %169 = vmatpush.bf16.msra.mxu0 %v144
    %170 = vmatpush.bf16.msra.mxu0 %v143
    %171 = vmatpush.bf16.msra.mxu0 %v142
    %172 = vmatpush.bf16.msra.mxu0 %v141
    %173 = vmatpush.bf16.msra.mxu0 %v140
    %174 = vmatpush.bf16.msra.mxu0 %v139
    %175 = vmatpush.bf16.msra.mxu0 %v138
    %176 = vmatpush.bf16.msra.mxu0 %v137
    %177 = vmatmul.bf16.gmra.mxu0 %v168
    %v178 = vpop.f32.mrf.mxu0
    %v179 = vadd.f32 %v103, %v178
    %v180 = vpop.f32.mrf.mxu0
    %181 = vdwg.mxu0
    %v182 = vtanh.pop %v179
    %v183 = vadd.f32 %v166, %v182
    %v184 = vmul.f32 %v183, 0.5
    %v185 = vpack.c.bf16 %v184, %v184
    %v186 = vld [vmem:[#allocation7] sm:$0xf]
    %v187 = vld [vmem:[#allocation7 + $0x4] sm:$0xf]
    %v188 = vld [vmem:[#allocation7 + $0x8] sm:$0xf]
    %v189 = vld [vmem:[#allocation7 + $0xc] sm:$0xf]
    %v190 = vld [vmem:[#allocation7 + $0x10] sm:$0xf]
    %v191 = vld [vmem:[#allocation7 + $0x14] sm:$0xf]
    %v192 = vld [vmem:[#allocation7 + $0x18] sm:$0xf]
    %v193 = vld [vmem:[#allocation7 + $0x1c] sm:$0xf]
    %v194 = vld [vmem:[#allocation7 + $0x20] sm:$0xf]
    %v195 = vld [vmem:[#allocation7 + $0x24] sm:$0xf]
    %v196 = vld [vmem:[#allocation7 + $0x28] sm:$0xf]
    %v197 = vld [vmem:[#allocation7 + $0x2c] sm:$0xf]
    %v198 = vld [vmem:[#allocation7 + $0x30] sm:$0xf]
    %v199 = vld [vmem:[#allocation7 + $0x34] sm:$0xf]
    %v200 = vld [vmem:[#allocation7 + $0x38] sm:$0xf]
    %v201 = vld [vmem:[#allocation7 + $0x3c] sm:$0xf]
    %v202 = vld [vmem:[#allocation8] sm:$0x1]
    %v204 = vperm.slane %v202, 0
    %v222 = vunpack.c.l.b16 %v186
    %v223 = vunpack.c.l.b16 %v187
    %v224 = vunpack.c.l.b16 %v188
    %v225 = vunpack.c.l.b16 %v189
    %v226 = vunpack.c.l.b16 %v190
    %v227 = vunpack.c.l.b16 %v191
    %v228 = vunpack.c.l.b16 %v192
    %v229 = vunpack.c.l.b16 %v193
    %v230 = vunpack.c.l.b16 %v194
    %v231 = vunpack.c.l.b16 %v195
    %v232 = vunpack.c.l.b16 %v196
    %v233 = vunpack.c.l.b16 %v197
    %v234 = vunpack.c.l.b16 %v198
    %v235 = vunpack.c.l.b16 %v199
    %v236 = vunpack.c.l.b16 %v200
    %v237 = vunpack.c.l.b16 %v201
    %v238 = vpack.c.b16 %v223, %v222
    %v239 = vpack.c.b16 %v225, %v224
    %v240 = vpack.c.b16 %v227, %v226
    %v241 = vpack.c.b16 %v229, %v228
    %v242 = vpack.c.b16 %v231, %v230
    %v243 = vpack.c.b16 %v233, %v232
    %v244 = vpack.c.b16 %v235, %v234
    %v245 = vpack.c.b16 %v237, %v236
    %254 = vmatpush.bf16.msra.mxu0 %v245
    %255 = vmatpush.bf16.msra.mxu0 %v244
    %256 = vmatpush.bf16.msra.mxu0 %v243
    %257 = vmatpush.bf16.msra.mxu0 %v242
    %258 = vmatpush.bf16.msra.mxu0 %v241
    %259 = vmatpush.bf16.msra.mxu0 %v240
    %260 = vmatpush.bf16.msra.mxu0 %v239
    %261 = vmatpush.bf16.msra.mxu0 %v238
    %262 = vmatmul.bf16.gmra.mxu0 %v185
    %v263 = vpop.f32.mrf.mxu0
    %v264 = vadd.f32 %v204, %v263
    %v265 = vpop.f32.mrf.mxu0
    %266 = vdwg.mxu0
    %267 = vst [vmem:[#allocation10] sm:$0x3] %v264
    // Predicated region
    $region42: #{forward.3} parent=1 // pred_check
      _
    $region43: #{forward.3} parent=1 // pred_check_branch
      %269 = sbr.rel (0) target = $region45
    $region44: #{forward.3} parent=1 // pred_region
      %271 = vsyncadd [#allocation4], 0
      %s273 = sshll.u32 [#allocation10], 4
      %s274 = int_to_ptr.vmem [resolvable:$true] %s273
      %s275 = sshll.u32 %s6, 4
      %s276 = int_to_ptr.hbm [resolvable:$true] %s275
      %278 = dma.vmem_to_hbm [thread:$0]  %s274, 32, %s276, [#allocation4]
    $region45: #{forward.3} parent=1 // pred_fallthru
      _
    // Predicated region
    $region46: #{forward.3} parent=1 // pred_check
      _
    $region47: #{forward.3} parent=1 // pred_check_branch
      %280 = sbr.rel (0) target = $region49
    $region48: #{forward.3} parent=1 // pred_region
      %282 = dma.done [#allocation4], 32
    $region49: #{forward.3} parent=1 // pred_fallthru
      _
    %283 = vsyncpa [#allocation3], 1
    %284 = vsyncpa [#allocation6], 1
    %285 = vsyncpa [#allocation9], 1
    %286 = vsyncpa [#allocation4], 1

// kernel: forward.2
$region0: #{forward.2}
  #allocation0 [shape = 'u32[]', space=smem, size = 0x4, offset = 0x4, fixed_abs, tag = 'smem constant byte address 0x4 - core index']
  #allocation1 [shape = 'u32[72,128]{1,0:T(1,128)}', space=vmem, size = 0x9000, scoped, tag = 'internal scratch']
  #allocation2 [shape = 'f32[16,128]{1,0:T(8,128)}', space=vmem, size = 0x2000, scoped, tag = 'scratch operand']
  %s0 = inlined_call_operand.vmem [shape: f32[16,128], index: 0, kind: input, shape index: {}]
  %s1 = inlined_call_operand.vmem [shape: f32[2,8], index: 1, kind: input, shape index: {}]
  %s2 = inlined_call_operand.hbm [shape: f32[1,128], index: 2, kind: input, shape index: {}]
  %s3 = inlined_call_operand.hbm [shape: f32[1,128], index: 3, kind: input, shape index: {}]
  %s4 = inlined_call_operand.hbm [shape: bf16[12,128,384], index: 4, kind: input, shape index: {}]
  %s5 = inlined_call_operand.hbm [shape: f32[12,1,384], index: 5, kind: input, shape index: {}]
  %s6 = inlined_call_operand.hbm [shape: bf16[12,128,128], index: 6, kind: input, shape index: {}]
  %s7 = inlined_call_operand.hbm [shape: f32[12,1,128], index: 7, kind: input, shape index: {}]
  %s8 = inlined_call_operand.hbm [shape: f32[12,1,128], index: 8, kind: input, shape index: {}]
  %s9 = inlined_call_operand.hbm [shape: f32[12,1,128], index: 9, kind: input, shape index: {}]
  %s10 = inlined_call_operand.hbm [shape: bf16[12,128,256], index: 10, kind: input, shape index: {}]
  %s11 = inlined_call_operand.hbm [shape: f32[12,1,256], index: 11, kind: input, shape index: {}]
  %s12 = inlined_call_operand.hbm [shape: bf16[12,256,128], index: 12, kind: input, shape index: {}]
  %s13 = inlined_call_operand.hbm [shape: f32[12,1,128], index: 13, kind: input, shape index: {}]
  %s14 = inlined_call_operand.hbm [shape: f32[12,1,128], index: 14, kind: input, shape index: {}]
  %s15 = inlined_call_operand.hbm [shape: f32[12,1,128], index: 15, kind: input, shape index: {}]
  %s16 = inlined_call_operand.vmem [shape: f32[16,128], index: 16, kind: output, shape index: {0}]
  %s17 = inlined_call_operand.vmem [shape: f32[16,128], index: 17, kind: output, shape index: {1}]
  %18 = xla_tuple %s16, %s17
  %s19 = sld [smem:[#allocation0]]
  $region173: #{forward.2} parent=0
    _
  %s21 = ssub.s32 1, %s19
  %s22 = scalar_select 0, %s21, %s19
  $region1: #{forward.2} parent=0
    #allocation3 [shape = 'u8[512]{0}', space=vmem, size = 0x400, scoped, tag = 'input window, operand 2, single buffered']
    #allocation4 [shape = 's32[2]{0}', space=sflag, size = 0x8, scoped, tag = 'scoped memory for forward.2']
    #allocation5 [shape = 'u8[512]{0}', space=vmem, size = 0x400, scoped, tag = 'input window, operand 3, single buffered']
    #allocation6 [shape = 's32[1]{0}', space=sflag, size = 0x4, scoped, tag = 'scoped memory for forward.2']
    #allocation7 [shape = 'u8[196608]{0}', space=vmem, size = 0x30000, scoped, tag = 'input window, operand 4']
    #allocation8 [shape = 'u8[3072]{0}', space=vmem, size = 0xc00, scoped, tag = 'input window, operand 5']
    #allocation9 [shape = 'u8[65536]{0}', space=vmem, size = 0x10000, scoped, tag = 'input window, operand 6']
    #allocation10 [shape = 'u8[1024]{0}', space=vmem, size = 0x400, scoped, tag = 'input window, operand 7']
    #allocation11 [shape = 'u8[1024]{0}', space=vmem, size = 0x400, scoped, tag = 'input window, operand 8']
    #allocation12 [shape = 'u8[1024]{0}', space=vmem, size = 0x400, scoped, tag = 'input window, operand 9']
    #allocation13 [shape = 'u8[131072]{0}', space=vmem, size = 0x20000, scoped, tag = 'input window, operand 10']
    #allocation14 [shape = 'u8[2048]{0}', space=vmem, size = 0x800, scoped, tag = 'input window, operand 11']
    #allocation15 [shape = 'u8[131072]{0}', space=vmem, size = 0x20000, scoped, tag = 'input window, operand 12']
    #allocation16 [shape = 'u8[1024]{0}', space=vmem, size = 0x400, scoped, tag = 'input window, operand 13']
    #allocation17 [shape = 'u8[1024]{0}', space=vmem, size = 0x400, scoped, tag = 'input window, operand 14']
    #allocation18 [shape = 'u8[1024]{0}', space=vmem, size = 0x400, scoped, tag = 'input window, operand 15']
    %23 = vsyncpa [#allocation4], 0
    %24 = vsyncpa [#allocation6], 0
    loop: start=0, step=1, limit=14
    $region2: #{forward.2} parent=1 // loop_pre_header
      _
    $region3: #{forward.2} parent=1 // loop_header
      %s26 = sphi 0, %s30
      %p27 = scmp.ge.s32.totalorder %s26, 14
      %s34 = sphi 0, %s34
      %s36 = sphi 0, %s34
      %s37 = sphi 0, %s36
      %s51 = sphi 0, %s37
      %s55 = sphi 0, %s55
      %s57 = sphi 0, %s55
      %s58 = sphi 0, %s57
      %s72 = sphi 0, %s58
      %s76 = sphi 0, %s76
      %s78 = sphi 0, %s76
      %s79 = sphi 0, %s78
      %s93 = sphi 0, %s79
      %s97 = sphi 0, %s97
      %s99 = sphi 0, %s97
      %s100 = sphi 0, %s99
      %s114 = sphi 0, %s100
      %s120 = sphi 0, %s122
      %s123 = sphi 0, %s120
      %s124 = sphi 0, %s123
      %s140 = sphi 0, %s124
      %s146 = sphi 0, %s148
      %s149 = sphi 0, %s146
      %s150 = sphi 0, %s149
      %s166 = sphi 0, %s150
      %s172 = sphi 0, %s174
      %s175 = sphi 0, %s172
      %s176 = sphi 0, %s175
      %s192 = sphi 0, %s176
      %s198 = sphi 0, %s200
      %s201 = sphi 0, %s198
      %s202 = sphi 0, %s201
      %s218 = sphi 0, %s202
      %s224 = sphi 0, %s226
      %s227 = sphi 0, %s224
      %s228 = sphi 0, %s227
      %s244 = sphi 0, %s228
      %s250 = sphi 0, %s252
      %s253 = sphi 0, %s250
      %s254 = sphi 0, %s253
      %s270 = sphi 0, %s254
      %s276 = sphi 0, %s278
      %s279 = sphi 0, %s276
      %s280 = sphi 0, %s279
      %s296 = sphi 0, %s280
      %s302 = sphi 0, %s304
      %s305 = sphi 0, %s302
      %s306 = sphi 0, %s305
      %s322 = sphi 0, %s306
      %s328 = sphi 0, %s330
      %s331 = sphi 0, %s328
      %s332 = sphi 0, %s331
      %s348 = sphi 0, %s332
      %s354 = sphi 0, %s356
      %s357 = sphi 0, %s354
      %s358 = sphi 0, %s357
      %s374 = sphi 0, %s358
      %s380 = sphi 0, %s382
      %s383 = sphi 0, %s380
      %s384 = sphi 0, %s383
      %s400 = sphi 0, %s384
      %s406 = sphi 0, %s408
      %s409 = sphi 0, %s406
      %s410 = sphi 0, %s409
      %s426 = sphi 0, %s410
      %s430 = sphi 0, %s430
      %s432 = sphi 0, %s430
      %s433 = sphi 0, %s432
      %s447 = sphi 0, %s433
      %s451 = sphi 0, %s451
      %s453 = sphi 0, %s451
      %s454 = sphi 0, %s453
      %s468 = sphi 0, %s454
    $region4: #{forward.2} parent=1 // loop_header_branch
      %29 = sbr.rel (%p27) target = $region8
    $region5: #{forward.2} parent=1 // loop_body
      %s31 = ssub.s32 %s26, 1
      %s32 = ssub.s32 %s26, 2
      %s33 = sadd.s32 %s26, 1
      %s35 = sadd.s32 %s34, 1
      %p38 = scmp.eq.s32.totalorder %s26, 11
      %p39 = scmp.ne.s32.totalorder %s34, %s36
      %p40 = scmp.eq.s32.totalorder %s26, 0
      %p41 = por %p39, %p40
      %p42 = scmp.ne.s32.totalorder %s34, %s36
      %p43 = scmp.eq.s32.totalorder %s31, 11
      %p44 = por %p42, %p43
      %p45 = scmp.ne.s32.totalorder %s36, %s37
      %p46 = scmp.eq.s32.totalorder %s31, 0
      %p47 = por %p45, %p46
      %p48 = scmp.ne.s32.totalorder %s36, %s37
      %p49 = scmp.eq.s32.totalorder %s32, 11
      %p50 = por %p48, %p49
      %p52 = scmp.ne.s32.totalorder %s37, %s51
      %p53 = scmp.eq.s32.totalorder %s32, 0
      %p54 = por %p52, %p53
      %s56 = sadd.s32 %s55, 1
      %p59 = scmp.eq.s32.totalorder %s26, 11
      %p60 = scmp.ne.s32.totalorder %s55, %s57
      %p61 = scmp.eq.s32.totalorder %s26, 0
      %p62 = por %p60, %p61
      %p63 = scmp.ne.s32.totalorder %s55, %s57
      %p64 = scmp.eq.s32.totalorder %s31, 11
      %p65 = por %p63, %p64
      %p66 = scmp.ne.s32.totalorder %s57, %s58
      %p67 = scmp.eq.s32.totalorder %s31, 0
      %p68 = por %p66, %p67
      %p69 = scmp.ne.s32.totalorder %s57, %s58
      %p70 = scmp.eq.s32.totalorder %s32, 11
      %p71 = por %p69, %p70
      %p73 = scmp.ne.s32.totalorder %s58, %s72
      %p74 = scmp.eq.s32.totalorder %s32, 0
      %p75 = por %p73, %p74
      %s77 = sadd.s32 %s76, 1
      %p80 = scmp.eq.s32.totalorder %s26, 11
      %p81 = scmp.ne.s32.totalorder %s76, %s78
      %p82 = scmp.eq.s32.totalorder %s26, 0
      %p83 = por %p81, %p82
      %p84 = scmp.ne.s32.totalorder %s76, %s78
      %p85 = scmp.eq.s32.totalorder %s31, 11
      %p86 = por %p84, %p85
      %p87 = scmp.ne.s32.totalorder %s78, %s79
      %p88 = scmp.eq.s32.totalorder %s31, 0
      %p89 = por %p87, %p88
      %p90 = scmp.ne.s32.totalorder %s78, %s79
      %p91 = scmp.eq.s32.totalorder %s32, 11
      %p92 = por %p90, %p91
      %p94 = scmp.ne.s32.totalorder %s79, %s93
      %p95 = scmp.eq.s32.totalorder %s32, 0
      %p96 = por %p94, %p95
      %s98 = sadd.s32 %s97, 1
      %p101 = scmp.eq.s32.totalorder %s26, 11
      %p102 = scmp.ne.s32.totalorder %s97, %s99
      %p103 = scmp.eq.s32.totalorder %s26, 0
      %p104 = por %p102, %p103
      %p105 = scmp.ne.s32.totalorder %s97, %s99
      %p106 = scmp.eq.s32.totalorder %s31, 11
      %p107 = por %p105, %p106
      %p108 = scmp.ne.s32.totalorder %s99, %s100
      %p109 = scmp.eq.s32.totalorder %s31, 0
      %p110 = por %p108, %p109
      %p111 = scmp.ne.s32.totalorder %s99, %s100
      %p112 = scmp.eq.s32.totalorder %s32, 11
      %p113 = por %p111, %p112
      %p115 = scmp.ne.s32.totalorder %s100, %s114
      %p116 = scmp.eq.s32.totalorder %s32, 0
      %p117 = por %p115, %p116
      %s118 = ssub.s32 %s26, %s33
      %p119 = scmp.eq.s32.totalorder %s118, 0
      %s121 = sadd.s32 %s120, 1
      %s122 = scalar_select %p119, %s120, %s121
      %p125 = pneg %p119
      %p126 = scmp.eq.s32.totalorder %s26, 11
      %p127 = por %p125, %p126
      %p128 = scmp.ne.s32.totalorder %s120, %s123
      %p129 = scmp.eq.s32.totalorder %s26, 0
      %p130 = por %p128, %p129
      %p131 = scmp.ne.s32.totalorder %s120, %s123
      %p132 = scmp.eq.s32.totalorder %s31, 11
      %p133 = por %p131, %p132
      %p134 = scmp.ne.s32.totalorder %s123, %s124
      %p135 = scmp.eq.s32.totalorder %s31, 0
      %p136 = por %p134, %p135
      %p137 = scmp.ne.s32.totalorder %s123, %s124
      %p138 = scmp.eq.s32.totalorder %s32, 11
      %p139 = por %p137, %p138
      %p141 = scmp.ne.s32.totalorder %s124, %s140
      %p142 = scmp.eq.s32.totalorder %s32, 0
      %p143 = por %p141, %p142
      %s144 = ssub.s32 %s26, %s33
      %p145 = scmp.eq.s32.totalorder %s144, 0
      %s147 = sadd.s32 %s146, 1
      %s148 = scalar_select %p145, %s146, %s147
      %p151 = pneg %p145
      %p152 = scmp.eq.s32.totalorder %s26, 11
      %p153 = por %p151, %p152
      %p154 = scmp.ne.s32.totalorder %s146, %s149
      %p155 = scmp.eq.s32.totalorder %s26, 0
      %p156 = por %p154, %p155
      %p157 = scmp.ne.s32.totalorder %s146, %s149
      %p158 = scmp.eq.s32.totalorder %s31, 11
      %p159 = por %p157, %p158
      %p160 = scmp.ne.s32.totalorder %s149, %s150
      %p161 = scmp.eq.s32.totalorder %s31, 0
      %p162 = por %p160, %p161
      %p163 = scmp.ne.s32.totalorder %s149, %s150
      %p164 = scmp.eq.s32.totalorder %s32, 11
      %p165 = por %p163, %p164
      %p167 = scmp.ne.s32.totalorder %s150, %s166
      %p168 = scmp.eq.s32.totalorder %s32, 0
      %p169 = por %p167, %p168
      %s170 = ssub.s32 %s26, %s33
      %p171 = scmp.eq.s32.totalorder %s170, 0
      %s173 = sadd.s32 %s172, 1
      %s174 = scalar_select %p171, %s172, %s173
      %p177 = pneg %p171
      %p178 = scmp.eq.s32.totalorder %s26, 11
      %p179 = por %p177, %p178
      %p180 = scmp.ne.s32.totalorder %s172, %s175
      %p181 = scmp.eq.s32.totalorder %s26, 0
      %p182 = por %p180, %p181
      %p183 = scmp.ne.s32.totalorder %s172, %s175
      %p184 = scmp.eq.s32.totalorder %s31, 11
      %p185 = por %p183, %p184
      %p186 = scmp.ne.s32.totalorder %s175, %s176
      %p187 = scmp.eq.s32.totalorder %s31, 0
      %p188 = por %p186, %p187
      %p189 = scmp.ne.s32.totalorder %s175, %s176
      %p190 = scmp.eq.s32.totalorder %s32, 11
      %p191 = por %p189, %p190
      %p193 = scmp.ne.s32.totalorder %s176, %s192
      %p194 = scmp.eq.s32.totalorder %s32, 0
      %p195 = por %p193, %p194
      %s196 = ssub.s32 %s26, %s33
      %p197 = scmp.eq.s32.totalorder %s196, 0
      %s199 = sadd.s32 %s198, 1
      %s200 = scalar_select %p197, %s198, %s199
      %p203 = pneg %p197
      %p204 = scmp.eq.s32.totalorder %s26, 11
      %p205 = por %p203, %p204
      %p206 = scmp.ne.s32.totalorder %s198, %s201
      %p207 = scmp.eq.s32.totalorder %s26, 0
      %p208 = por %p206, %p207
      %p209 = scmp.ne.s32.totalorder %s198, %s201
      %p210 = scmp.eq.s32.totalorder %s31, 11
      %p211 = por %p209, %p210
      %p212 = scmp.ne.s32.totalorder %s201, %s202
      %p213 = scmp.eq.s32.totalorder %s31, 0
      %p214 = por %p212, %p213
      %p215 = scmp.ne.s32.totalorder %s201, %s202
      %p216 = scmp.eq.s32.totalorder %s32, 11
      %p217 = por %p215, %p216
      %p219 = scmp.ne.s32.totalorder %s202, %s218
      %p220 = scmp.eq.s32.totalorder %s32, 0
      %p221 = por %p219, %p220
      %s222 = ssub.s32 %s26, %s33
      %p223 = scmp.eq.s32.totalorder %s222, 0
      %s225 = sadd.s32 %s224, 1
      %s226 = scalar_select %p223, %s224, %s225
      %p229 = pneg %p223
      %p230 = scmp.eq.s32.totalorder %s26, 11
      %p231 = por %p229, %p230
      %p232 = scmp.ne.s32.totalorder %s224, %s227
      %p233 = scmp.eq.s32.totalorder %s26, 0
      %p234 = por %p232, %p233
      %p235 = scmp.ne.s32.totalorder %s224, %s227
      %p236 = scmp.eq.s32.totalorder %s31, 11
      %p237 = por %p235, %p236
      %p238 = scmp.ne.s32.totalorder %s227, %s228
      %p239 = scmp.eq.s32.totalorder %s31, 0
      %p240 = por %p238, %p239
      %p241 = scmp.ne.s32.totalorder %s227, %s228
      %p242 = scmp.eq.s32.totalorder %s32, 11
      %p243 = por %p241, %p242
      %p245 = scmp.ne.s32.totalorder %s228, %s244
      %p246 = scmp.eq.s32.totalorder %s32, 0
      %p247 = por %p245, %p246
      %s248 = ssub.s32 %s26, %s33
      %p249 = scmp.eq.s32.totalorder %s248, 0
      %s251 = sadd.s32 %s250, 1
      %s252 = scalar_select %p249, %s250, %s251
      %p255 = pneg %p249
      %p256 = scmp.eq.s32.totalorder %s26, 11
      %p257 = por %p255, %p256
      %p258 = scmp.ne.s32.totalorder %s250, %s253
      %p259 = scmp.eq.s32.totalorder %s26, 0
      %p260 = por %p258, %p259
      %p261 = scmp.ne.s32.totalorder %s250, %s253
      %p262 = scmp.eq.s32.totalorder %s31, 11
      %p263 = por %p261, %p262
      %p264 = scmp.ne.s32.totalorder %s253, %s254
      %p265 = scmp.eq.s32.totalorder %s31, 0
      %p266 = por %p264, %p265
      %p267 = scmp.ne.s32.totalorder %s253, %s254
      %p268 = scmp.eq.s32.totalorder %s32, 11
      %p269 = por %p267, %p268
      %p271 = scmp.ne.s32.totalorder %s254, %s270
      %p272 = scmp.eq.s32.totalorder %s32, 0
      %p273 = por %p271, %p272
      %s274 = ssub.s32 %s26, %s33
      %p275 = scmp.eq.s32.totalorder %s274, 0
      %s277 = sadd.s32 %s276, 1
      %s278 = scalar_select %p275, %s276, %s277
      %p281 = pneg %p275
      %p282 = scmp.eq.s32.totalorder %s26, 11
      %p283 = por %p281, %p282
      %p284 = scmp.ne.s32.totalorder %s276, %s279
      %p285 = scmp.eq.s32.totalorder %s26, 0
      %p286 = por %p284, %p285
      %p287 = scmp.ne.s32.totalorder %s276, %s279
      %p288 = scmp.eq.s32.totalorder %s31, 11
      %p289 = por %p287, %p288
      %p290 = scmp.ne.s32.totalorder %s279, %s280
      %p291 = scmp.eq.s32.totalorder %s31, 0
      %p292 = por %p290, %p291
      %p293 = scmp.ne.s32.totalorder %s279, %s280
      %p294 = scmp.eq.s32.totalorder %s32, 11
      %p295 = por %p293, %p294
      %p297 = scmp.ne.s32.totalorder %s280, %s296
      %p298 = scmp.eq.s32.totalorder %s32, 0
      %p299 = por %p297, %p298
      %s300 = ssub.s32 %s26, %s33
      %p301 = scmp.eq.s32.totalorder %s300, 0
      %s303 = sadd.s32 %s302, 1
      %s304 = scalar_select %p301, %s302, %s303
      %p307 = pneg %p301
      %p308 = scmp.eq.s32.totalorder %s26, 11
      %p309 = por %p307, %p308
      %p310 = scmp.ne.s32.totalorder %s302, %s305
      %p311 = scmp.eq.s32.totalorder %s26, 0
      %p312 = por %p310, %p311
      %p313 = scmp.ne.s32.totalorder %s302, %s305
      %p314 = scmp.eq.s32.totalorder %s31, 11
      %p315 = por %p313, %p314
      %p316 = scmp.ne.s32.totalorder %s305, %s306
      %p317 = scmp.eq.s32.totalorder %s31, 0
      %p318 = por %p316, %p317
      %p319 = scmp.ne.s32.totalorder %s305, %s306
      %p320 = scmp.eq.s32.totalorder %s32, 11
      %p321 = por %p319, %p320
      %p323 = scmp.ne.s32.totalorder %s306, %s322
      %p324 = scmp.eq.s32.totalorder %s32, 0
      %p325 = por %p323, %p324
      %s326 = ssub.s32 %s26, %s33
      %p327 = scmp.eq.s32.totalorder %s326, 0
      %s329 = sadd.s32 %s328, 1
      %s330 = scalar_select %p327, %s328, %s329
      %p333 = pneg %p327
      %p334 = scmp.eq.s32.totalorder %s26, 11
      %p335 = por %p333, %p334
      %p336 = scmp.ne.s32.totalorder %s328, %s331
      %p337 = scmp.eq.s32.totalorder %s26, 0
      %p338 = por %p336, %p337
      %p339 = scmp.ne.s32.totalorder %s328, %s331
      %p340 = scmp.eq.s32.totalorder %s31, 11
      %p341 = por %p339, %p340
      %p342 = scmp.ne.s32.totalorder %s331, %s332
      %p343 = scmp.eq.s32.totalorder %s31, 0
      %p344 = por %p342, %p343
      %p345 = scmp.ne.s32.totalorder %s331, %s332
      %p346 = scmp.eq.s32.totalorder %s32, 11
      %p347 = por %p345, %p346
      %p349 = scmp.ne.s32.totalorder %s332, %s348
      %p350 = scmp.eq.s32.totalorder %s32, 0
      %p351 = por %p349, %p350
      %s352 = ssub.s32 %s26, %s33
      %p353 = scmp.eq.s32.totalorder %s352, 0
      %s355 = sadd.s32 %s354, 1
      %s356 = scalar_select %p353, %s354, %s355
      %p359 = pneg %p353
      %p360 = scmp.eq.s32.totalorder %s26, 11
      %p361 = por %p359, %p360
      %p362 = scmp.ne.s32.totalorder %s354, %s357
      %p363 = scmp.eq.s32.totalorder %s26, 0
      %p364 = por %p362, %p363
      %p365 = scmp.ne.s32.totalorder %s354, %s357
      %p366 = scmp.eq.s32.totalorder %s31, 11
      %p367 = por %p365, %p366
      %p368 = scmp.ne.s32.totalorder %s357, %s358
      %p369 = scmp.eq.s32.totalorder %s31, 0
      %p370 = por %p368, %p369
      %p371 = scmp.ne.s32.totalorder %s357, %s358
      %p372 = scmp.eq.s32.totalorder %s32, 11
      %p373 = por %p371, %p372
      %p375 = scmp.ne.s32.totalorder %s358, %s374
      %p376 = scmp.eq.s32.totalorder %s32, 0
      %p377 = por %p375, %p376
      %s378 = ssub.s32 %s26, %s33
      %p379 = scmp.eq.s32.totalorder %s378, 0
      %s381 = sadd.s32 %s380, 1
      %s382 = scalar_select %p379, %s380, %s381
      %p385 = pneg %p379
      %p386 = scmp.eq.s32.totalorder %s26, 11
      %p387 = por %p385, %p386
      %p388 = scmp.ne.s32.totalorder %s380, %s383
      %p389 = scmp.eq.s32.totalorder %s26, 0
      %p390 = por %p388, %p389
      %p391 = scmp.ne.s32.totalorder %s380, %s383
      %p392 = scmp.eq.s32.totalorder %s31, 11
      %p393 = por %p391, %p392
      %p394 = scmp.ne.s32.totalorder %s383, %s384
      %p395 = scmp.eq.s32.totalorder %s31, 0
      %p396 = por %p394, %p395
      %p397 = scmp.ne.s32.totalorder %s383, %s384
      %p398 = scmp.eq.s32.totalorder %s32, 11
      %p399 = por %p397, %p398
      %p401 = scmp.ne.s32.totalorder %s384, %s400
      %p402 = scmp.eq.s32.totalorder %s32, 0
      %p403 = por %p401, %p402
      %s404 = ssub.s32 %s26, %s33
      %p405 = scmp.eq.s32.totalorder %s404, 0
      %s407 = sadd.s32 %s406, 1
      %s408 = scalar_select %p405, %s406, %s407
      %p411 = pneg %p405
      %p412 = scmp.eq.s32.totalorder %s26, 11
      %p413 = por %p411, %p412
      %p414 = scmp.ne.s32.totalorder %s406, %s409
      %p415 = scmp.eq.s32.totalorder %s26, 0
      %p416 = por %p414, %p415
      %p417 = scmp.ne.s32.totalorder %s406, %s409
      %p418 = scmp.eq.s32.totalorder %s31, 11
      %p419 = por %p417, %p418
      %p420 = scmp.ne.s32.totalorder %s409, %s410
      %p421 = scmp.eq.s32.totalorder %s31, 0
      %p422 = por %p420, %p421
      %p423 = scmp.ne.s32.totalorder %s409, %s410
      %p424 = scmp.eq.s32.totalorder %s32, 11
      %p425 = por %p423, %p424
      %p427 = scmp.ne.s32.totalorder %s410, %s426
      %p428 = scmp.eq.s32.totalorder %s32, 0
      %p429 = por %p427, %p428
      %s431 = sadd.s32 %s430, 1
      %p434 = scmp.eq.s32.totalorder %s26, 11
      %p435 = scmp.ne.s32.totalorder %s430, %s432
      %p436 = scmp.eq.s32.totalorder %s26, 0
      %p437 = por %p435, %p436
      %p438 = scmp.ne.s32.totalorder %s430, %s432
      %p439 = scmp.eq.s32.totalorder %s31, 11
      %p440 = por %p438, %p439
      %p441 = scmp.ne.s32.totalorder %s432, %s433
      %p442 = scmp.eq.s32.totalorder %s31, 0
      %p443 = por %p441, %p442
      %p444 = scmp.ne.s32.totalorder %s432, %s433
      %p445 = scmp.eq.s32.totalorder %s32, 11
      %p446 = por %p444, %p445
      %p448 = scmp.ne.s32.totalorder %s433, %s447
      %p449 = scmp.eq.s32.totalorder %s32, 0
      %p450 = por %p448, %p449
      %s452 = sadd.s32 %s451, 1
      %p455 = scmp.eq.s32.totalorder %s26, 11
      %p456 = scmp.ne.s32.totalorder %s451, %s453
      %p457 = scmp.eq.s32.totalorder %s26, 0
      %p458 = por %p456, %p457
      %p459 = scmp.ne.s32.totalorder %s451, %s453
      %p460 = scmp.eq.s32.totalorder %s31, 11
      %p461 = por %p459, %p460
      %p462 = scmp.ne.s32.totalorder %s453, %s454
      %p463 = scmp.eq.s32.totalorder %s31, 0
      %p464 = por %p462, %p463
      %p465 = scmp.ne.s32.totalorder %s453, %s454
      %p466 = scmp.eq.s32.totalorder %s32, 11
      %p467 = por %p465, %p466
      %p469 = scmp.ne.s32.totalorder %s454, %s468
      %p470 = scmp.eq.s32.totalorder %s32, 0
      %p471 = por %p469, %p470
      %p472 = scmp.le.s32.totalorder 1, %s26
      %p473 = scmp.lt.s32.totalorder %s26, 13
      %p474 = pnand %p472, %p473
      %p475 = pneg %p474
      // Predicated region
      $region9: #{forward.2} parent=5 // pred_check
        _
      $region10: #{forward.2} parent=5 // pred_check_branch
        %477 = sbr.rel (%p474) target = $region12
      $region11: #{forward.2} parent=5 // pred_region
        %s478 = ssub.s32 %s26, 1
        // Predicated region
        $region13: #{forward.2} parent=11 // pred_check
          %p479 = pneg %p47
        $region14: #{forward.2} parent=11 // pred_check_branch
          %481 = sbr.rel (%p479) target = $region16
        $region15: #{forward.2} parent=11 // pred_region
          _
        $region16: #{forward.2} parent=11 // pred_fallthru
          _
        // Predicated region
        $region17: #{forward.2} parent=11 // pred_check
          %p482 = pneg %p68
        $region18: #{forward.2} parent=11 // pred_check_branch
          %484 = sbr.rel (%p482) target = $region20
        $region19: #{forward.2} parent=11 // pred_region
          _
        $region20: #{forward.2} parent=11 // pred_fallthru
          _
        // Predicated region
        $region21: #{forward.2} parent=11 // pred_check
          %p485 = pneg %p89
        $region22: #{forward.2} parent=11 // pred_check_branch
          %487 = sbr.rel (%p485) target = $region24
        $region23: #{forward.2} parent=11 // pred_region
          %489 = vsyncadd [#allocation4], 0
          %s491 = sshll.u32 %s2, 4
          %s492 = int_to_ptr.hbm [resolvable:$true] %s491
          %s493 = sshll.u32 [#allocation3], 4
          %s494 = int_to_ptr.vmem [resolvable:$true] %s493
          %496 = dma.hbm_to_vmem [thread:$0]  %s492, 16, %s494, [#allocation4]
        $region24: #{forward.2} parent=11 // pred_fallthru
          _
        // Predicated region
        $region25: #{forward.2} parent=11 // pred_check
          %p497 = pneg %p110
        $region26: #{forward.2} parent=11 // pred_check_branch
          %499 = sbr.rel (%p497) target = $region28
        $region27: #{forward.2} parent=11 // pred_region
          %501 = vsyncadd [#allocation6], 0
          %s503 = sshll.u32 %s3, 4
          %s504 = int_to_ptr.hbm [resolvable:$true] %s503
          %s505 = sshll.u32 [#allocation5], 4
          %s506 = int_to_ptr.vmem [resolvable:$true] %s505
          %508 = dma.hbm_to_vmem [thread:$0]  %s504, 16, %s506, [#allocation6]
        $region28: #{forward.2} parent=11 // pred_fallthru
          _
      $region12: #{forward.2} parent=5 // pred_fallthru
        _
      %p509 = scmp.lt.s32.totalorder %s26, 12
      // Predicated region
      $region29: #{forward.2} parent=5 // pred_check
        %p510 = pneg %p509
      $region30: #{forward.2} parent=5 // pred_check_branch
        %512 = sbr.rel (%p510) target = $region32
      $region31: #{forward.2} parent=5 // pred_region
        // Predicated region
        $region33: #{forward.2} parent=31 // pred_check
          %p513 = pneg %p130
        $region34: #{forward.2} parent=31 // pred_check_branch
          %515 = sbr.rel (%p513) target = $region36
        $region35: #{forward.2} parent=31 // pred_region
          %s516 = sand.u32 %s26, 1
          %s517 = scalar_lea.sflag [#allocation4], %s516
          %s518 = sand.u32 %s120, 1
          %s519 = smul.addr %s518, 192
          %s520 = scalar_lea.vmem [#allocation7], %s519
          %522 = vsyncadd %s517, 0
          %s523 = smul.addr %s26, 48
          %s524 = smul.addr %s523, 4
          %s525 = scalar_lea.hbm %s4, %s524
          %s526 = sshll.u32 %s525, 4
          %s527 = int_to_ptr.hbm [resolvable:$true] %s526
          %s528 = sshll.u32 %s520, 4
          %s529 = int_to_ptr.vmem [resolvable:$true] %s528
          %534 = dma.hbm_to_vmem [thread:$0]  %s527, 3072, %s529, %s517, 192, 192, 12
        $region36: #{forward.2} parent=31 // pred_fallthru
          _
        // Predicated region
        $region37: #{forward.2} parent=31 // pred_check
          %p535 = pneg %p156
        $region38: #{forward.2} parent=31 // pred_check_branch
          %537 = sbr.rel (%p535) target = $region40
        $region39: #{forward.2} parent=31 // pred_region
          %s538 = sand.u32 %s26, 1
          %s539 = scalar_lea.sflag [#allocation4], %s538
          %s540 = sand.u32 %s146, 1
          %s541 = smul.addr %s540, 3
          %s542 = scalar_lea.vmem [#allocation8], %s541
          %544 = vsyncadd %s539, 0
          %s545 = smul.addr %s26, 3
          %s546 = scalar_lea.hbm %s5, %s545
          %s548 = sshll.u32 %s546, 4
          %s549 = int_to_ptr.hbm [resolvable:$true] %s548
          %s550 = sshll.u32 %s542, 4
          %s551 = int_to_ptr.vmem [resolvable:$true] %s550
          %553 = dma.hbm_to_vmem [thread:$0]  %s549, 48, %s551, %s539
        $region40: #{forward.2} parent=31 // pred_fallthru
          _
        // Predicated region
        $region41: #{forward.2} parent=31 // pred_check
          %p554 = pneg %p182
        $region42: #{forward.2} parent=31 // pred_check_branch
          %556 = sbr.rel (%p554) target = $region44
        $region43: #{forward.2} parent=31 // pred_region
          %s557 = sand.u32 %s26, 1
          %s558 = scalar_lea.sflag [#allocation4], %s557
          %s559 = sand.u32 %s172, 1
          %s560 = smul.addr %s559, 64
          %s561 = scalar_lea.vmem [#allocation9], %s560
          %563 = vsyncadd %s558, 0
          %s564 = smul.addr %s26, 16
          %s565 = smul.addr %s564, 4
          %s566 = scalar_lea.hbm %s6, %s565
          %s567 = sshll.u32 %s566, 4
          %s568 = int_to_ptr.hbm [resolvable:$true] %s567
          %s569 = sshll.u32 %s561, 4
          %s570 = int_to_ptr.vmem [resolvable:$true] %s569
          %575 = dma.hbm_to_vmem [thread:$0]  %s568, 1024, %s570, %s558, 64, 64, 4
        $region44: #{forward.2} parent=31 // pred_fallthru
          _
        // Predicated region
        $region45: #{forward.2} parent=31 // pred_check
          %p576 = pneg %p208
        $region46: #{forward.2} parent=31 // pred_check_branch
          %578 = sbr.rel (%p576) target = $region48
        $region47: #{forward.2} parent=31 // pred_region
          %s579 = sand.u32 %s26, 1
          %s580 = scalar_lea.sflag [#allocation4], %s579
          %s581 = sand.u32 %s198, 1
          %s582 = scalar_lea.vmem [#allocation10], %s581
          %584 = vsyncadd %s580, 0
          %s585 = scalar_lea.hbm %s7, %s26
          %s587 = sshll.u32 %s585, 4
          %s588 = int_to_ptr.hbm [resolvable:$true] %s587
          %s589 = sshll.u32 %s582, 4
          %s590 = int_to_ptr.vmem [resolvable:$true] %s589
          %592 = dma.hbm_to_vmem [thread:$0]  %s588, 16, %s590, %s580
        $region48: #{forward.2} parent=31 // pred_fallthru
          _
        // Predicated region
        $region49: #{forward.2} parent=31 // pred_check
          %p593 = pneg %p234
        $region50: #{forward.2} parent=31 // pred_check_branch
          %595 = sbr.rel (%p593) target = $region52
        $region51: #{forward.2} parent=31 // pred_region
          %s596 = sand.u32 %s26, 1
          %s597 = scalar_lea.sflag [#allocation4], %s596
          %s598 = sand.u32 %s224, 1
          %s599 = scalar_lea.vmem [#allocation11], %s598
          %601 = vsyncadd %s597, 0
          %s602 = scalar_lea.hbm %s8, %s26
          %s604 = sshll.u32 %s602, 4
          %s605 = int_to_ptr.hbm [resolvable:$true] %s604
          %s606 = sshll.u32 %s599, 4
          %s607 = int_to_ptr.vmem [resolvable:$true] %s606
          %609 = dma.hbm_to_vmem [thread:$0]  %s605, 16, %s607, %s597
        $region52: #{forward.2} parent=31 // pred_fallthru
          _
        // Predicated region
        $region53: #{forward.2} parent=31 // pred_check
          %p610 = pneg %p260
        $region54: #{forward.2} parent=31 // pred_check_branch
          %612 = sbr.rel (%p610) target = $region56
        $region55: #{forward.2} parent=31 // pred_region
          %s613 = sand.u32 %s26, 1
          %s614 = scalar_lea.sflag [#allocation4], %s613
          %s615 = sand.u32 %s250, 1
          %s616 = scalar_lea.vmem [#allocation12], %s615
          %618 = vsyncadd %s614, 0
          %s619 = scalar_lea.hbm %s9, %s26
          %s621 = sshll.u32 %s619, 4
          %s622 = int_to_ptr.hbm [resolvable:$true] %s621
          %s623 = sshll.u32 %s616, 4
          %s624 = int_to_ptr.vmem [resolvable:$true] %s623
          %626 = dma.hbm_to_vmem [thread:$0]  %s622, 16, %s624, %s614
        $region56: #{forward.2} parent=31 // pred_fallthru
          _
        // Predicated region
        $region57: #{forward.2} parent=31 // pred_check
          %p627 = pneg %p286
        $region58: #{forward.2} parent=31 // pred_check_branch
          %629 = sbr.rel (%p627) target = $region60
        $region59: #{forward.2} parent=31 // pred_region
          %s630 = sand.u32 %s26, 1
          %s631 = scalar_lea.sflag [#allocation4], %s630
          %s632 = sand.u32 %s276, 1
          %s633 = smul.addr %s632, 128
          %s634 = scalar_lea.vmem [#allocation13], %s633
          %636 = vsyncadd %s631, 0
          %s637 = smul.addr %s26, 32
          %s638 = smul.addr %s637, 4
          %s639 = scalar_lea.hbm %s10, %s638
          %s640 = sshll.u32 %s639, 4
          %s641 = int_to_ptr.hbm [resolvable:$true] %s640
          %s642 = sshll.u32 %s634, 4
          %s643 = int_to_ptr.vmem [resolvable:$true] %s642
          %648 = dma.hbm_to_vmem [thread:$0]  %s641, 2048, %s643, %s631, 128, 128, 8
        $region60: #{forward.2} parent=31 // pred_fallthru
          _
        // Predicated region
        $region61: #{forward.2} parent=31 // pred_check
          %p649 = pneg %p312
        $region62: #{forward.2} parent=31 // pred_check_branch
          %651 = sbr.rel (%p649) target = $region64
        $region63: #{forward.2} parent=31 // pred_region
          %s652 = sand.u32 %s26, 1
          %s653 = scalar_lea.sflag [#allocation4], %s652
          %s654 = sand.u32 %s302, 1
          %s655 = smul.addr %s654, 2
          %s656 = scalar_lea.vmem [#allocation14], %s655
          %658 = vsyncadd %s653, 0
          %s659 = smul.addr %s26, 2
          %s660 = scalar_lea.hbm %s11, %s659
          %s662 = sshll.u32 %s660, 4
          %s663 = int_to_ptr.hbm [resolvable:$true] %s662
          %s664 = sshll.u32 %s656, 4
          %s665 = int_to_ptr.vmem [resolvable:$true] %s664
          %667 = dma.hbm_to_vmem [thread:$0]  %s663, 32, %s665, %s653
        $region64: #{forward.2} parent=31 // pred_fallthru
          _
        // Predicated region
        $region65: #{forward.2} parent=31 // pred_check
          %p668 = pneg %p338
        $region66: #{forward.2} parent=31 // pred_check_branch
          %670 = sbr.rel (%p668) target = $region68
        $region67: #{forward.2} parent=31 // pred_region
          %s671 = sand.u32 %s26, 1
          %s672 = scalar_lea.sflag [#allocation4], %s671
          %s673 = sand.u32 %s328, 1
          %s674 = smul.addr %s673, 128
          %s675 = scalar_lea.vmem [#allocation15], %s674
          %677 = vsyncadd %s672, 0
          %s678 = smul.addr %s26, 32
          %s679 = smul.addr %s678, 4
          %s680 = scalar_lea.hbm %s12, %s679
          %s681 = sshll.u32 %s680, 4
          %s682 = int_to_ptr.hbm [resolvable:$true] %s681
          %s683 = sshll.u32 %s675, 4
          %s684 = int_to_ptr.vmem [resolvable:$true] %s683
          %689 = dma.hbm_to_vmem [thread:$0]  %s682, 2048, %s684, %s672, 64, 64, 4
        $region68: #{forward.2} parent=31 // pred_fallthru
          _
        // Predicated region
        $region69: #{forward.2} parent=31 // pred_check
          %p690 = pneg %p364
        $region70: #{forward.2} parent=31 // pred_check_branch
          %692 = sbr.rel (%p690) target = $region72
        $region71: #{forward.2} parent=31 // pred_region
          %s693 = sand.u32 %s26, 1
          %s694 = scalar_lea.sflag [#allocation4], %s693
          %s695 = sand.u32 %s354, 1
          %s696 = scalar_lea.vmem [#allocation16], %s695
          %698 = vsyncadd %s694, 0
          %s699 = scalar_lea.hbm %s13, %s26
          %s701 = sshll.u32 %s699, 4
          %s702 = int_to_ptr.hbm [resolvable:$true] %s701
          %s703 = sshll.u32 %s696, 4
          %s704 = int_to_ptr.vmem [resolvable:$true] %s703
          %706 = dma.hbm_to_vmem [thread:$0]  %s702, 16, %s704, %s694
        $region72: #{forward.2} parent=31 // pred_fallthru
          _
        // Predicated region
        $region73: #{forward.2} parent=31 // pred_check
          %p707 = pneg %p390
        $region74: #{forward.2} parent=31 // pred_check_branch
          %709 = sbr.rel (%p707) target = $region76
        $region75: #{forward.2} parent=31 // pred_region
          %s710 = sand.u32 %s26, 1
          %s711 = scalar_lea.sflag [#allocation4], %s710
          %s712 = sand.u32 %s380, 1
          %s713 = scalar_lea.vmem [#allocation17], %s712
          %715 = vsyncadd %s711, 0
          %s716 = scalar_lea.hbm %s14, %s26
          %s718 = sshll.u32 %s716, 4
          %s719 = int_to_ptr.hbm [resolvable:$true] %s718
          %s720 = sshll.u32 %s713, 4
          %s721 = int_to_ptr.vmem [resolvable:$true] %s720
          %723 = dma.hbm_to_vmem [thread:$0]  %s719, 16, %s721, %s711
        $region76: #{forward.2} parent=31 // pred_fallthru
          _
        // Predicated region
        $region77: #{forward.2} parent=31 // pred_check
          %p724 = pneg %p416
        $region78: #{forward.2} parent=31 // pred_check_branch
          %726 = sbr.rel (%p724) target = $region80
        $region79: #{forward.2} parent=31 // pred_region
          %s727 = sand.u32 %s26, 1
          %s728 = scalar_lea.sflag [#allocation4], %s727
          %s729 = sand.u32 %s406, 1
          %s730 = scalar_lea.vmem [#allocation18], %s729
          %732 = vsyncadd %s728, 0
          %s733 = scalar_lea.hbm %s15, %s26
          %s735 = sshll.u32 %s733, 4
          %s736 = int_to_ptr.hbm [resolvable:$true] %s735
          %s737 = sshll.u32 %s730, 4
          %s738 = int_to_ptr.vmem [resolvable:$true] %s737
          %740 = dma.hbm_to_vmem [thread:$0]  %s736, 16, %s738, %s728
        $region80: #{forward.2} parent=31 // pred_fallthru
          _
      $region32: #{forward.2} parent=5 // pred_fallthru
        _
      %p741 = scmp.le.s32.totalorder 1, %s26
      %p742 = scmp.lt.s32.totalorder %s26, 13
      %p743 = pnand %p741, %p742
      %p744 = pneg %p743
      // Predicated region
      $region81: #{forward.2} parent=5 // pred_check
        _
      $region82: #{forward.2} parent=5 // pred_check_branch
        %746 = sbr.rel (%p743) target = $region84
      $region83: #{forward.2} parent=5 // pred_region
        %s747 = ssub.s32 %s26, 1
        // Predicated region
        $region85: #{forward.2} parent=83 // pred_check
          %p748 = pneg %p89
        $region86: #{forward.2} parent=83 // pred_check_branch
          %750 = sbr.rel (%p748) target = $region88
        $region87: #{forward.2} parent=83 // pred_region
          %752 = dma.done [#allocation4], 16
        $region88: #{forward.2} parent=83 // pred_fallthru
          _
        // Predicated region
        $region89: #{forward.2} parent=83 // pred_check
          %p753 = pneg %p110
        $region90: #{forward.2} parent=83 // pred_check_branch
          %755 = sbr.rel (%p753) target = $region92
        $region91: #{forward.2} parent=83 // pred_region
          %757 = dma.done [#allocation6], 16
        $region92: #{forward.2} parent=83 // pred_fallthru
          _
        %s758 = sand.u32 %s31, 1
        %s759 = scalar_lea.sflag [#allocation4], %s758
        %s760 = sand.u32 %s123, 1
        %s761 = smul.addr %s760, 192
        %s762 = scalar_lea.vmem [#allocation7], %s761
        // Predicated region
        $region93: #{forward.2} parent=83 // pred_check
          %p763 = pneg %p136
        $region94: #{forward.2} parent=83 // pred_check_branch
          %765 = sbr.rel (%p763) target = $region96
        $region95: #{forward.2} parent=83 // pred_region
          %767 = dma.done %s759, 3072
        $region96: #{forward.2} parent=83 // pred_fallthru
          _
        %s768 = sand.u32 %s31, 1
        %s769 = scalar_lea.sflag [#allocation4], %s768
        %s770 = sand.u32 %s149, 1
        %s771 = smul.addr %s770, 3
        %s772 = scalar_lea.vmem [#allocation8], %s771
        // Predicated region
        $region97: #{forward.2} parent=83 // pred_check
          %p773 = pneg %p162
        $region98: #{forward.2} parent=83 // pred_check_branch
          %775 = sbr.rel (%p773) target = $region100
        $region99: #{forward.2} parent=83 // pred_region
          %777 = dma.done %s769, 48
        $region100: #{forward.2} parent=83 // pred_fallthru
          _
        %s778 = sand.u32 %s31, 1
        %s779 = scalar_lea.sflag [#allocation4], %s778
        %s780 = sand.u32 %s175, 1
        %s781 = smul.addr %s780, 64
        %s782 = scalar_lea.vmem [#allocation9], %s781
        // Predicated region
        $region101: #{forward.2} parent=83 // pred_check
          %p783 = pneg %p188
        $region102: #{forward.2} parent=83 // pred_check_branch
          %785 = sbr.rel (%p783) target = $region104
        $region103: #{forward.2} parent=83 // pred_region
          %787 = dma.done %s779, 1024
        $region104: #{forward.2} parent=83 // pred_fallthru
          _
        %s788 = sand.u32 %s31, 1
        %s789 = scalar_lea.sflag [#allocation4], %s788
        %s790 = sand.u32 %s201, 1
        %s791 = scalar_lea.vmem [#allocation10], %s790
        // Predicated region
        $region105: #{forward.2} parent=83 // pred_check
          %p792 = pneg %p214
        $region106: #{forward.2} parent=83 // pred_check_branch
          %794 = sbr.rel (%p792) target = $region108
        $region107: #{forward.2} parent=83 // pred_region
          %796 = dma.done %s789, 16
        $region108: #{forward.2} parent=83 // pred_fallthru
          _
        %s797 = sand.u32 %s31, 1
        %s798 = scalar_lea.sflag [#allocation4], %s797
        %s799 = sand.u32 %s227, 1
        %s800 = scalar_lea.vmem [#allocation11], %s799
        // Predicated region
        $region109: #{forward.2} parent=83 // pred_check
          %p801 = pneg %p240
        $region110: #{forward.2} parent=83 // pred_check_branch
          %803 = sbr.rel (%p801) target = $region112
        $region111: #{forward.2} parent=83 // pred_region
          %805 = dma.done %s798, 16
        $region112: #{forward.2} parent=83 // pred_fallthru
          _
        %s806 = sand.u32 %s31, 1
        %s807 = scalar_lea.sflag [#allocation4], %s806
        %s808 = sand.u32 %s253, 1
        %s809 = scalar_lea.vmem [#allocation12], %s808
        // Predicated region
        $region113: #{forward.2} parent=83 // pred_check
          %p810 = pneg %p266
        $region114: #{forward.2} parent=83 // pred_check_branch
          %812 = sbr.rel (%p810) target = $region116
        $region115: #{forward.2} parent=83 // pred_region
          %814 = dma.done %s807, 16
        $region116: #{forward.2} parent=83 // pred_fallthru
          _
        %s815 = sand.u32 %s31, 1
        %s816 = scalar_lea.sflag [#allocation4], %s815
        %s817 = sand.u32 %s279, 1
        %s818 = smul.addr %s817, 128
        %s819 = scalar_lea.vmem [#allocation13], %s818
        // Predicated region
        $region117: #{forward.2} parent=83 // pred_check
          %p820 = pneg %p292
        $region118: #{forward.2} parent=83 // pred_check_branch
          %822 = sbr.rel (%p820) target = $region120
        $region119: #{forward.2} parent=83 // pred_region
          %824 = dma.done %s816, 2048
        $region120: #{forward.2} parent=83 // pred_fallthru
          _
        %s825 = sand.u32 %s31, 1
        %s826 = scalar_lea.sflag [#allocation4], %s825
        %s827 = sand.u32 %s305, 1
        %s828 = smul.addr %s827, 2
        %s829 = scalar_lea.vmem [#allocation14], %s828
        // Predicated region
        $region121: #{forward.2} parent=83 // pred_check
          %p830 = pneg %p318
        $region122: #{forward.2} parent=83 // pred_check_branch
          %832 = sbr.rel (%p830) target = $region124
        $region123: #{forward.2} parent=83 // pred_region
          %834 = dma.done %s826, 32
        $region124: #{forward.2} parent=83 // pred_fallthru
          _
        %s835 = sand.u32 %s31, 1
        %s836 = scalar_lea.sflag [#allocation4], %s835
        %s837 = sand.u32 %s331, 1
        %s838 = smul.addr %s837, 128
        %s839 = scalar_lea.vmem [#allocation15], %s838
        // Predicated region
        $region125: #{forward.2} parent=83 // pred_check
          %p840 = pneg %p344
        $region126: #{forward.2} parent=83 // pred_check_branch
          %842 = sbr.rel (%p840) target = $region128
        $region127: #{forward.2} parent=83 // pred_region
          %844 = dma.done %s836, 2048
        $region128: #{forward.2} parent=83 // pred_fallthru
          _
        %s845 = sand.u32 %s31, 1
        %s846 = scalar_lea.sflag [#allocation4], %s845
        %s847 = sand.u32 %s357, 1
        %s848 = scalar_lea.vmem [#allocation16], %s847
        // Predicated region
        $region129: #{forward.2} parent=83 // pred_check
          %p849 = pneg %p370
        $region130: #{forward.2} parent=83 // pred_check_branch
          %851 = sbr.rel (%p849) target = $region132
        $region131: #{forward.2} parent=83 // pred_region
          %853 = dma.done %s846, 16
        $region132: #{forward.2} parent=83 // pred_fallthru
          _
        %s854 = sand.u32 %s31, 1
        %s855 = scalar_lea.sflag [#allocation4], %s854
        %s856 = sand.u32 %s383, 1
        %s857 = scalar_lea.vmem [#allocation17], %s856
        // Predicated region
        $region133: #{forward.2} parent=83 // pred_check
          %p858 = pneg %p396
        $region134: #{forward.2} parent=83 // pred_check_branch
          %860 = sbr.rel (%p858) target = $region136
        $region135: #{forward.2} parent=83 // pred_region
          %862 = dma.done %s855, 16
        $region136: #{forward.2} parent=83 // pred_fallthru
          _
        %s863 = sand.u32 %s31, 1
        %s864 = scalar_lea.sflag [#allocation4], %s863
        %s865 = sand.u32 %s409, 1
        %s866 = scalar_lea.vmem [#allocation18], %s865
        // Predicated region
        $region137: #{forward.2} parent=83 // pred_check
          %p867 = pneg %p422
        $region138: #{forward.2} parent=83 // pred_check_branch
          %869 = sbr.rel (%p867) target = $region140
        $region139: #{forward.2} parent=83 // pred_region
          %871 = dma.done %s864, 16
        $region140: #{forward.2} parent=83 // pred_fallthru
          _
        %p872 = pneg %p47
        %p873 = pneg %p44
        %p874 = pneg %p68
        %p875 = pneg %p65
        %p876 = pneg %p89
        %p877 = pneg %p86
        %p878 = pneg %p110
        %p879 = pneg %p107
        %s880 = sand.u32 %s31, 1
        %s881 = scalar_lea.sflag [#allocation4], %s880
        %s882 = sand.u32 %s123, 1
        %s883 = smul.addr %s882, 192
        %s884 = scalar_lea.vmem [#allocation7], %s883
        %p885 = pneg %p136
        %p886 = pneg %p133
        %s887 = sand.u32 %s31, 1
        %s888 = scalar_lea.sflag [#allocation4], %s887
        %s889 = sand.u32 %s149, 1
        %s890 = smul.addr %s889, 3
        %s891 = scalar_lea.vmem [#allocation8], %s890
        %p892 = pneg %p162
        %p893 = pneg %p159
        %s894 = sand.u32 %s31, 1
        %s895 = scalar_lea.sflag [#allocation4], %s894
        %s896 = sand.u32 %s175, 1
        %s897 = smul.addr %s896, 64
        %s898 = scalar_lea.vmem [#allocation9], %s897
        %p899 = pneg %p188
        %p900 = pneg %p185
        %s901 = sand.u32 %s31, 1
        %s902 = scalar_lea.sflag [#allocation4], %s901
        %s903 = sand.u32 %s201, 1
        %s904 = scalar_lea.vmem [#allocation10], %s903
        %p905 = pneg %p214
        %p906 = pneg %p211
        %s907 = sand.u32 %s31, 1
        %s908 = scalar_lea.sflag [#allocation4], %s907
        %s909 = sand.u32 %s227, 1
        %s910 = scalar_lea.vmem [#allocation11], %s909
        %p911 = pneg %p240
        %p912 = pneg %p237
        %s913 = sand.u32 %s31, 1
        %s914 = scalar_lea.sflag [#allocation4], %s913
        %s915 = sand.u32 %s253, 1
        %s916 = scalar_lea.vmem [#allocation12], %s915
        %p917 = pneg %p266
        %p918 = pneg %p263
        %s919 = sand.u32 %s31, 1
        %s920 = scalar_lea.sflag [#allocation4], %s919
        %s921 = sand.u32 %s279, 1
        %s922 = smul.addr %s921, 128
        %s923 = scalar_lea.vmem [#allocation13], %s922
        %p924 = pneg %p292
        %p925 = pneg %p289
        %s926 = sand.u32 %s31, 1
        %s927 = scalar_lea.sflag [#allocation4], %s926
        %s928 = sand.u32 %s305, 1
        %s929 = smul.addr %s928, 2
        %s930 = scalar_lea.vmem [#allocation14], %s929
        %p931 = pneg %p318
        %p932 = pneg %p315
        %s933 = sand.u32 %s31, 1
        %s934 = scalar_lea.sflag [#allocation4], %s933
        %s935 = sand.u32 %s331, 1
        %s936 = smul.addr %s935, 128
        %s937 = scalar_lea.vmem [#allocation15], %s936
        %p938 = pneg %p344
        %p939 = pneg %p341
        %s940 = sand.u32 %s31, 1
        %s941 = scalar_lea.sflag [#allocation4], %s940
        %s942 = sand.u32 %s357, 1
        %s943 = scalar_lea.vmem [#allocation16], %s942
        %p944 = pneg %p370
        %p945 = pneg %p367
        %s946 = sand.u32 %s31, 1
        %s947 = scalar_lea.sflag [#allocation4], %s946
        %s948 = sand.u32 %s383, 1
        %s949 = scalar_lea.vmem [#allocation17], %s948
        %p950 = pneg %p396
        %p951 = pneg %p393
        %s952 = sand.u32 %s31, 1
        %s953 = scalar_lea.sflag [#allocation4], %s952
        %s954 = sand.u32 %s409, 1
        %s955 = scalar_lea.vmem [#allocation18], %s954
        %p956 = pneg %p422
        %p957 = pneg %p419
        %p958 = pneg %p443
        %p959 = pneg %p440
        %p960 = pneg %p464
        %p961 = pneg %p461
        %p962 = scmp.eq.s32.totalorder %s31, 0
        // Predicated region
        $region141: #{forward.2} parent=83 // pred_check
          %p963 = pneg %p962
        $region142: #{forward.2} parent=83 // pred_check_branch
          %965 = sbr.rel (%p963) target = $region144
        $region143: #{forward.2} parent=83 // pred_region
          %v966 = vld [vmem:[%s0] sm:$0xff]
          %v967 = vld [vmem:[%s0 + $0x8] sm:$0xff]
          %v968 = vld [vmem:[#allocation3] sm:$0x1]
          %v969 = vld [vmem:[#allocation5] sm:$0x1]
          %970 = vadd.xlane.f32.xlu0 %v966
          %v971 = vpop.xlane.xlu0 %970
          %972 = vadd.xlane.f32.xlu0 %v967
          %v973 = vpop.xlane.xlu0 %972
          %v974 = vrcp.pop 128.0
          %v975 = vmul.f32 128.0, %v974
          %v976 = vsub.f32 1.0, %v975
          %v977 = vmul.f32 %v974, %v976
          %v978 = vadd.f32 %v974, %v977
          %vm979 = vweird.f32 %v974
          %v980 = vsel %vm979, %v974, %v978
          %v981 = vmul.f32 %v971, %v980
          %v982 = vmul.f32 %v973, %v980
          %v983 = vsub.f32 %v966, %v981
          %v984 = vsub.f32 %v967, %v982
          %v985 = vmul.f32 %v983, %v983
          %v986 = vmul.f32 %v984, %v984
          %987 = vadd.xlane.f32.xlu0 %v985
          %v988 = vpop.xlane.xlu0 %987
          %989 = vadd.xlane.f32.xlu0 %v986
          %v990 = vpop.xlane.xlu0 %989
          %v991 = vmul.f32 %v988, %v980
          %v992 = vmul.f32 %v990, %v980
          %v993 = vadd.f32 %v991, 1e-05
          %v994 = vadd.f32 %v992, 1e-05
          %v995 = vrsqrt.pop %v993
          %v996 = vmul.f32 %v995, %v993
          %v997 = vmul.f32 %v996, %v995
          %v998 = vmul.f32 0.5, %v997
          %v999 = vsub.f32 1.5, %v998
          %v1000 = vmul.f32 %v995, %v999
          %vm1001 = vweird.f32 %v993
          %vm1002 = vweird.f32 %v995
          %vm1003 = vmor %vm1001, %vm1002
          %v1004 = vsel %vm1003, %v995, %v1000
          %v1005 = vrsqrt.pop %v994
          %v1006 = vmul.f32 %v1005, %v994
          %v1007 = vmul.f32 %v1006, %v1005
          %v1008 = vmul.f32 0.5, %v1007
          %v1009 = vsub.f32 1.5, %v1008
          %v1010 = vmul.f32 %v1005, %v1009
          %vm1011 = vweird.f32 %v994
          %vm1012 = vweird.f32 %v1005
          %vm1013 = vmor %vm1011, %vm1012
          %v1014 = vsel %vm1013, %v1005, %v1010
          %v1015 = vmul.f32 %v983, %v1004
          %v1016 = vmul.f32 %v984, %v1014
          %v1018 = vperm.slane %v968, 0
          %v1020 = vmul.f32 %v1015, %v1018
          %v1021 = vmul.f32 %v1016, %v1018
          %v1023 = vperm.slane %v969, 0
          %v1025 = vadd.f32 %v1020, %v1023
          %v1026 = vadd.f32 %v1021, %v1023
          %1027 = vst [vmem:[#allocation2] sm:$0xff] %v1025
          %1028 = vst [vmem:[#allocation2 + $0x8] sm:$0xff] %v1026
        $region144: #{forward.2} parent=83 // pred_fallthru
          _
        %v1029 = vld [vmem:[#allocation2] sm:$0xff]
        %v1030 = vld [vmem:[#allocation2 + $0x8] sm:$0xff]
        %v1031 = vpack.c.bf16 %v1030, %v1029
        %v1032 = vld [vmem:[%s762] sm:$0xff]
        %v1033 = vld [vmem:[%s762 + $0x8] sm:$0xf]
        %v1034 = vld [vmem:[%s762 + $0xc] sm:$0xff]
        %v1035 = vld [vmem:[%s762 + $0x14] sm:$0xf]
        %v1036 = vld [vmem:[%s762 + $0x18] sm:$0xff]
        %v1037 = vld [vmem:[%s762 + $0x20] sm:$0xf]
        %v1038 = vld [vmem:[%s762 + $0x24] sm:$0xff]
        %v1039 = vld [vmem:[%s762 + $0x2c] sm:$0xf]
        %v1040 = vld [vmem:[%s762 + $0x30] sm:$0xff]
        %v1041 = vld [vmem:[%s762 + $0x38] sm:$0xf]
        %v1042 = vld [vmem:[%s762 + $0x3c] sm:$0xff]
        %v1043 = vld [vmem:[%s762 + $0x44] sm:$0xf]
        %v1044 = vld [vmem:[%s762 + $0x48] sm:$0xff]
        %v1045 = vld [vmem:[%s762 + $0x50] sm:$0xf]
        %v1046 = vld [vmem:[%s762 + $0x54] sm:$0xff]
        %v1047 = vld [vmem:[%s762 + $0x5c] sm:$0xf]
        %v1048 = vld [vmem:[%s762 + $0x60] sm:$0xff]
        %v1049 = vld [vmem:[%s762 + $0x68] sm:$0xf]
        %v1050 = vld [vmem:[%s762 + $0x6c] sm:$0xff]
        %v1051 = vld [vmem:[%s762 + $0x74] sm:$0xf]
        %v1052 = vld [vmem:[%s762 + $0x78] sm:$0xff]
        %v1053 = vld [vmem:[%s762 + $0x80] sm:$0xf]
        %v1054 = vld [vmem:[%s762 + $0x84] sm:$0xff]
        %v1055 = vld [vmem:[%s762 + $0x8c] sm:$0xf]
        %v1056 = vld [vmem:[%s762 + $0x90] sm:$0xff]
        %v1057 = vld [vmem:[%s762 + $0x98] sm:$0xf]
        %v1058 = vld [vmem:[%s762 + $0x9c] sm:$0xff]
        %v1059 = vld [vmem:[%s762 + $0xa4] sm:$0xf]
        %v1060 = vld [vmem:[%s762 + $0xa8] sm:$0xff]
        %v1061 = vld [vmem:[%s762 + $0xb0] sm:$0xf]
        %v1062 = vld [vmem:[%s762 + $0xb4] sm:$0xff]
        %v1063 = vld [vmem:[%s762 + $0xbc] sm:$0xf]
        %v1064 = vld [vmem:[%s772] sm:$0x7]
        %v1066 = vperm.slane %v1064, 0
        %v1067 = vperm.slane %v1064, 1
        %v1068 = vperm.slane %v1064, 2
        %v1104 = vunpack.c.l.b16 %v1032
        %v1105 = vunpack.c.h.b16 %v1032
        %v1106 = vunpack.c.l.b16 %v1033
        %v1107 = vunpack.c.l.b16 %v1034
        %v1108 = vunpack.c.h.b16 %v1034
        %v1109 = vunpack.c.l.b16 %v1035
        %v1110 = vunpack.c.l.b16 %v1036
        %v1111 = vunpack.c.h.b16 %v1036
        %v1112 = vunpack.c.l.b16 %v1037
        %v1113 = vunpack.c.l.b16 %v1038
        %v1114 = vunpack.c.h.b16 %v1038
        %v1115 = vunpack.c.l.b16 %v1039
        %v1116 = vunpack.c.l.b16 %v1040
        %v1117 = vunpack.c.h.b16 %v1040
        %v1118 = vunpack.c.l.b16 %v1041
        %v1119 = vunpack.c.l.b16 %v1042
        %v1120 = vunpack.c.h.b16 %v1042
        %v1121 = vunpack.c.l.b16 %v1043
        %v1122 = vunpack.c.l.b16 %v1044
        %v1123 = vunpack.c.h.b16 %v1044
        %v1124 = vunpack.c.l.b16 %v1045
        %v1125 = vunpack.c.l.b16 %v1046
        %v1126 = vunpack.c.h.b16 %v1046
        %v1127 = vunpack.c.l.b16 %v1047
        %v1128 = vunpack.c.l.b16 %v1048
        %v1129 = vunpack.c.h.b16 %v1048
        %v1130 = vunpack.c.l.b16 %v1049
        %v1131 = vunpack.c.l.b16 %v1050
        %v1132 = vunpack.c.h.b16 %v1050
        %v1133 = vunpack.c.l.b16 %v1051
        %v1134 = vunpack.c.l.b16 %v1052
        %v1135 = vunpack.c.h.b16 %v1052
        %v1136 = vunpack.c.l.b16 %v1053
        %v1137 = vunpack.c.l.b16 %v1054
        %v1138 = vunpack.c.h.b16 %v1054
        %v1139 = vunpack.c.l.b16 %v1055
        %v1140 = vunpack.c.l.b16 %v1056
        %v1141 = vunpack.c.h.b16 %v1056
        %v1142 = vunpack.c.l.b16 %v1057
        %v1143 = vunpack.c.l.b16 %v1058
        %v1144 = vunpack.c.h.b16 %v1058
        %v1145 = vunpack.c.l.b16 %v1059
        %v1146 = vunpack.c.l.b16 %v1060
        %v1147 = vunpack.c.h.b16 %v1060
        %v1148 = vunpack.c.l.b16 %v1061
        %v1149 = vunpack.c.l.b16 %v1062
        %v1150 = vunpack.c.h.b16 %v1062
        %v1151 = vunpack.c.l.b16 %v1063
        %v1152 = vpack.c.b16 %v1107, %v1104
        %v1153 = vpack.c.b16 %v1108, %v1105
        %v1154 = vpack.c.b16 %v1109, %v1106
        %v1155 = vpack.c.b16 %v1113, %v1110
        %v1156 = vpack.c.b16 %v1114, %v1111
        %v1157 = vpack.c.b16 %v1115, %v1112
        %v1158 = vpack.c.b16 %v1119, %v1116
        %v1159 = vpack.c.b16 %v1120, %v1117
        %v1160 = vpack.c.b16 %v1121, %v1118
        %v1161 = vpack.c.b16 %v1125, %v1122
        %v1162 = vpack.c.b16 %v1126, %v1123
        %v1163 = vpack.c.b16 %v1127, %v1124
        %v1164 = vpack.c.b16 %v1131, %v1128
        %v1165 = vpack.c.b16 %v1132, %v1129
        %v1166 = vpack.c.b16 %v1133, %v1130
        %v1167 = vpack.c.b16 %v1137, %v1134
        %v1168 = vpack.c.b16 %v1138, %v1135
        %v1169 = vpack.c.b16 %v1139, %v1136
        %v1170 = vpack.c.b16 %v1143, %v1140
        %v1171 = vpack.c.b16 %v1144, %v1141
        %v1172 = vpack.c.b16 %v1145, %v1142
        %v1173 = vpack.c.b16 %v1149, %v1146
        %v1174 = vpack.c.b16 %v1150, %v1147
        %v1175 = vpack.c.b16 %v1151, %v1148
        %1200 = vmatpush.bf16.msra.mxu0 %v1173
        %1201 = vmatpush.bf16.msra.mxu0 %v1170
        %1202 = vmatpush.bf16.msra.mxu0 %v1167
        %1203 = vmatpush.bf16.msra.mxu0 %v1164
        %1204 = vmatpush.bf16.msra.mxu0 %v1161
        %1205 = vmatpush.bf16.msra.mxu0 %v1158
        %1206 = vmatpush.bf16.msra.mxu0 %v1155
        %1207 = vmatpush.bf16.msra.mxu0 %v1152
        %1208 = vmatmul.bf16.gmra.mxu0 %v1031
        %v1209 = vpop.f32.mrf.mxu0
        %v1210 = vadd.f32 %v1066, %v1209
        %v1211 = vpop.f32.mrf.mxu0
        %v1212 = vadd.f32 %v1066, %v1211
        %1213 = vdwg.mxu0
        %1214 = vmatpush.bf16.msra.mxu0 %v1174
        %1215 = vmatpush.bf16.msra.mxu0 %v1171
        %1216 = vmatpush.bf16.msra.mxu0 %v1168
        %1217 = vmatpush.bf16.msra.mxu0 %v1165
        %1218 = vmatpush.bf16.msra.mxu0 %v1162
        %1219 = vmatpush.bf16.msra.mxu0 %v1159
        %1220 = vmatpush.bf16.msra.mxu0 %v1156
        %1221 = vmatpush.bf16.msra.mxu0 %v1153
        %1222 = vmatmul.bf16.gmra.mxu0 %v1031
        %v1223 = vpop.f32.mrf.mxu0
        %v1224 = vadd.f32 %v1067, %v1223
        %v1225 = vpop.f32.mrf.mxu0
        %v1226 = vadd.f32 %v1067, %v1225
        %1227 = vdwg.mxu0
        %1228 = vmatpush.bf16.msra.mxu0 %v1175
        %1229 = vmatpush.bf16.msra.mxu0 %v1172
        %1230 = vmatpush.bf16.msra.mxu0 %v1169
        %1231 = vmatpush.bf16.msra.mxu0 %v1166
        %1232 = vmatpush.bf16.msra.mxu0 %v1163
        %1233 = vmatpush.bf16.msra.mxu0 %v1160
        %1234 = vmatpush.bf16.msra.mxu0 %v1157
        %1235 = vmatpush.bf16.msra.mxu0 %v1154
        %1236 = vmatmul.bf16.gmra.mxu0 %v1031
        %v1237 = vpop.f32.mrf.mxu0
        %v1238 = vadd.f32 %v1068, %v1237
        %v1239 = vpop.f32.mrf.mxu0
        %v1240 = vadd.f32 %v1068, %v1239
        %1241 = vdwg.mxu0
        %v1242 = vld [vmem:[%s1] sm:$0x3]
        %vm1243 = vcmask 261120
        %v1245 = vsel %vm1243, %v1210, 0
        %v1248 = vsel %vm1243, %v1224, 0
        %1250 = vmatpush.xpose.msra.mxu0 0.0
        %1251 = vmatpush.xpose.msra.mxu0 0.0
        %1252 = vmatpush.xpose.msra.mxu0 0.0
        %1253 = vmatpush.xpose.msra.mxu0 0.0
        %1254 = vmatpush.xpose.msra.mxu0 0.0
        %1255 = vmatpush.xpose.msra.mxu0 0.0
        %1256 = vmatpush.xpose.msra.mxu0 0.0
        %1257 = vmatpush.xpose.msra.mxu0 0.0
        %1258 = vmatpush.xpose.msra.mxu0 0.0
        %1259 = vmatpush.xpose.msra.mxu0 0.0
        %1260 = vmatpush.xpose.msra.mxu0 0.0
        %1261 = vmatpush.xpose.msra.mxu0 0.0
        %1262 = vmatpush.xpose.msra.mxu0 0.0
        %1263 = vmatpush.xpose.msra.mxu0 0.0
        %1264 = vmatpush.xpose.msra.mxu0 0.0
        %1265 = vmatpush.xpose.msra.mxu0 %v1248
        %1266 = vmatmul.f32.gmra.mxu0 %v1245
        %v1267 = vpop.f32.mrf.mxu0
        %v1268 = vadd.f32 0.0, %v1267
        %1269 = vdwg.mxu0
        %v1270 = vmul.f32 %v1268, 0.17677669
        %v1271 = vperm.slane %v1242, 0
        %v1272 = vadd.f32 %v1270, %v1271
        %vm1273 = vcmask 64512
        %v1274 = vsel %vm1273, %v1272, -inf
        %1275 = vmax.xlane.f32.xlu0 %v1274
        %v1276 = vpop.xlane.xlu0 %1275
        %v1277 = vsub.f32 %v1272, %v1276
        %v1278 = vmul.f32 %v1277, 1.442695
        %v1279 = vpow.pop %v1278
        %v1280 = vsel %vm1273, %v1279, 0.0
        %1281 = vadd.xlane.f32.xlu0 %v1280
        %v1282 = vpop.xlane.xlu0 %1281
        %v1283 = vrcp.pop %v1282
        %v1284 = vmul.f32 %v1279, %v1283
        %v1286 = vsel %vm1273, %v1284, 0
        %1288 = vmatpush.msra.mxu0 0.0
        %1289 = vmatpush.msra.mxu0 0.0
        %1290 = vmatpush.msra.mxu0 0.0
        %1291 = vmatpush.msra.mxu0 0.0
        %1292 = vmatpush.msra.mxu0 0.0
        %1293 = vmatpush.msra.mxu0 0.0
        %1294 = vmatpush.msra.mxu0 0.0
        %1295 = vmatpush.msra.mxu0 0.0
        %1296 = vmatpush.msra.mxu0 0.0
        %1297 = vmatpush.msra.mxu0 0.0
        %1298 = vmatpush.msra.mxu0 0.0
        %1299 = vmatpush.msra.mxu0 0.0
        %1300 = vmatpush.msra.mxu0 0.0
        %1301 = vmatpush.msra.mxu0 0.0
        %1302 = vmatpush.msra.mxu0 0.0
        %1303 = vmatpush.msra.mxu0 %v1238
        %1304 = vmatmul.f32.gmra.mxu0 %v1286
        %v1305 = vpop.f32.mrf.mxu0
        %v1306 = vadd.f32 0.0, %v1305
        %1307 = vdwg.mxu0
        %1308 = vrot.lane.b32.xlu0 %v1210, 96
        %v1309 = vpop.permute.xlu0 %1308
        %1310 = vrot.lane.b32.xlu0 %v1224, 96
        %v1311 = vpop.permute.xlu0 %1310
        %v1312 = vsel %vm1243, %v1309, 0
        %v1314 = vsel %vm1243, %v1311, 0
        %1316 = vmatpush.xpose.msra.mxu0 0.0
        %1317 = vmatpush.xpose.msra.mxu0 0.0
        %1318 = vmatpush.xpose.msra.mxu0 0.0
        %1319 = vmatpush.xpose.msra.mxu0 0.0
        %1320 = vmatpush.xpose.msra.mxu0 0.0
        %1321 = vmatpush.xpose.msra.mxu0 0.0
        %1322 = vmatpush.xpose.msra.mxu0 0.0
        %1323 = vmatpush.xpose.msra.mxu0 0.0
        %1324 = vmatpush.xpose.msra.mxu0 0.0
        %1325 = vmatpush.xpose.msra.mxu0 0.0
        %1326 = vmatpush.xpose.msra.mxu0 0.0
        %1327 = vmatpush.xpose.msra.mxu0 0.0
        %1328 = vmatpush.xpose.msra.mxu0 0.0
        %1329 = vmatpush.xpose.msra.mxu0 0.0
        %1330 = vmatpush.xpose.msra.mxu0 0.0
        %1331 = vmatpush.xpose.msra.mxu0 %v1314
        %1332 = vmatmul.f32.gmra.mxu0 %v1312
        %v1333 = vpop.f32.mrf.mxu0
        %v1334 = vadd.f32 0.0, %v1333
        %1335 = vdwg.mxu0
        %v1336 = vmul.f32 %v1334, 0.17677669
        %v1337 = vadd.f32 %v1336, %v1271
        %v1338 = vsel %vm1273, %v1337, -inf
        %1339 = vmax.xlane.f32.xlu0 %v1338
        %v1340 = vpop.xlane.xlu0 %1339
        %v1341 = vsub.f32 %v1337, %v1340
        %v1342 = vmul.f32 %v1341, 1.442695
        %v1343 = vpow.pop %v1342
        %v1344 = vsel %vm1273, %v1343, 0.0
        %1345 = vadd.xlane.f32.xlu0 %v1344
        %v1346 = vpop.xlane.xlu0 %1345
        %v1347 = vrcp.pop %v1346
        %v1348 = vmul.f32 %v1343, %v1347
        %1350 = vrot.lane.b32.xlu0 %v1238, 96
        %v1351 = vpop.permute.xlu0 %1350
        %v1354 = vsel %vm1273, %v1348, 0
        %1356 = vmatpush.msra.mxu0 0.0
        %1357 = vmatpush.msra.mxu0 0.0
        %1358 = vmatpush.msra.mxu0 0.0
        %1359 = vmatpush.msra.mxu0 0.0
        %1360 = vmatpush.msra.mxu0 0.0
        %1361 = vmatpush.msra.mxu0 0.0
        %1362 = vmatpush.msra.mxu0 0.0
        %1363 = vmatpush.msra.mxu0 0.0
        %1364 = vmatpush.msra.mxu0 0.0
        %1365 = vmatpush.msra.mxu0 0.0
        %1366 = vmatpush.msra.mxu0 0.0
        %1367 = vmatpush.msra.mxu0 0.0
        %1368 = vmatpush.msra.mxu0 0.0
        %1369 = vmatpush.msra.mxu0 0.0
        %1370 = vmatpush.msra.mxu0 0.0
        %1371 = vmatpush.msra.mxu0 %v1351
        %1372 = vmatmul.f32.gmra.mxu0 %v1354
        %v1373 = vpop.f32.mrf.mxu0
        %v1374 = vadd.f32 0.0, %v1373
        %1375 = vdwg.mxu0
        %1376 = vrot.lane.b32.xlu0 %v1210, 64
        %v1377 = vpop.permute.xlu0 %1376
        %1378 = vrot.lane.b32.xlu0 %v1224, 64
        %v1379 = vpop.permute.xlu0 %1378
        %v1380 = vsel %vm1243, %v1377, 0
        %v1382 = vsel %vm1243, %v1379, 0
        %1384 = vmatpush.xpose.msra.mxu0 0.0
        %1385 = vmatpush.xpose.msra.mxu0 0.0
        %1386 = vmatpush.xpose.msra.mxu0 0.0
        %1387 = vmatpush.xpose.msra.mxu0 0.0
        %1388 = vmatpush.xpose.msra.mxu0 0.0
        %1389 = vmatpush.xpose.msra.mxu0 0.0
        %1390 = vmatpush.xpose.msra.mxu0 0.0
        %1391 = vmatpush.xpose.msra.mxu0 0.0
        %1392 = vmatpush.xpose.msra.mxu0 0.0
        %1393 = vmatpush.xpose.msra.mxu0 0.0
        %1394 = vmatpush.xpose.msra.mxu0 0.0
        %1395 = vmatpush.xpose.msra.mxu0 0.0
        %1396 = vmatpush.xpose.msra.mxu0 0.0
        %1397 = vmatpush.xpose.msra.mxu0 0.0
        %1398 = vmatpush.xpose.msra.mxu0 0.0
        %1399 = vmatpush.xpose.msra.mxu0 %v1382
        %1400 = vmatmul.f32.gmra.mxu0 %v1380
        %v1401 = vpop.f32.mrf.mxu0
        %v1402 = vadd.f32 0.0, %v1401
        %1403 = vdwg.mxu0
        %v1404 = vmul.f32 %v1402, 0.17677669
        %v1405 = vadd.f32 %v1404, %v1271
        %v1406 = vsel %vm1273, %v1405, -inf
        %1407 = vmax.xlane.f32.xlu0 %v1406
        %v1408 = vpop.xlane.xlu0 %1407
        %v1409 = vsub.f32 %v1405, %v1408
        %v1410 = vmul.f32 %v1409, 1.442695
        %v1411 = vpow.pop %v1410
        %v1412 = vsel %vm1273, %v1411, 0.0
        %1413 = vadd.xlane.f32.xlu0 %v1412
        %v1414 = vpop.xlane.xlu0 %1413
        %v1415 = vrcp.pop %v1414
        %v1416 = vmul.f32 %v1411, %v1415
        %1417 = vrot.lane.b32.xlu0 %v1238, 64
        %v1418 = vpop.permute.xlu0 %1417
        %v1421 = vsel %vm1273, %v1416, 0
        %1423 = vmatpush.msra.mxu0 0.0
        %1424 = vmatpush.msra.mxu0 0.0
        %1425 = vmatpush.msra.mxu0 0.0
        %1426 = vmatpush.msra.mxu0 0.0
        %1427 = vmatpush.msra.mxu0 0.0
        %1428 = vmatpush.msra.mxu0 0.0
        %1429 = vmatpush.msra.mxu0 0.0
        %1430 = vmatpush.msra.mxu0 0.0
        %1431 = vmatpush.msra.mxu0 0.0
        %1432 = vmatpush.msra.mxu0 0.0
        %1433 = vmatpush.msra.mxu0 0.0
        %1434 = vmatpush.msra.mxu0 0.0
        %1435 = vmatpush.msra.mxu0 0.0
        %1436 = vmatpush.msra.mxu0 0.0
        %1437 = vmatpush.msra.mxu0 0.0
        %1438 = vmatpush.msra.mxu0 %v1418
        %1439 = vmatmul.f32.gmra.mxu0 %v1421
        %v1440 = vpop.f32.mrf.mxu0
        %v1441 = vadd.f32 0.0, %v1440
        %1442 = vdwg.mxu0
        %1443 = vrot.lane.b32.xlu0 %v1210, 32
        %v1444 = vpop.permute.xlu0 %1443
        %1445 = vrot.lane.b32.xlu0 %v1224, 32
        %v1446 = vpop.permute.xlu0 %1445
        %v1447 = vsel %vm1243, %v1444, 0
        %v1449 = vsel %vm1243, %v1446, 0
        %1451 = vmatpush.xpose.msra.mxu0 0.0
        %1452 = vmatpush.xpose.msra.mxu0 0.0
        %1453 = vmatpush.xpose.msra.mxu0 0.0
        %1454 = vmatpush.xpose.msra.mxu0 0.0
        %1455 = vmatpush.xpose.msra.mxu0 0.0
        %1456 = vmatpush.xpose.msra.mxu0 0.0
        %1457 = vmatpush.xpose.msra.mxu0 0.0
        %1458 = vmatpush.xpose.msra.mxu0 0.0
        %1459 = vmatpush.xpose.msra.mxu0 0.0
        %1460 = vmatpush.xpose.msra.mxu0 0.0
        %1461 = vmatpush.xpose.msra.mxu0 0.0
        %1462 = vmatpush.xpose.msra.mxu0 0.0
        %1463 = vmatpush.xpose.msra.mxu0 0.0
        %1464 = vmatpush.xpose.msra.mxu0 0.0
        %1465 = vmatpush.xpose.msra.mxu0 0.0
        %1466 = vmatpush.xpose.msra.mxu0 %v1449
        %1467 = vmatmul.f32.gmra.mxu0 %v1447
        %v1468 = vpop.f32.mrf.mxu0
        %v1469 = vadd.f32 0.0, %v1468
        %1470 = vdwg.mxu0
        %v1471 = vmul.f32 %v1469, 0.17677669
        %v1472 = vadd.f32 %v1471, %v1271
        %v1473 = vsel %vm1273, %v1472, -inf
        %1474 = vmax.xlane.f32.xlu0 %v1473
        %v1475 = vpop.xlane.xlu0 %1474
        %v1476 = vsub.f32 %v1472, %v1475
        %v1477 = vmul.f32 %v1476, 1.442695
        %v1478 = vpow.pop %v1477
        %v1479 = vsel %vm1273, %v1478, 0.0
        %1480 = vadd.xlane.f32.xlu0 %v1479
        %v1481 = vpop.xlane.xlu0 %1480
        %v1482 = vrcp.pop %v1481
        %v1483 = vmul.f32 %v1478, %v1482
        %1484 = vrot.lane.b32.xlu0 %v1238, 32
        %v1485 = vpop.permute.xlu0 %1484
        %v1488 = vsel %vm1273, %v1483, 0
        %1490 = vmatpush.msra.mxu0 0.0
        %1491 = vmatpush.msra.mxu0 0.0
        %1492 = vmatpush.msra.mxu0 0.0
        %1493 = vmatpush.msra.mxu0 0.0
        %1494 = vmatpush.msra.mxu0 0.0
        %1495 = vmatpush.msra.mxu0 0.0
        %1496 = vmatpush.msra.mxu0 0.0
        %1497 = vmatpush.msra.mxu0 0.0
        %1498 = vmatpush.msra.mxu0 0.0
        %1499 = vmatpush.msra.mxu0 0.0
        %1500 = vmatpush.msra.mxu0 0.0
        %1501 = vmatpush.msra.mxu0 0.0
        %1502 = vmatpush.msra.mxu0 0.0
        %1503 = vmatpush.msra.mxu0 0.0
        %1504 = vmatpush.msra.mxu0 0.0
        %1505 = vmatpush.msra.mxu0 %v1485
        %1506 = vmatmul.f32.gmra.mxu0 %v1488
        %v1507 = vpop.f32.mrf.mxu0
        %v1508 = vadd.f32 0.0, %v1507
        %1509 = vdwg.mxu0
        %1511 = vrot.lane.b32.xlu0 %v1374, 32
        %v1512 = vpop.permute.xlu0 %1511
        %1515 = vrot.lane.b32.xlu0 %v1441, 64
        %v1516 = vpop.permute.xlu0 %1515
        %1519 = vrot.lane.b32.xlu0 %v1508, 96
        %v1520 = vpop.permute.xlu0 %1519
        %v1522 = vsel %vm1243, %v1306, %v1512
        %vm1523 = vcmask 523264
        %v1524 = vsel %vm1523, %v1522, %v1516
        %vm1525 = vcmask 785408
        %v1526 = vsel %vm1525, %v1524, %v1520
        %v1528 = vsel %vm1243, %v1212, 0
        %v1531 = vsel %vm1243, %v1226, 0
        %1533 = vmatpush.xpose.msra.mxu0 0.0
        %1534 = vmatpush.xpose.msra.mxu0 0.0
        %1535 = vmatpush.xpose.msra.mxu0 0.0
        %1536 = vmatpush.xpose.msra.mxu0 0.0
        %1537 = vmatpush.xpose.msra.mxu0 0.0
        %1538 = vmatpush.xpose.msra.mxu0 0.0
        %1539 = vmatpush.xpose.msra.mxu0 0.0
        %1540 = vmatpush.xpose.msra.mxu0 0.0
        %1541 = vmatpush.xpose.msra.mxu0 0.0
        %1542 = vmatpush.xpose.msra.mxu0 0.0
        %1543 = vmatpush.xpose.msra.mxu0 0.0
        %1544 = vmatpush.xpose.msra.mxu0 0.0
        %1545 = vmatpush.xpose.msra.mxu0 0.0
        %1546 = vmatpush.xpose.msra.mxu0 0.0
        %1547 = vmatpush.xpose.msra.mxu0 0.0
        %1548 = vmatpush.xpose.msra.mxu0 %v1531
        %1549 = vmatmul.f32.gmra.mxu0 %v1528
        %v1550 = vpop.f32.mrf.mxu0
        %v1551 = vadd.f32 0.0, %v1550
        %1552 = vdwg.mxu0
        %v1553 = vmul.f32 %v1551, 0.17677669
        %v1554 = vperm.slane %v1242, 1
        %v1555 = vadd.f32 %v1553, %v1554
        %v1556 = vsel %vm1273, %v1555, -inf
        %1557 = vmax.xlane.f32.xlu0 %v1556
        %v1558 = vpop.xlane.xlu0 %1557
        %v1559 = vsub.f32 %v1555, %v1558
        %v1560 = vmul.f32 %v1559, 1.442695
        %v1561 = vpow.pop %v1560
        %v1562 = vsel %vm1273, %v1561, 0.0
        %1563 = vadd.xlane.f32.xlu0 %v1562
        %v1564 = vpop.xlane.xlu0 %1563
        %v1565 = vrcp.pop %v1564
        %v1566 = vmul.f32 %v1561, %v1565
        %v1568 = vsel %vm1273, %v1566, 0
        %1570 = vmatpush.msra.mxu0 0.0
        %1571 = vmatpush.msra.mxu0 0.0
        %1572 = vmatpush.msra.mxu0 0.0
        %1573 = vmatpush.msra.mxu0 0.0
        %1574 = vmatpush.msra.mxu0 0.0
        %1575 = vmatpush.msra.mxu0 0.0
        %1576 = vmatpush.msra.mxu0 0.0
        %1577 = vmatpush.msra.mxu0 0.0
        %1578 = vmatpush.msra.mxu0 0.0
        %1579 = vmatpush.msra.mxu0 0.0
        %1580 = vmatpush.msra.mxu0 0.0
        %1581 = vmatpush.msra.mxu0 0.0
        %1582 = vmatpush.msra.mxu0 0.0
        %1583 = vmatpush.msra.mxu0 0.0
        %1584 = vmatpush.msra.mxu0 0.0
        %1585 = vmatpush.msra.mxu0 %v1240
        %1586 = vmatmul.f32.gmra.mxu0 %v1568
        %v1587 = vpop.f32.mrf.mxu0
        %v1588 = vadd.f32 0.0, %v1587
        %1589 = vdwg.mxu0
        %1590 = vrot.lane.b32.xlu0 %v1212, 96
        %v1591 = vpop.permute.xlu0 %1590
        %1592 = vrot.lane.b32.xlu0 %v1226, 96
        %v1593 = vpop.permute.xlu0 %1592
        %v1594 = vsel %vm1243, %v1591, 0
        %v1596 = vsel %vm1243, %v1593, 0
        %1598 = vmatpush.xpose.msra.mxu0 0.0
        %1599 = vmatpush.xpose.msra.mxu0 0.0
        %1600 = vmatpush.xpose.msra.mxu0 0.0
        %1601 = vmatpush.xpose.msra.mxu0 0.0
        %1602 = vmatpush.xpose.msra.mxu0 0.0
        %1603 = vmatpush.xpose.msra.mxu0 0.0
        %1604 = vmatpush.xpose.msra.mxu0 0.0
        %1605 = vmatpush.xpose.msra.mxu0 0.0
        %1606 = vmatpush.xpose.msra.mxu0 0.0
        %1607 = vmatpush.xpose.msra.mxu0 0.0
        %1608 = vmatpush.xpose.msra.mxu0 0.0
        %1609 = vmatpush.xpose.msra.mxu0 0.0
        %1610 = vmatpush.xpose.msra.mxu0 0.0
        %1611 = vmatpush.xpose.msra.mxu0 0.0
        %1612 = vmatpush.xpose.msra.mxu0 0.0
        %1613 = vmatpush.xpose.msra.mxu0 %v1596
        %1614 = vmatmul.f32.gmra.mxu0 %v1594
        %v1615 = vpop.f32.mrf.mxu0
        %v1616 = vadd.f32 0.0, %v1615
        %1617 = vdwg.mxu0
        %v1618 = vmul.f32 %v1616, 0.17677669
        %v1619 = vadd.f32 %v1618, %v1554
        %v1620 = vsel %vm1273, %v1619, -inf
        %1621 = vmax.xlane.f32.xlu0 %v1620
        %v1622 = vpop.xlane.xlu0 %1621
        %v1623 = vsub.f32 %v1619, %v1622
        %v1624 = vmul.f32 %v1623, 1.442695
        %v1625 = vpow.pop %v1624
        %v1626 = vsel %vm1273, %v1625, 0.0
        %1627 = vadd.xlane.f32.xlu0 %v1626
        %v1628 = vpop.xlane.xlu0 %1627
        %v1629 = vrcp.pop %v1628
        %v1630 = vmul.f32 %v1625, %v1629
        %1632 = vrot.lane.b32.xlu0 %v1240, 96
        %v1633 = vpop.permute.xlu0 %1632
        %v1636 = vsel %vm1273, %v1630, 0
        %1638 = vmatpush.msra.mxu0 0.0
        %1639 = vmatpush.msra.mxu0 0.0
        %1640 = vmatpush.msra.mxu0 0.0
        %1641 = vmatpush.msra.mxu0 0.0
        %1642 = vmatpush.msra.mxu0 0.0
        %1643 = vmatpush.msra.mxu0 0.0
        %1644 = vmatpush.msra.mxu0 0.0
        %1645 = vmatpush.msra.mxu0 0.0
        %1646 = vmatpush.msra.mxu0 0.0
        %1647 = vmatpush.msra.mxu0 0.0
        %1648 = vmatpush.msra.mxu0 0.0
        %1649 = vmatpush.msra.mxu0 0.0
        %1650 = vmatpush.msra.mxu0 0.0
        %1651 = vmatpush.msra.mxu0 0.0
        %1652 = vmatpush.msra.mxu0 0.0
        %1653 = vmatpush.msra.mxu0 %v1633
        %1654 = vmatmul.f32.gmra.mxu0 %v1636
        %v1655 = vpop.f32.mrf.mxu0
        %v1656 = vadd.f32 0.0, %v1655
        %1657 = vdwg.mxu0
        %1658 = vrot.lane.b32.xlu0 %v1212, 64
        %v1659 = vpop.permute.xlu0 %1658
        %1660 = vrot.lane.b32.xlu0 %v1226, 64
        %v1661 = vpop.permute.xlu0 %1660
        %v1662 = vsel %vm1243, %v1659, 0
        %v1664 = vsel %vm1243, %v1661, 0
        %1666 = vmatpush.xpose.msra.mxu0 0.0
        %1667 = vmatpush.xpose.msra.mxu0 0.0
        %1668 = vmatpush.xpose.msra.mxu0 0.0
        %1669 = vmatpush.xpose.msra.mxu0 0.0
        %1670 = vmatpush.xpose.msra.mxu0 0.0
        %1671 = vmatpush.xpose.msra.mxu0 0.0
        %1672 = vmatpush.xpose.msra.mxu0 0.0
        %1673 = vmatpush.xpose.msra.mxu0 0.0
        %1674 = vmatpush.xpose.msra.mxu0 0.0
        %1675 = vmatpush.xpose.msra.mxu0 0.0
        %1676 = vmatpush.xpose.msra.mxu0 0.0
        %1677 = vmatpush.xpose.msra.mxu0 0.0
        %1678 = vmatpush.xpose.msra.mxu0 0.0
        %1679 = vmatpush.xpose.msra.mxu0 0.0
        %1680 = vmatpush.xpose.msra.mxu0 0.0
        %1681 = vmatpush.xpose.msra.mxu0 %v1664
        %1682 = vmatmul.f32.gmra.mxu0 %v1662
        %v1683 = vpop.f32.mrf.mxu0
        %v1684 = vadd.f32 0.0, %v1683
        %1685 = vdwg.mxu0
        %v1686 = vmul.f32 %v1684, 0.17677669
        %v1687 = vadd.f32 %v1686, %v1554
        %v1688 = vsel %vm1273, %v1687, -inf
        %1689 = vmax.xlane.f32.xlu0 %v1688
        %v1690 = vpop.xlane.xlu0 %1689
        %v1691 = vsub.f32 %v1687, %v1690
        %v1692 = vmul.f32 %v1691, 1.442695
        %v1693 = vpow.pop %v1692
        %v1694 = vsel %vm1273, %v1693, 0.0
        %1695 = vadd.xlane.f32.xlu0 %v1694
        %v1696 = vpop.xlane.xlu0 %1695
        %v1697 = vrcp.pop %v1696
        %v1698 = vmul.f32 %v1693, %v1697
        %1699 = vrot.lane.b32.xlu0 %v1240, 64
        %v1700 = vpop.permute.xlu0 %1699
        %v1703 = vsel %vm1273, %v1698, 0
        %1705 = vmatpush.msra.mxu0 0.0
        %1706 = vmatpush.msra.mxu0 0.0
        %1707 = vmatpush.msra.mxu0 0.0
        %1708 = vmatpush.msra.mxu0 0.0
        %1709 = vmatpush.msra.mxu0 0.0
        %1710 = vmatpush.msra.mxu0 0.0
        %1711 = vmatpush.msra.mxu0 0.0
        %1712 = vmatpush.msra.mxu0 0.0
        %1713 = vmatpush.msra.mxu0 0.0
        %1714 = vmatpush.msra.mxu0 0.0
        %1715 = vmatpush.msra.mxu0 0.0
        %1716 = vmatpush.msra.mxu0 0.0
        %1717 = vmatpush.msra.mxu0 0.0
        %1718 = vmatpush.msra.mxu0 0.0
        %1719 = vmatpush.msra.mxu0 0.0
        %1720 = vmatpush.msra.mxu0 %v1700
        %1721 = vmatmul.f32.gmra.mxu0 %v1703
        %v1722 = vpop.f32.mrf.mxu0
        %v1723 = vadd.f32 0.0, %v1722
        %1724 = vdwg.mxu0
        %1725 = vrot.lane.b32.xlu0 %v1212, 32
        %v1726 = vpop.permute.xlu0 %1725
        %1727 = vrot.lane.b32.xlu0 %v1226, 32
        %v1728 = vpop.permute.xlu0 %1727
        %v1729 = vsel %vm1243, %v1726, 0
        %v1731 = vsel %vm1243, %v1728, 0
        %1733 = vmatpush.xpose.msra.mxu0 0.0
        %1734 = vmatpush.xpose.msra.mxu0 0.0
        %1735 = vmatpush.xpose.msra.mxu0 0.0
        %1736 = vmatpush.xpose.msra.mxu0 0.0
        %1737 = vmatpush.xpose.msra.mxu0 0.0
        %1738 = vmatpush.xpose.msra.mxu0 0.0
        %1739 = vmatpush.xpose.msra.mxu0 0.0
        %1740 = vmatpush.xpose.msra.mxu0 0.0
        %1741 = vmatpush.xpose.msra.mxu0 0.0
        %1742 = vmatpush.xpose.msra.mxu0 0.0
        %1743 = vmatpush.xpose.msra.mxu0 0.0
        %1744 = vmatpush.xpose.msra.mxu0 0.0
        %1745 = vmatpush.xpose.msra.mxu0 0.0
        %1746 = vmatpush.xpose.msra.mxu0 0.0
        %1747 = vmatpush.xpose.msra.mxu0 0.0
        %1748 = vmatpush.xpose.msra.mxu0 %v1731
        %1749 = vmatmul.f32.gmra.mxu0 %v1729
        %v1750 = vpop.f32.mrf.mxu0
        %v1751 = vadd.f32 0.0, %v1750
        %1752 = vdwg.mxu0
        %v1753 = vmul.f32 %v1751, 0.17677669
        %v1754 = vadd.f32 %v1753, %v1554
        %v1755 = vsel %vm1273, %v1754, -inf
        %1756 = vmax.xlane.f32.xlu0 %v1755
        %v1757 = vpop.xlane.xlu0 %1756
        %v1758 = vsub.f32 %v1754, %v1757
        %v1759 = vmul.f32 %v1758, 1.442695
        %v1760 = vpow.pop %v1759
        %v1761 = vsel %vm1273, %v1760, 0.0
        %1762 = vadd.xlane.f32.xlu0 %v1761
        %v1763 = vpop.xlane.xlu0 %1762
        %v1764 = vrcp.pop %v1763
        %v1765 = vmul.f32 %v1760, %v1764
        %1766 = vrot.lane.b32.xlu0 %v1240, 32
        %v1767 = vpop.permute.xlu0 %1766
        %v1770 = vsel %vm1273, %v1765, 0
        %1772 = vmatpush.msra.mxu0 0.0
        %1773 = vmatpush.msra.mxu0 0.0
        %1774 = vmatpush.msra.mxu0 0.0
        %1775 = vmatpush.msra.mxu0 0.0
        %1776 = vmatpush.msra.mxu0 0.0
        %1777 = vmatpush.msra.mxu0 0.0
        %1778 = vmatpush.msra.mxu0 0.0
        %1779 = vmatpush.msra.mxu0 0.0
        %1780 = vmatpush.msra.mxu0 0.0
        %1781 = vmatpush.msra.mxu0 0.0
        %1782 = vmatpush.msra.mxu0 0.0
        %1783 = vmatpush.msra.mxu0 0.0
        %1784 = vmatpush.msra.mxu0 0.0
        %1785 = vmatpush.msra.mxu0 0.0
        %1786 = vmatpush.msra.mxu0 0.0
        %1787 = vmatpush.msra.mxu0 %v1767
        %1788 = vmatmul.f32.gmra.mxu0 %v1770
        %v1789 = vpop.f32.mrf.mxu0
        %v1790 = vadd.f32 0.0, %v1789
        %1791 = vdwg.mxu0
        %1793 = vrot.lane.b32.xlu0 %v1656, 32
        %v1794 = vpop.permute.xlu0 %1793
        %1797 = vrot.lane.b32.xlu0 %v1723, 64
        %v1798 = vpop.permute.xlu0 %1797
        %1801 = vrot.lane.b32.xlu0 %v1790, 96
        %v1802 = vpop.permute.xlu0 %1801
        %v1804 = vsel %vm1243, %v1588, %v1794
        %v1805 = vsel %vm1523, %v1804, %v1798
        %v1806 = vsel %vm1525, %v1805, %v1802
        %v1807 = vpack.c.bf16 %v1806, %v1526
        %v1808 = vld [vmem:[%s782] sm:$0xf]
        %v1809 = vld [vmem:[%s782 + $0x4] sm:$0xf]
        %v1810 = vld [vmem:[%s782 + $0x8] sm:$0xf]
        %v1811 = vld [vmem:[%s782 + $0xc] sm:$0xf]
        %v1812 = vld [vmem:[%s782 + $0x10] sm:$0xf]
        %v1813 = vld [vmem:[%s782 + $0x14] sm:$0xf]
        %v1814 = vld [vmem:[%s782 + $0x18] sm:$0xf]
        %v1815 = vld [vmem:[%s782 + $0x1c] sm:$0xf]
        %v1816 = vld [vmem:[%s782 + $0x20] sm:$0xf]
        %v1817 = vld [vmem:[%s782 + $0x24] sm:$0xf]
        %v1818 = vld [vmem:[%s782 + $0x28] sm:$0xf]
        %v1819 = vld [vmem:[%s782 + $0x2c] sm:$0xf]
        %v1820 = vld [vmem:[%s782 + $0x30] sm:$0xf]
        %v1821 = vld [vmem:[%s782 + $0x34] sm:$0xf]
        %v1822 = vld [vmem:[%s782 + $0x38] sm:$0xf]
        %v1823 = vld [vmem:[%s782 + $0x3c] sm:$0xf]
        %v1824 = vld [vmem:[%s791] sm:$0x1]
        %v1826 = vperm.slane %v1824, 0
        %v1844 = vunpack.c.l.b16 %v1808
        %v1845 = vunpack.c.l.b16 %v1809
        %v1846 = vunpack.c.l.b16 %v1810
        %v1847 = vunpack.c.l.b16 %v1811
        %v1848 = vunpack.c.l.b16 %v1812
        %v1849 = vunpack.c.l.b16 %v1813
        %v1850 = vunpack.c.l.b16 %v1814
        %v1851 = vunpack.c.l.b16 %v1815
        %v1852 = vunpack.c.l.b16 %v1816
        %v1853 = vunpack.c.l.b16 %v1817
        %v1854 = vunpack.c.l.b16 %v1818
        %v1855 = vunpack.c.l.b16 %v1819
        %v1856 = vunpack.c.l.b16 %v1820
        %v1857 = vunpack.c.l.b16 %v1821
        %v1858 = vunpack.c.l.b16 %v1822
        %v1859 = vunpack.c.l.b16 %v1823
        %v1860 = vpack.c.b16 %v1845, %v1844
        %v1861 = vpack.c.b16 %v1847, %v1846
        %v1862 = vpack.c.b16 %v1849, %v1848
        %v1863 = vpack.c.b16 %v1851, %v1850
        %v1864 = vpack.c.b16 %v1853, %v1852
        %v1865 = vpack.c.b16 %v1855, %v1854
        %v1866 = vpack.c.b16 %v1857, %v1856
        %v1867 = vpack.c.b16 %v1859, %v1858
        %1876 = vmatpush.bf16.msra.mxu0 %v1867
        %1877 = vmatpush.bf16.msra.mxu0 %v1866
        %1878 = vmatpush.bf16.msra.mxu0 %v1865
        %1879 = vmatpush.bf16.msra.mxu0 %v1864
        %1880 = vmatpush.bf16.msra.mxu0 %v1863
        %1881 = vmatpush.bf16.msra.mxu0 %v1862
        %1882 = vmatpush.bf16.msra.mxu0 %v1861
        %1883 = vmatpush.bf16.msra.mxu0 %v1860
        %1884 = vmatmul.bf16.gmra.mxu0 %v1807
        %v1885 = vpop.f32.mrf.mxu0
        %v1886 = vadd.f32 %v1826, %v1885
        %v1887 = vpop.f32.mrf.mxu0
        %v1888 = vadd.f32 %v1826, %v1887
        %1889 = vdwg.mxu0
        %v1890 = vadd.f32 %v1886, %v1029
        %v1891 = vadd.f32 %v1888, %v1030
        %v1892 = vld [vmem:[%s800] sm:$0x1]
        %v1893 = vld [vmem:[%s809] sm:$0x1]
        %1894 = vadd.xlane.f32.xlu0 %v1890
        %v1895 = vpop.xlane.xlu0 %1894
        %1896 = vadd.xlane.f32.xlu0 %v1891
        %v1897 = vpop.xlane.xlu0 %1896
        %v1898 = vrcp.pop 128.0
        %v1899 = vmul.f32 128.0, %v1898
        %v1900 = vsub.f32 1.0, %v1899
        %v1901 = vmul.f32 %v1898, %v1900
        %v1902 = vadd.f32 %v1898, %v1901
        %vm1903 = vweird.f32 %v1898
        %v1904 = vsel %vm1903, %v1898, %v1902
        %v1905 = vmul.f32 %v1895, %v1904
        %v1906 = vmul.f32 %v1897, %v1904
        %v1907 = vsub.f32 %v1890, %v1905
        %v1908 = vsub.f32 %v1891, %v1906
        %v1909 = vmul.f32 %v1907, %v1907
        %v1910 = vmul.f32 %v1908, %v1908
        %1911 = vadd.xlane.f32.xlu0 %v1909
        %v1912 = vpop.xlane.xlu0 %1911
        %1913 = vadd.xlane.f32.xlu0 %v1910
        %v1914 = vpop.xlane.xlu0 %1913
        %v1915 = vmul.f32 %v1912, %v1904
        %v1916 = vmul.f32 %v1914, %v1904
        %v1917 = vadd.f32 %v1915, 1e-05
        %v1918 = vadd.f32 %v1916, 1e-05
        %v1919 = vrsqrt.pop %v1917
        %v1920 = vmul.f32 %v1919, %v1917
        %v1921 = vmul.f32 %v1920, %v1919
        %v1922 = vmul.f32 0.5, %v1921
        %v1923 = vsub.f32 1.5, %v1922
        %v1924 = vmul.f32 %v1919, %v1923
        %vm1925 = vweird.f32 %v1917
        %vm1926 = vweird.f32 %v1919
        %vm1927 = vmor %vm1925, %vm1926
        %v1928 = vsel %vm1927, %v1919, %v1924
        %v1929 = vrsqrt.pop %v1918
        %v1930 = vmul.f32 %v1929, %v1918
        %v1931 = vmul.f32 %v1930, %v1929
        %v1932 = vmul.f32 0.5, %v1931
        %v1933 = vsub.f32 1.5, %v1932
        %v1934 = vmul.f32 %v1929, %v1933
        %vm1935 = vweird.f32 %v1918
        %vm1936 = vweird.f32 %v1929
        %vm1937 = vmor %vm1935, %vm1936
        %v1938 = vsel %vm1937, %v1929, %v1934
        %v1939 = vmul.f32 %v1907, %v1928
        %v1940 = vmul.f32 %v1908, %v1938
        %v1942 = vperm.slane %v1892, 0
        %v1944 = vmul.f32 %v1939, %v1942
        %v1945 = vmul.f32 %v1940, %v1942
        %v1947 = vperm.slane %v1893, 0
        %v1949 = vadd.f32 %v1944, %v1947
        %v1950 = vadd.f32 %v1945, %v1947
        %v1951 = vpack.c.bf16 %v1950, %v1949
        %v1952 = vld [vmem:[%s819] sm:$0xff]
        %v1953 = vld [vmem:[%s819 + $0x8] sm:$0xff]
        %v1954 = vld [vmem:[%s819 + $0x10] sm:$0xff]
        %v1955 = vld [vmem:[%s819 + $0x18] sm:$0xff]
        %v1956 = vld [vmem:[%s819 + $0x20] sm:$0xff]
        %v1957 = vld [vmem:[%s819 + $0x28] sm:$0xff]
        %v1958 = vld [vmem:[%s819 + $0x30] sm:$0xff]
        %v1959 = vld [vmem:[%s819 + $0x38] sm:$0xff]
        %v1960 = vld [vmem:[%s819 + $0x40] sm:$0xff]
        %v1961 = vld [vmem:[%s819 + $0x48] sm:$0xff]
        %v1962 = vld [vmem:[%s819 + $0x50] sm:$0xff]
        %v1963 = vld [vmem:[%s819 + $0x58] sm:$0xff]
        %v1964 = vld [vmem:[%s819 + $0x60] sm:$0xff]
        %v1965 = vld [vmem:[%s819 + $0x68] sm:$0xff]
        %v1966 = vld [vmem:[%s819 + $0x70] sm:$0xff]
        %v1967 = vld [vmem:[%s819 + $0x78] sm:$0xff]
        %v1968 = vld [vmem:[%s829] sm:$0x3]
        %v1970 = vperm.slane %v1968, 0
        %v1971 = vperm.slane %v1968, 1
        %v1990 = vunpack.c.l.b16 %v1952
        %v1991 = vunpack.c.h.b16 %v1952
        %v1992 = vunpack.c.l.b16 %v1953
        %v1993 = vunpack.c.h.b16 %v1953
        %v1994 = vunpack.c.l.b16 %v1954
        %v1995 = vunpack.c.h.b16 %v1954
        %v1996 = vunpack.c.l.b16 %v1955
        %v1997 = vunpack.c.h.b16 %v1955
        %v1998 = vunpack.c.l.b16 %v1956
        %v1999 = vunpack.c.h.b16 %v1956
        %v2000 = vunpack.c.l.b16 %v1957
        %v2001 = vunpack.c.h.b16 %v1957
        %v2002 = vunpack.c.l.b16 %v1958
        %v2003 = vunpack.c.h.b16 %v1958
        %v2004 = vunpack.c.l.b16 %v1959
        %v2005 = vunpack.c.h.b16 %v1959
        %v2006 = vunpack.c.l.b16 %v1960
        %v2007 = vunpack.c.h.b16 %v1960
        %v2008 = vunpack.c.l.b16 %v1961
        %v2009 = vunpack.c.h.b16 %v1961
        %v2010 = vunpack.c.l.b16 %v1962
        %v2011 = vunpack.c.h.b16 %v1962
        %v2012 = vunpack.c.l.b16 %v1963
        %v2013 = vunpack.c.h.b16 %v1963
        %v2014 = vunpack.c.l.b16 %v1964
        %v2015 = vunpack.c.h.b16 %v1964
        %v2016 = vunpack.c.l.b16 %v1965
        %v2017 = vunpack.c.h.b16 %v1965
        %v2018 = vunpack.c.l.b16 %v1966
        %v2019 = vunpack.c.h.b16 %v1966
        %v2020 = vunpack.c.l.b16 %v1967
        %v2021 = vunpack.c.h.b16 %v1967
        %v2022 = vpack.c.b16 %v1992, %v1990
        %v2023 = vpack.c.b16 %v1993, %v1991
        %v2024 = vpack.c.b16 %v1996, %v1994
        %v2025 = vpack.c.b16 %v1997, %v1995
        %v2026 = vpack.c.b16 %v2000, %v1998
        %v2027 = vpack.c.b16 %v2001, %v1999
        %v2028 = vpack.c.b16 %v2004, %v2002
        %v2029 = vpack.c.b16 %v2005, %v2003
        %v2030 = vpack.c.b16 %v2008, %v2006
        %v2031 = vpack.c.b16 %v2009, %v2007
        %v2032 = vpack.c.b16 %v2012, %v2010
        %v2033 = vpack.c.b16 %v2013, %v2011
        %v2034 = vpack.c.b16 %v2016, %v2014
        %v2035 = vpack.c.b16 %v2017, %v2015
        %v2036 = vpack.c.b16 %v2020, %v2018
        %v2037 = vpack.c.b16 %v2021, %v2019
        %2054 = vmatpush.bf16.msra.mxu0 %v2036
        %2055 = vmatpush.bf16.msra.mxu0 %v2034
        %2056 = vmatpush.bf16.msra.mxu0 %v2032
        %2057 = vmatpush.bf16.msra.mxu0 %v2030
        %2058 = vmatpush.bf16.msra.mxu0 %v2028
        %2059 = vmatpush.bf16.msra.mxu0 %v2026
        %2060 = vmatpush.bf16.msra.mxu0 %v2024
        %2061 = vmatpush.bf16.msra.mxu0 %v2022
        %2062 = vmatmul.bf16.gmra.mxu0 %v1951
        %v2063 = vpop.f32.mrf.mxu0
        %v2064 = vadd.f32 %v1970, %v2063
        %v2065 = vpop.f32.mrf.mxu0
        %v2066 = vadd.f32 %v1970, %v2065
        %2067 = vdwg.mxu0
        %2068 = vmatpush.bf16.msra.mxu0 %v2037
        %2069 = vmatpush.bf16.msra.mxu0 %v2035
        %2070 = vmatpush.bf16.msra.mxu0 %v2033
        %2071 = vmatpush.bf16.msra.mxu0 %v2031
        %2072 = vmatpush.bf16.msra.mxu0 %v2029
        %2073 = vmatpush.bf16.msra.mxu0 %v2027
        %2074 = vmatpush.bf16.msra.mxu0 %v2025
        %2075 = vmatpush.bf16.msra.mxu0 %v2023
        %2076 = vmatmul.bf16.gmra.mxu0 %v1951
        %v2077 = vpop.f32.mrf.mxu0
        %v2078 = vadd.f32 %v1971, %v2077
        %v2079 = vpop.f32.mrf.mxu0
        %v2080 = vadd.f32 %v1971, %v2079
        %2081 = vdwg.mxu0
        %v2082 = vmul.f32 %v2064, 0.5
        %v2083 = vmul.f32 %v2078, 0.5
        %v2084 = vmul.f32 %v2066, 0.5
        %v2085 = vmul.f32 %v2080, 0.5
        %v2086 = vmul.f32 %v2064, 0.044715
        %v2087 = vmul.f32 %v2078, 0.044715
        %v2088 = vmul.f32 %v2066, 0.044715
        %v2089 = vmul.f32 %v2080, 0.044715
        %v2090 = vmul.f32 %v2086, %v2064
        %v2091 = vmul.f32 %v2087, %v2078
        %v2092 = vmul.f32 %v2088, %v2066
        %v2093 = vmul.f32 %v2089, %v2080
        %v2094 = vmul.f32 %v2090, %v2064
        %v2095 = vmul.f32 %v2091, %v2078
        %v2096 = vmul.f32 %v2092, %v2066
        %v2097 = vmul.f32 %v2093, %v2080
        %v2098 = vadd.f32 %v2064, %v2094
        %v2099 = vadd.f32 %v2078, %v2095
        %v2100 = vadd.f32 %v2066, %v2096
        %v2101 = vadd.f32 %v2080, %v2097
        %v2102 = vmul.f32 %v2098, 0.7978846
        %v2103 = vmul.f32 %v2099, 0.7978846
        %v2104 = vmul.f32 %v2100, 0.7978846
        %v2105 = vmul.f32 %v2101, 0.7978846
        %v2106 = vtanh.pop %v2102
        %v2107 = vtanh.pop %v2103
        %v2108 = vtanh.pop %v2104
        %v2109 = vtanh.pop %v2105
        %v2110 = vadd.f32 %v2106, 1.0
        %v2111 = vadd.f32 %v2107, 1.0
        %v2112 = vadd.f32 %v2108, 1.0
        %v2113 = vadd.f32 %v2109, 1.0
        %v2114 = vmul.f32 %v2082, %v2110
        %v2115 = vmul.f32 %v2083, %v2111
        %v2116 = vmul.f32 %v2084, %v2112
        %v2117 = vmul.f32 %v2085, %v2113
        %v2118 = vpack.c.bf16 %v2116, %v2114
        %v2119 = vpack.c.bf16 %v2117, %v2115
        %v2120 = vld [vmem:[%s839] sm:$0xf]
        %v2121 = vld [vmem:[%s839 + $0x4] sm:$0xf]
        %v2122 = vld [vmem:[%s839 + $0x8] sm:$0xf]
        %v2123 = vld [vmem:[%s839 + $0xc] sm:$0xf]
        %v2124 = vld [vmem:[%s839 + $0x10] sm:$0xf]
        %v2125 = vld [vmem:[%s839 + $0x14] sm:$0xf]
        %v2126 = vld [vmem:[%s839 + $0x18] sm:$0xf]
        %v2127 = vld [vmem:[%s839 + $0x1c] sm:$0xf]
        %v2128 = vld [vmem:[%s839 + $0x20] sm:$0xf]
        %v2129 = vld [vmem:[%s839 + $0x24] sm:$0xf]
        %v2130 = vld [vmem:[%s839 + $0x28] sm:$0xf]
        %v2131 = vld [vmem:[%s839 + $0x2c] sm:$0xf]
        %v2132 = vld [vmem:[%s839 + $0x30] sm:$0xf]
        %v2133 = vld [vmem:[%s839 + $0x34] sm:$0xf]
        %v2134 = vld [vmem:[%s839 + $0x38] sm:$0xf]
        %v2135 = vld [vmem:[%s839 + $0x3c] sm:$0xf]
        %v2136 = vld [vmem:[%s839 + $0x40] sm:$0xf]
        %v2137 = vld [vmem:[%s839 + $0x44] sm:$0xf]
        %v2138 = vld [vmem:[%s839 + $0x48] sm:$0xf]
        %v2139 = vld [vmem:[%s839 + $0x4c] sm:$0xf]
        %v2140 = vld [vmem:[%s839 + $0x50] sm:$0xf]
        %v2141 = vld [vmem:[%s839 + $0x54] sm:$0xf]
        %v2142 = vld [vmem:[%s839 + $0x58] sm:$0xf]
        %v2143 = vld [vmem:[%s839 + $0x5c] sm:$0xf]
        %v2144 = vld [vmem:[%s839 + $0x60] sm:$0xf]
        %v2145 = vld [vmem:[%s839 + $0x64] sm:$0xf]
        %v2146 = vld [vmem:[%s839 + $0x68] sm:$0xf]
        %v2147 = vld [vmem:[%s839 + $0x6c] sm:$0xf]
        %v2148 = vld [vmem:[%s839 + $0x70] sm:$0xf]
        %v2149 = vld [vmem:[%s839 + $0x74] sm:$0xf]
        %v2150 = vld [vmem:[%s839 + $0x78] sm:$0xf]
        %v2151 = vld [vmem:[%s839 + $0x7c] sm:$0xf]
        %v2152 = vld [vmem:[%s848] sm:$0x1]
        %v2154 = vperm.slane %v2152, 0
        %v2188 = vunpack.c.l.b16 %v2120
        %v2189 = vunpack.c.l.b16 %v2121
        %v2190 = vunpack.c.l.b16 %v2122
        %v2191 = vunpack.c.l.b16 %v2123
        %v2192 = vunpack.c.l.b16 %v2124
        %v2193 = vunpack.c.l.b16 %v2125
        %v2194 = vunpack.c.l.b16 %v2126
        %v2195 = vunpack.c.l.b16 %v2127
        %v2196 = vunpack.c.l.b16 %v2128
        %v2197 = vunpack.c.l.b16 %v2129
        %v2198 = vunpack.c.l.b16 %v2130
        %v2199 = vunpack.c.l.b16 %v2131
        %v2200 = vunpack.c.l.b16 %v2132
        %v2201 = vunpack.c.l.b16 %v2133
        %v2202 = vunpack.c.l.b16 %v2134
        %v2203 = vunpack.c.l.b16 %v2135
        %v2204 = vunpack.c.l.b16 %v2136
        %v2205 = vunpack.c.l.b16 %v2137
        %v2206 = vunpack.c.l.b16 %v2138
        %v2207 = vunpack.c.l.b16 %v2139
        %v2208 = vunpack.c.l.b16 %v2140
        %v2209 = vunpack.c.l.b16 %v2141
        %v2210 = vunpack.c.l.b16 %v2142
        %v2211 = vunpack.c.l.b16 %v2143
        %v2212 = vunpack.c.l.b16 %v2144
        %v2213 = vunpack.c.l.b16 %v2145
        %v2214 = vunpack.c.l.b16 %v2146
        %v2215 = vunpack.c.l.b16 %v2147
        %v2216 = vunpack.c.l.b16 %v2148
        %v2217 = vunpack.c.l.b16 %v2149
        %v2218 = vunpack.c.l.b16 %v2150
        %v2219 = vunpack.c.l.b16 %v2151
        %v2220 = vpack.c.b16 %v2189, %v2188
        %v2221 = vpack.c.b16 %v2191, %v2190
        %v2222 = vpack.c.b16 %v2193, %v2192
        %v2223 = vpack.c.b16 %v2195, %v2194
        %v2224 = vpack.c.b16 %v2197, %v2196
        %v2225 = vpack.c.b16 %v2199, %v2198
        %v2226 = vpack.c.b16 %v2201, %v2200
        %v2227 = vpack.c.b16 %v2203, %v2202
        %v2228 = vpack.c.b16 %v2205, %v2204
        %v2229 = vpack.c.b16 %v2207, %v2206
        %v2230 = vpack.c.b16 %v2209, %v2208
        %v2231 = vpack.c.b16 %v2211, %v2210
        %v2232 = vpack.c.b16 %v2213, %v2212
        %v2233 = vpack.c.b16 %v2215, %v2214
        %v2234 = vpack.c.b16 %v2217, %v2216
        %v2235 = vpack.c.b16 %v2219, %v2218
        %2252 = vmatpush.bf16.msra.mxu0 %v2227
        %2253 = vmatpush.bf16.msra.mxu0 %v2226
        %2254 = vmatpush.bf16.msra.mxu0 %v2225
        %2255 = vmatpush.bf16.msra.mxu0 %v2224
        %2256 = vmatpush.bf16.msra.mxu0 %v2223
        %2257 = vmatpush.bf16.msra.mxu0 %v2222
        %2258 = vmatpush.bf16.msra.mxu0 %v2221
        %2259 = vmatpush.bf16.msra.mxu0 %v2220
        %2260 = vmatmul.bf16.gmra.mxu0 %v2118
        %v2261 = vpop.f32.mrf.mxu0
        %v2262 = vadd.f32 %v2154, %v2261
        %v2263 = vpop.f32.mrf.mxu0
        %v2264 = vadd.f32 %v2154, %v2263
        %2265 = vdwg.mxu0
        %2266 = vmatpush.bf16.msra.mxu0 %v2235
        %2267 = vmatpush.bf16.msra.mxu0 %v2234
        %2268 = vmatpush.bf16.msra.mxu0 %v2233
        %2269 = vmatpush.bf16.msra.mxu0 %v2232
        %2270 = vmatpush.bf16.msra.mxu0 %v2231
        %2271 = vmatpush.bf16.msra.mxu0 %v2230
        %2272 = vmatpush.bf16.msra.mxu0 %v2229
        %2273 = vmatpush.bf16.msra.mxu0 %v2228
        %2274 = vmatmul.bf16.gmra.mxu0 %v2119
        %v2275 = vpop.f32.mrf.mxu0
        %v2276 = vadd.f32 %v2262, %v2275
        %v2277 = vpop.f32.mrf.mxu0
        %v2278 = vadd.f32 %v2264, %v2277
        %2279 = vdwg.mxu0
        %v2280 = vadd.f32 %v2276, %v1949
        %v2281 = vadd.f32 %v2278, %v1950
        %v2282 = vld [vmem:[%s857] sm:$0x1]
        %v2283 = vld [vmem:[%s866] sm:$0x1]
        %2284 = vadd.xlane.f32.xlu0 %v2280
        %v2285 = vpop.xlane.xlu0 %2284
        %2286 = vadd.xlane.f32.xlu0 %v2281
        %v2287 = vpop.xlane.xlu0 %2286
        %v2288 = vmul.f32 %v2285, %v1904
        %v2289 = vmul.f32 %v2287, %v1904
        %v2290 = vsub.f32 %v2280, %v2288
        %v2291 = vsub.f32 %v2281, %v2289
        %v2292 = vmul.f32 %v2290, %v2290
        %v2293 = vmul.f32 %v2291, %v2291
        %2294 = vadd.xlane.f32.xlu0 %v2292
        %v2295 = vpop.xlane.xlu0 %2294
        %2296 = vadd.xlane.f32.xlu0 %v2293
        %v2297 = vpop.xlane.xlu0 %2296
        %v2298 = vmul.f32 %v2295, %v1904
        %v2299 = vmul.f32 %v2297, %v1904
        %v2300 = vadd.f32 %v2298, 1e-05
        %v2301 = vadd.f32 %v2299, 1e-05
        %v2302 = vrsqrt.pop %v2300
        %v2303 = vmul.f32 %v2302, %v2300
        %v2304 = vmul.f32 %v2303, %v2302
        %v2305 = vmul.f32 0.5, %v2304
        %v2306 = vsub.f32 1.5, %v2305
        %v2307 = vmul.f32 %v2302, %v2306
        %vm2308 = vweird.f32 %v2300
        %vm2309 = vweird.f32 %v2302
        %vm2310 = vmor %vm2308, %vm2309
        %v2311 = vsel %vm2310, %v2302, %v2307
        %v2312 = vrsqrt.pop %v2301
        %v2313 = vmul.f32 %v2312, %v2301
        %v2314 = vmul.f32 %v2313, %v2312
        %v2315 = vmul.f32 0.5, %v2314
        %v2316 = vsub.f32 1.5, %v2315
        %v2317 = vmul.f32 %v2312, %v2316
        %vm2318 = vweird.f32 %v2301
        %vm2319 = vweird.f32 %v2312
        %vm2320 = vmor %vm2318, %vm2319
        %v2321 = vsel %vm2320, %v2312, %v2317
        %v2322 = vmul.f32 %v2290, %v2311
        %v2323 = vmul.f32 %v2291, %v2321
        %v2325 = vperm.slane %v2282, 0
        %v2327 = vmul.f32 %v2322, %v2325
        %v2328 = vmul.f32 %v2323, %v2325
        %v2330 = vperm.slane %v2283, 0
        %v2332 = vadd.f32 %v2327, %v2330
        %v2333 = vadd.f32 %v2328, %v2330
        %2334 = vst [vmem:[#allocation2] sm:$0xff] %v2332
        %2335 = vst [vmem:[#allocation2 + $0x8] sm:$0xff] %v2333
        %p2336 = scmp.eq.s32.totalorder %s31, 10
        // Predicated region
        $region145: #{forward.2} parent=83 // pred_check
          %p2337 = pneg %p2336
        $region146: #{forward.2} parent=83 // pred_check_branch
          %2339 = sbr.rel (%p2337) target = $region148
        $region147: #{forward.2} parent=83 // pred_region
          %2340 = vst [vmem:[%s16] sm:$0xff] %v2332
          %2341 = vst [vmem:[%s16 + $0x8] sm:$0xff] %v2333
        $region148: #{forward.2} parent=83 // pred_fallthru
          _
        %p2342 = scmp.eq.s32.totalorder %s31, 11
        // Predicated region
        $region149: #{forward.2} parent=83 // pred_check
          %p2343 = pneg %p2342
        $region150: #{forward.2} parent=83 // pred_check_branch
          %2345 = sbr.rel (%p2343) target = $region152
        $region151: #{forward.2} parent=83 // pred_region
          %2346 = vst [vmem:[%s17] sm:$0xff] %v2332
          %2347 = vst [vmem:[%s17 + $0x8] sm:$0xff] %v2333
        $region152: #{forward.2} parent=83 // pred_fallthru
          _
        // Predicated region
        $region153: #{forward.2} parent=83 // pred_check
          %p2348 = pneg %p440
        $region154: #{forward.2} parent=83 // pred_check_branch
          %2350 = sbr.rel (%p2348) target = $region156
        $region155: #{forward.2} parent=83 // pred_region
          _
        $region156: #{forward.2} parent=83 // pred_fallthru
          _
        // Predicated region
        $region157: #{forward.2} parent=83 // pred_check
          %p2351 = pneg %p461
        $region158: #{forward.2} parent=83 // pred_check_branch
          %2353 = sbr.rel (%p2351) target = $region160
        $region159: #{forward.2} parent=83 // pred_region
          _
        $region160: #{forward.2} parent=83 // pred_fallthru
          _
        // Predicated region
        $region161: #{forward.2} parent=83 // pred_check
          %p2354 = pneg %p440
        $region162: #{forward.2} parent=83 // pred_check_branch
          %2356 = sbr.rel (%p2354) target = $region164
        $region163: #{forward.2} parent=83 // pred_region
          _
        $region164: #{forward.2} parent=83 // pred_fallthru
          _
        // Predicated region
        $region165: #{forward.2} parent=83 // pred_check
          %p2357 = pneg %p461
        $region166: #{forward.2} parent=83 // pred_check_branch
          %2359 = sbr.rel (%p2357) target = $region168
        $region167: #{forward.2} parent=83 // pred_region
          _
        $region168: #{forward.2} parent=83 // pred_fallthru
          _
      $region84: #{forward.2} parent=5 // pred_fallthru
        _
      %p2360 = scmp.le.s32.totalorder 2, %s26
      // Predicated region
      $region169: #{forward.2} parent=5 // pred_check
        %p2361 = pneg %p2360
      $region170: #{forward.2} parent=5 // pred_check_branch
        %2363 = sbr.rel (%p2361) target = $region172
      $region171: #{forward.2} parent=5 // pred_region
        %s2364 = ssub.s32 %s26, 2
      $region172: #{forward.2} parent=5 // pred_fallthru
        _
    $region6: #{forward.2} parent=1 // loop_footer
      %s30 = sadd.s32 1, %s26
    $region7: #{forward.2} parent=1 // loop_footer_branch
      %25 = sbr.rel target = $region3
    $region8: #{forward.2} parent=1 // loop_exit
      _
    %2365 = vsyncpa [#allocation4], 1
    %s2366 = scalar_lea.sflag [#allocation4], 1
    %2367 = vsyncpa %s2366, 1
    %2368 = vsyncpa [#allocation6], 1

</llo_original>
